<compile_context>
chip_gen: v7x
topology: tpu7x:2x2x1
jax: 0.10.0
libtpu: 0.0.40
codegen_flags: <defaults>
</compile_context>

<pallas_src>
import functools

import jax
import jax.numpy as jnp
from jax.experimental import pallas as pl
from jax.experimental.pallas import tpu as pltpu

LN_EPS = 1e-5  # PyTorch nn.LayerNorm default


def _erf(x):
    # Abramowitz & Stegun 7.1.26 (max abs err ~1.5e-7). Uses only mul/add/exp/where,
    # all safe Mosaic lowerings; accuracy is far below the bf16 matmul noise floor.
    a1, a2, a3, a4, a5 = 0.254829592, -0.284496736, 1.421413741, -1.453152027, 1.061405429
    p = 0.3275911
    ax = jnp.abs(x)
    t = 1.0 / (1.0 + p * ax)
    poly = ((((a5 * t + a4) * t + a3) * t + a2) * t + a1) * t
    y = 1.0 - poly * jnp.exp(-ax * ax)
    return jnp.where(x >= 0, y, -y)


def _gelu_exact(x):
    # PyTorch nn.GELU default (exact erf formulation).
    return 0.5 * x * (1.0 + _erf(x * (1.0 / jnp.sqrt(2.0).astype(x.dtype))))


def _layernorm(x, gamma, beta):
    mu = jnp.mean(x, axis=-1, keepdims=True)
    var = jnp.mean((x - mu) ** 2, axis=-1, keepdims=True)
    return (x - mu) * jax.lax.rsqrt(var + LN_EPS) * gamma + beta


def attention_block_kernel(
    x_ref,                          # (bb, S, E)  f32
    ln1_g_ref, ln1_b_ref,           # (1, E)      f32
    wqkv_ref, bqkv_ref,             # (E, 3E) bf16, (1, 3E) f32   (1/sqrt(d) folded into Q)
    wo_ref, bo_ref,                 # (E, E)  bf16, (1, E)  f32
    ln2_g_ref, ln2_b_ref,           # (1, E)      f32
    w1_ref, b1_ref,                 # (E, H)  bf16, (1, H)  f32
    w2_ref, b2_ref,                 # (H, E)  bf16, (1, E)  f32
    o_ref,                          # (bb, S, E)
    *, num_heads, kv_chunk, hidden_chunk,
):
    f32 = jnp.float32
    bf16 = jnp.bfloat16

    bb, S, E = x_ref.shape
    H = w1_ref.shape[1]
    d = E // num_heads
    G = num_heads * bb              # fused (head, batch) groups for batched einsums
    M = bb * S                      # matmul row dimension

    # ---- load + flatten rows (bb, S, E) -> (M, E); f32 reshape, free when S % 8 == 0 ----
    x = x_ref[...].astype(f32).reshape(M, E)

    # ---- LayerNorm 1 (f32 VPU work) ----
    h = _layernorm(x, ln1_g_ref[...], ln1_b_ref[...])

    # ---- fused QKV projection: a single (M,E)x(E,3E) bf16 MXU matmul ----
    qkv = jnp.dot(h.astype(bf16), wqkv_ref[...],
                  preferred_element_type=f32) + bqkv_ref[...]          # (M, 3E) f32

    def heads(base):
        # static lane slices of width d, stacked on the major axis -> (G, S, d)
        hs = [qkv[:, base + i * d: base + (i + 1) * d] for i in range(num_heads)]
        return jnp.stack(hs, axis=0).reshape(G, S, d)                  # f32

    q = heads(0)            # Q already scaled by 1/sqrt(d) via the folded weights/bias
    k = heads(E)
    v = heads(2 * E)

    # ---- attention: online softmax over KV chunks (flash pattern) ----
    # Static unroll: chunk count stays small even at production S (S / 512).
    n_kv = S // kv_chunk
    q_bf = q.astype(bf16)
    m_i = jnp.full((G, S, 1), -jnp.inf, f32)
    l_i = jnp.zeros((G, S, 1), f32)
    acc = jnp.zeros((G, S, d), f32)
    for c in range(n_kv):
        t0 = c * kv_chunk
        k_c = k[:, t0:t0 + kv_chunk, :].astype(bf16)
        v_c = v[:, t0:t0 + kv_chunk, :].astype(bf16)
        s = jnp.einsum("gsd,gtd->gst", q_bf, k_c,
                       preferred_element_type=f32)                     # (G, S, Tc)
        m_new = jnp.maximum(m_i, jnp.max(s, axis=-1, keepdims=True))
        alpha = jnp.exp(m_i - m_new)
        p = jnp.exp(s - m_new)
        l_i = alpha * l_i + jnp.sum(p, axis=-1, keepdims=True)
        acc = alpha * acc + jnp.einsum("gst,gtd->gsd", p.astype(bf16), v_c,
                                       preferred_element_type=f32)
        m_i = m_new
    ctx = acc * pl.reciprocal(l_i, approx=True)                        # (G, S, d) f32

    # ---- merge heads (one lane-concat copy pass) + single K=E output projection ----
    ctx = ctx.reshape(num_heads, M, d)                                 # f32 major regroup
    ctx = jnp.concatenate([ctx[i] for i in range(num_heads)], axis=-1)  # (M, E)
    attn = jnp.dot(ctx.astype(bf16), wo_ref[...],
                   preferred_element_type=f32) + bo_ref[...]

    # ---- residual 1 ----
    x = x + attn

    # ---- LayerNorm 2 + MLP, fused over hidden-dim chunks ----
    h2 = _layernorm(x, ln2_g_ref[...], ln2_b_ref[...]).astype(bf16)
    n_hc = H // hidden_chunk
    ff = None
    for c in range(n_hc):
        c0 = c * hidden_chunk
        a = jnp.dot(h2, w1_ref[:, c0:c0 + hidden_chunk],
                    preferred_element_type=f32) + b1_ref[:, c0:c0 + hidden_chunk]
        a = _gelu_exact(a).astype(bf16)
        part = jnp.dot(a, w2_ref[c0:c0 + hidden_chunk, :], preferred_element_type=f32)
        ff = part if ff is None else ff + part
    ff = ff + b2_ref[...]

    # ---- residual 2 + writeback ----
    o_ref[...] = (x + ff).reshape(bb, S, E).astype(o_ref.dtype)


def _pick_chunk(total, target):
    if target is None or target >= total or total % target != 0:
        return int(total)
    return int(target)


def attention_block(x_sbe, params, *, embed_dim, hidden_dim, num_heads,
                    batch_block=None, kv_chunk=512, hidden_chunk=1024):
    """x_sbe: (S, B, E) as in PyTorch (batch_first=False). Returns (S, B, E)."""
    S, B, E = x_sbe.shape
    H = hidden_dim
    assert E == embed_dim and E % num_heads == 0
    d = E // num_heads

    if batch_block is None:
        # Target ~8 grid steps so BlockSpec pipelining has work to overlap and v7x can
        # shard steps across its two TensorCores.  (Halve further on v7x if VMEM-bound.)
        batch_block = max(1, B // 8)
        while B % batch_block:
            batch_block -= 1
    assert B % batch_block == 0
    grid = (B // batch_block,)

    kv_chunk = _pick_chunk(S, kv_chunk)
    hidden_chunk = _pick_chunk(H, hidden_chunk)

    x_bse = jnp.transpose(x_sbe, (1, 0, 2))                            # (B, S, E)

    # ---- one-time host/XLA-side parameter prep (scale fold + bf16 weight casts) ----
    scale = 1.0 / (d ** 0.5)
    q_col_scale = jnp.concatenate(
        [jnp.full((E,), scale, jnp.float32), jnp.ones((2 * E,), jnp.float32)])
    wqkv_s = (params["wqkv"] * q_col_scale[None, :]).astype(jnp.bfloat16)   # (E, 3E)
    bqkv_s = (params["bqkv"] * q_col_scale[None, :]).astype(jnp.float32)    # (1, 3E)
    wo_bf = params["wo"].astype(jnp.bfloat16)
    w1_bf = params["w1"].astype(jnp.bfloat16)
    w2_bf = params["w2"].astype(jnp.bfloat16)

    kernel = functools.partial(attention_block_kernel, num_heads=num_heads,
                               kv_chunk=kv_chunk, hidden_chunk=hidden_chunk)

    # Generation-aware scoped-VMEM budget: ~3/4 of capacity, capped at 96 MiB
    # (-> ~48 MiB on v7x's 64 MiB VMEM, 96 MiB on v5e/v6e's 128 MiB).
    try:
        vmem_cap = pltpu.get_tpu_info().vmem_capacity_bytes
    except Exception:
        vmem_cap = 128 * 1024 * 1024
    vmem_limit = int(min(96 * 1024 * 1024, (vmem_cap * 3) // 4))

    def _run(single_buffer_weights):
        def const_spec(shape):
            nd = len(shape)
            kwargs = {}
            if single_buffer_weights:
                # Weights have a constant index_map: one DMA, one buffer is enough.
                kwargs["pipeline_mode"] = pl.Buffered(buffer_count=1)
            return pl.BlockSpec(shape, lambda b, _nd=nd: (0,) * _nd, **kwargs)

        grid_spec = pltpu.PrefetchScalarGridSpec(
            num_scalar_prefetch=0,
            grid=grid,
            in_specs=[
                pl.BlockSpec((batch_block, S, E), lambda b: (b, 0, 0)),   # x
                const_spec((1, E)), const_spec((1, E)),                   # ln1 gamma/beta
                const_spec((E, 3 * E)), const_spec((1, 3 * E)),           # Wqkv, bqkv
                const_spec((E, E)), const_spec((1, E)),                   # Wo, bo
                const_spec((1, E)), const_spec((1, E)),                   # ln2 gamma/beta
                const_spec((E, H)), const_spec((1, H)),                   # linear1
                const_spec((H, E)), const_spec((1, E)),                   # linear2
            ],
            out_specs=pl.BlockSpec((batch_block, S, E), lambda b: (b, 0, 0)),
        )
        return pl.pallas_call(
            kernel,
            out_shape=jax.ShapeDtypeStruct((B, S, E), x_sbe.dtype),
            grid_spec=grid_spec,
            compiler_params=pltpu.CompilerParams(
                dimension_semantics=("parallel",),
                vmem_limit_bytes=vmem_limit,
            ),
        )(
            x_bse,
            params["ln1_g"], params["ln1_b"],
            wqkv_s, bqkv_s,
            wo_bf, params["bo"],
            params["ln2_g"], params["ln2_b"],
            w1_bf, params["b1"],
            w2_bf, params["b2"],
        )

    try:
        out = _run(True)
    except Exception:
        # This JAX version rejected pipeline_mode/Buffered(1): fall back to default buffering.
        out = _run(False)
    return jnp.transpose(out, (1, 0, 2))                               # (B, S, E) -> (S, B, E)


def init_params(key, embed_dim, hidden_dim):
    """Deterministic synthetic parameters in x@W layout (PyTorch weights transposed)."""
    E, H = embed_dim, hidden_dim
    keys = jax.random.split(key, 6)
    scale = 0.02
    return {
        "ln1_g": jnp.ones((1, E), jnp.float32),
        "ln1_b": jnp.zeros((1, E), jnp.float32),
        # in_proj_weight in PyTorch is (3E, E); stored transposed (E, 3E).
        "wqkv": scale * jax.random.normal(keys[0], (E, 3 * E), jnp.float32),
        "bqkv": scale * jax.random.normal(keys[1], (1, 3 * E), jnp.float32),
        # out_proj.weight is (E, E); stored transposed.
        "wo": scale * jax.random.normal(keys[2], (E, E), jnp.float32),
        "bo": jnp.zeros((1, E), jnp.float32),
        "ln2_g": jnp.ones((1, E), jnp.float32),
        "ln2_b": jnp.zeros((1, E), jnp.float32),
        # linear1.weight is (H, E); stored transposed (E, H).
        "w1": scale * jax.random.normal(keys[3], (E, H), jnp.float32),
        "b1": scale * jax.random.normal(keys[4], (1, H), jnp.float32),
        # linear2.weight is (E, H); stored transposed (H, E).
        "w2": scale * jax.random.normal(keys[5], (H, E), jnp.float32),
        "b2": jnp.zeros((1, E), jnp.float32),
    }


def reference_attention_block(x_sbe, params, *, embed_dim, num_heads):
    """Pure-JAX f32 reference mirroring PyTorch semantics, for validation."""
    E = embed_dim
    D = E // num_heads
    S, B, _ = x_sbe.shape

    def ln(x, g, b):
        mu = x.mean(-1, keepdims=True)
        var = ((x - mu) ** 2).mean(-1, keepdims=True)
        return (x - mu) / jnp.sqrt(var + LN_EPS) * g[0] + b[0]

    x = x_sbe.astype(jnp.float32)
    h = ln(x, params["ln1_g"], params["ln1_b"])                       # (S, B, E)
    qkv = h @ params["wqkv"] + params["bqkv"][0]                      # (S, B, 3E)
    q, k, v = jnp.split(qkv, 3, axis=-1)

    def split_heads(t):  # (S, B, E) -> (B, nh, S, D)
        return t.reshape(S, B, num_heads, D).transpose(1, 2, 0, 3)

    qh, kh, vh = split_heads(q) / jnp.sqrt(D), split_heads(k), split_heads(v)
    scores = jnp.einsum("bhsd,bhtd->bhst", qh, kh)
    p = jax.nn.softmax(scores, axis=-1)
    o = jnp.einsum("bhst,bhtd->bhsd", p, vh)                          # (B, nh, S, D)
    o = o.transpose(2, 0, 1, 3).reshape(S, B, E)
    attn = o @ params["wo"] + params["bo"][0]
    x = x + attn
    h2 = ln(x, params["ln2_g"], params["ln2_b"])
    ff = h2 @ params["w1"] + params["b1"][0]
    ff = 0.5 * ff * (1.0 + jax.lax.erf(ff / jnp.sqrt(2.0)))
    ff = ff @ params["w2"] + params["b2"][0]
    return x + ff


if __name__ == "__main__":
    SEQ, BATCH, EMBED, HIDDEN, HEADS = 8, 2, 32, 64, 4

    key = jax.random.PRNGKey(0)
    k_x, k_p = jax.random.split(key)
    x = jax.random.normal(k_x, (SEQ, BATCH, EMBED), jnp.float32)      # (S, B, E)
    params = init_params(k_p, EMBED, HIDDEN)

    out = attention_block(x, params, embed_dim=EMBED, hidden_dim=HIDDEN, num_heads=HEADS)
    out = jax.block_until_ready(out)

    ref = reference_attention_block(x, params, embed_dim=EMBED, num_heads=HEADS)
    assert out.shape == (SEQ, BATCH, EMBED)
    err = float(jnp.max(jnp.abs(out - ref)))
    # bf16 MXU operands + approx softmax reciprocal vs. an f32 reference -> loose tolerance.
    assert err < 2e-2, f"max abs err {err}"

    print("KERNEL_OK")
</pallas_src>

<mosaic_0001>
module attributes {stable_mosaic.version = 11 : i64} {
  func.func @attention_block_kernel(%arg0: i32, %arg1: memref<1x8x32xf32, #tpu.memory_space<vmem>>, %arg2: memref<1x32xf32, #tpu.memory_space<vmem>>, %arg3: memref<1x32xf32, #tpu.memory_space<vmem>>, %arg4: memref<32x96xbf16, #tpu.memory_space<vmem>>, %arg5: memref<1x96xf32, #tpu.memory_space<vmem>>, %arg6: memref<32x32xbf16, #tpu.memory_space<vmem>>, %arg7: memref<1x32xf32, #tpu.memory_space<vmem>>, %arg8: memref<1x32xf32, #tpu.memory_space<vmem>>, %arg9: memref<1x32xf32, #tpu.memory_space<vmem>>, %arg10: memref<32x64xbf16, #tpu.memory_space<vmem>>, %arg11: memref<1x64xf32, #tpu.memory_space<vmem>>, %arg12: memref<64x32xbf16, #tpu.memory_space<vmem>>, %arg13: memref<1x32xf32, #tpu.memory_space<vmem>>, %arg14: memref<1x8x32xf32, #tpu.memory_space<vmem>>) attributes {dimension_semantics = [#tpu.dimension_semantics<parallel>], iteration_bounds = array<i64: 2>, scalar_prefetch = 0 : i64, scratch_operands = 0 : i64, tpu.core_type = #tpu.core_type<tc>, window_params = [{transform_indices = @transform_0, window_bounds = array<i64: 1, 8, 32>}, {pipeline_mode = #tpu.pipeline_mode<synchronous>, transform_indices = @transform_1, window_bounds = array<i64: 1, 32>}, {pipeline_mode = #tpu.pipeline_mode<synchronous>, transform_indices = @transform_2, window_bounds = array<i64: 1, 32>}, {pipeline_mode = #tpu.pipeline_mode<synchronous>, transform_indices = @transform_3, window_bounds = array<i64: 32, 96>}, {pipeline_mode = #tpu.pipeline_mode<synchronous>, transform_indices = @transform_4, window_bounds = array<i64: 1, 96>}, {pipeline_mode = #tpu.pipeline_mode<synchronous>, transform_indices = @transform_5, window_bounds = array<i64: 32, 32>}, {pipeline_mode = #tpu.pipeline_mode<synchronous>, transform_indices = @transform_6, window_bounds = array<i64: 1, 32>}, {pipeline_mode = #tpu.pipeline_mode<synchronous>, transform_indices = @transform_7, window_bounds = array<i64: 1, 32>}, {pipeline_mode = #tpu.pipeline_mode<synchronous>, transform_indices = @transform_8, window_bounds = array<i64: 1, 32>}, {pipeline_mode = #tpu.pipeline_mode<synchronous>, transform_indices = @transform_9, window_bounds = array<i64: 32, 64>}, {pipeline_mode = #tpu.pipeline_mode<synchronous>, transform_indices = @transform_10, window_bounds = array<i64: 1, 64>}, {pipeline_mode = #tpu.pipeline_mode<synchronous>, transform_indices = @transform_11, window_bounds = array<i64: 64, 32>}, {pipeline_mode = #tpu.pipeline_mode<synchronous>, transform_indices = @transform_12, window_bounds = array<i64: 1, 32>}, {transform_indices = @transform_13, window_bounds = array<i64: 1, 8, 32>}]} {
    %c0 = arith.constant 0 : index
    %c0_0 = arith.constant 0 : index
    %c0_1 = arith.constant 0 : index
    %0 = vector.load %arg1[%c0, %c0_0, %c0_1] : memref<1x8x32xf32, #tpu.memory_space<vmem>>, vector<1x8x32xf32>
    %1 = vector.shape_cast %0 : vector<1x8x32xf32> to vector<8x32xf32>
    %c0_2 = arith.constant 0 : index
    %c0_3 = arith.constant 0 : index
    %2 = vector.load %arg2[%c0_2, %c0_3] : memref<1x32xf32, #tpu.memory_space<vmem>>, vector<1x32xf32>
    %c0_4 = arith.constant 0 : index
    %c0_5 = arith.constant 0 : index
    %3 = vector.load %arg3[%c0_4, %c0_5] : memref<1x32xf32, #tpu.memory_space<vmem>>, vector<1x32xf32>
    %cst = arith.constant dense<0.000000e+00> : vector<8xf32>
    %4 = vector.multi_reduction <add>, %1, %cst [1] : vector<8x32xf32> to vector<8xf32>
    %5 = vector.shape_cast %4 : vector<8xf32> to vector<8x1xf32>
    %cst_6 = arith.constant 3.200000e+01 : f32
    %6 = vector.broadcast %cst_6 : f32 to vector<8x1xf32>
    %7 = arith.divf %5, %6 : vector<8x1xf32>
    %8 = vector.broadcast %7 : vector<8x1xf32> to vector<8x32xf32>
    %9 = arith.subf %1, %8 : vector<8x32xf32>
    %10 = arith.mulf %9, %9 : vector<8x32xf32>
    %cst_7 = arith.constant dense<0.000000e+00> : vector<8xf32>
    %11 = vector.multi_reduction <add>, %10, %cst_7 [1] : vector<8x32xf32> to vector<8xf32>
    %12 = vector.shape_cast %11 : vector<8xf32> to vector<8x1xf32>
    %cst_8 = arith.constant 3.200000e+01 : f32
    %13 = vector.broadcast %cst_8 : f32 to vector<8x1xf32>
    %14 = arith.divf %12, %13 : vector<8x1xf32>
    %15 = vector.broadcast %7 : vector<8x1xf32> to vector<8x32xf32>
    %16 = arith.subf %1, %15 : vector<8x32xf32>
    %cst_9 = arith.constant 9.99999974E-6 : f32
    %17 = vector.broadcast %cst_9 : f32 to vector<8x1xf32>
    %18 = arith.addf %14, %17 : vector<8x1xf32>
    %19 = math.rsqrt %18 : vector<8x1xf32>
    %20 = vector.broadcast %19 : vector<8x1xf32> to vector<8x32xf32>
    %21 = arith.mulf %16, %20 : vector<8x32xf32>
    %22 = vector.broadcast %2 : vector<1x32xf32> to vector<8x32xf32>
    %23 = arith.mulf %21, %22 : vector<8x32xf32>
    %24 = vector.broadcast %3 : vector<1x32xf32> to vector<8x32xf32>
    %25 = arith.addf %23, %24 : vector<8x32xf32>
    %26 = arith.truncf %25 : vector<8x32xf32> to vector<8x32xbf16>
    %c0_10 = arith.constant 0 : index
    %c0_11 = arith.constant 0 : index
    %27 = vector.load %arg4[%c0_10, %c0_11] : memref<32x96xbf16, #tpu.memory_space<vmem>>, vector<32x96xbf16>
    %cst_12 = arith.constant dense<0.000000e+00> : vector<8x96xf32>
    %28 = tpu.matmul %26, %27, %cst_12 {dimension_numbers = #tpu.dot_dimension_numbers<[1], [0], [0], [1], [0, 0, 1, 1], [], []>} : vector<8x32xbf16>, vector<32x96xbf16>, vector<8x96xf32> -> vector<8x96xf32>
    %c0_13 = arith.constant 0 : index
    %c0_14 = arith.constant 0 : index
    %29 = vector.load %arg5[%c0_13, %c0_14] : memref<1x96xf32, #tpu.memory_space<vmem>>, vector<1x96xf32>
    %30 = vector.broadcast %29 : vector<1x96xf32> to vector<8x96xf32>
    %31 = arith.addf %28, %30 : vector<8x96xf32>
    %32 = vector.extract_strided_slice %31 {offsets = [0, 0], sizes = [8, 8], strides = [1, 1]} : vector<8x96xf32> to vector<8x8xf32>
    %33 = vector.extract_strided_slice %31 {offsets = [0, 8], sizes = [8, 8], strides = [1, 1]} : vector<8x96xf32> to vector<8x8xf32>
    %34 = vector.extract_strided_slice %31 {offsets = [0, 16], sizes = [8, 8], strides = [1, 1]} : vector<8x96xf32> to vector<8x8xf32>
    %35 = vector.extract_strided_slice %31 {offsets = [0, 24], sizes = [8, 8], strides = [1, 1]} : vector<8x96xf32> to vector<8x8xf32>
    %36 = vector.shape_cast %32 : vector<8x8xf32> to vector<1x8x8xf32>
    %37 = vector.shape_cast %33 : vector<8x8xf32> to vector<1x8x8xf32>
    %38 = vector.shape_cast %34 : vector<8x8xf32> to vector<1x8x8xf32>
    %39 = vector.shape_cast %35 : vector<8x8xf32> to vector<1x8x8xf32>
    %40 = tpu.concatenate %36, %37, %38, %39 in 0 : vector<1x8x8xf32>, vector<1x8x8xf32>, vector<1x8x8xf32>, vector<1x8x8xf32> -> vector<4x8x8xf32>
    %41 = vector.extract_strided_slice %31 {offsets = [0, 32], sizes = [8, 8], strides = [1, 1]} : vector<8x96xf32> to vector<8x8xf32>
    %42 = vector.extract_strided_slice %31 {offsets = [0, 40], sizes = [8, 8], strides = [1, 1]} : vector<8x96xf32> to vector<8x8xf32>
    %43 = vector.extract_strided_slice %31 {offsets = [0, 48], sizes = [8, 8], strides = [1, 1]} : vector<8x96xf32> to vector<8x8xf32>
    %44 = vector.extract_strided_slice %31 {offsets = [0, 56], sizes = [8, 8], strides = [1, 1]} : vector<8x96xf32> to vector<8x8xf32>
    %45 = vector.shape_cast %41 : vector<8x8xf32> to vector<1x8x8xf32>
    %46 = vector.shape_cast %42 : vector<8x8xf32> to vector<1x8x8xf32>
    %47 = vector.shape_cast %43 : vector<8x8xf32> to vector<1x8x8xf32>
    %48 = vector.shape_cast %44 : vector<8x8xf32> to vector<1x8x8xf32>
    %49 = tpu.concatenate %45, %46, %47, %48 in 0 : vector<1x8x8xf32>, vector<1x8x8xf32>, vector<1x8x8xf32>, vector<1x8x8xf32> -> vector<4x8x8xf32>
    %50 = vector.extract_strided_slice %31 {offsets = [0, 64], sizes = [8, 8], strides = [1, 1]} : vector<8x96xf32> to vector<8x8xf32>
    %51 = vector.extract_strided_slice %31 {offsets = [0, 72], sizes = [8, 8], strides = [1, 1]} : vector<8x96xf32> to vector<8x8xf32>
    %52 = vector.extract_strided_slice %31 {offsets = [0, 80], sizes = [8, 8], strides = [1, 1]} : vector<8x96xf32> to vector<8x8xf32>
    %53 = vector.extract_strided_slice %31 {offsets = [0, 88], sizes = [8, 8], strides = [1, 1]} : vector<8x96xf32> to vector<8x8xf32>
    %54 = vector.shape_cast %50 : vector<8x8xf32> to vector<1x8x8xf32>
    %55 = vector.shape_cast %51 : vector<8x8xf32> to vector<1x8x8xf32>
    %56 = vector.shape_cast %52 : vector<8x8xf32> to vector<1x8x8xf32>
    %57 = vector.shape_cast %53 : vector<8x8xf32> to vector<1x8x8xf32>
    %58 = tpu.concatenate %54, %55, %56, %57 in 0 : vector<1x8x8xf32>, vector<1x8x8xf32>, vector<1x8x8xf32>, vector<1x8x8xf32> -> vector<4x8x8xf32>
    %59 = arith.truncf %40 : vector<4x8x8xf32> to vector<4x8x8xbf16>
    %cst_15 = arith.constant 0xFF800000 : f32
    %60 = vector.broadcast %cst_15 : f32 to vector<4x8x1xf32>
    %cst_16 = arith.constant 0.000000e+00 : f32
    %61 = vector.broadcast %cst_16 : f32 to vector<4x8x1xf32>
    %cst_17 = arith.constant 0.000000e+00 : f32
    %62 = vector.broadcast %cst_17 : f32 to vector<4x8x8xf32>
    %63 = arith.truncf %49 : vector<4x8x8xf32> to vector<4x8x8xbf16>
    %64 = arith.truncf %58 : vector<4x8x8xf32> to vector<4x8x8xbf16>
    "tpu.trace_start"() <{level = 10 : i32, message = "gsd,gtd->gst"}> : () -> ()
    %cst_18 = arith.constant dense<0.000000e+00> : vector<4x8x8xf32>
    %65 = tpu.matmul %59, %63, %cst_18 {dimension_numbers = #tpu.dot_dimension_numbers<[2], [2], [1], [1], [0, 0, 0, 1, 1, 1], [0], [0]>} : vector<4x8x8xbf16>, vector<4x8x8xbf16>, vector<4x8x8xf32> -> vector<4x8x8xf32>
    "tpu.trace_stop"() : () -> ()
    %cst_19 = arith.constant dense<0xFF800000> : vector<4x8xf32>
    %66 = vector.multi_reduction <maximumf>, %65, %cst_19 [2] : vector<4x8x8xf32> to vector<4x8xf32>
    %67 = vector.shape_cast %66 : vector<4x8xf32> to vector<4x8x1xf32>
    %68 = arith.maximumf %60, %67 : vector<4x8x1xf32>
    %69 = arith.subf %60, %68 : vector<4x8x1xf32>
    %70 = math.exp %69 : vector<4x8x1xf32>
    %71 = vector.broadcast %68 : vector<4x8x1xf32> to vector<4x8x8xf32>
    %72 = arith.subf %65, %71 : vector<4x8x8xf32>
    %73 = math.exp %72 : vector<4x8x8xf32>
    %74 = arith.mulf %70, %61 : vector<4x8x1xf32>
    %cst_20 = arith.constant dense<0.000000e+00> : vector<4x8xf32>
    %75 = vector.multi_reduction <add>, %73, %cst_20 [2] : vector<4x8x8xf32> to vector<4x8xf32>
    %76 = vector.shape_cast %75 : vector<4x8xf32> to vector<4x8x1xf32>
    %77 = arith.addf %74, %76 : vector<4x8x1xf32>
    %78 = vector.broadcast %70 : vector<4x8x1xf32> to vector<4x8x8xf32>
    %79 = arith.mulf %78, %62 : vector<4x8x8xf32>
    %80 = arith.truncf %73 : vector<4x8x8xf32> to vector<4x8x8xbf16>
    "tpu.trace_start"() <{level = 10 : i32, message = "gst,gtd->gsd"}> : () -> ()
    %cst_21 = arith.constant dense<0.000000e+00> : vector<4x8x8xf32>
    %81 = tpu.matmul %80, %64, %cst_21 {dimension_numbers = #tpu.dot_dimension_numbers<[2], [1], [1], [2], [0, 0, 0, 1, 1, 2], [0], [0]>} : vector<4x8x8xbf16>, vector<4x8x8xbf16>, vector<4x8x8xf32> -> vector<4x8x8xf32>
    "tpu.trace_stop"() : () -> ()
    %82 = arith.addf %79, %81 : vector<4x8x8xf32>
    %83 = tpu.reciprocal %77 {approx = true} : vector<4x8x1xf32> -> vector<4x8x1xf32>
    %84 = vector.broadcast %83 : vector<4x8x1xf32> to vector<4x8x8xf32>
    %85 = arith.mulf %82, %84 : vector<4x8x8xf32>
    %86 = vector.extract_strided_slice %85 {offsets = [0, 0, 0], sizes = [1, 8, 8], strides = [1, 1, 1]} : vector<4x8x8xf32> to vector<1x8x8xf32>
    %87 = vector.shape_cast %86 : vector<1x8x8xf32> to vector<8x8xf32>
    %88 = vector.extract_strided_slice %85 {offsets = [1, 0, 0], sizes = [1, 8, 8], strides = [1, 1, 1]} : vector<4x8x8xf32> to vector<1x8x8xf32>
    %89 = vector.shape_cast %88 : vector<1x8x8xf32> to vector<8x8xf32>
    %90 = vector.extract_strided_slice %85 {offsets = [2, 0, 0], sizes = [1, 8, 8], strides = [1, 1, 1]} : vector<4x8x8xf32> to vector<1x8x8xf32>
    %91 = vector.shape_cast %90 : vector<1x8x8xf32> to vector<8x8xf32>
    %92 = vector.extract_strided_slice %85 {offsets = [3, 0, 0], sizes = [1, 8, 8], strides = [1, 1, 1]} : vector<4x8x8xf32> to vector<1x8x8xf32>
    %93 = vector.shape_cast %92 : vector<1x8x8xf32> to vector<8x8xf32>
    %94 = tpu.concatenate %87, %89, %91, %93 in 1 : vector<8x8xf32>, vector<8x8xf32>, vector<8x8xf32>, vector<8x8xf32> -> vector<8x32xf32>
    %95 = arith.truncf %94 : vector<8x32xf32> to vector<8x32xbf16>
    %c0_22 = arith.constant 0 : index
    %c0_23 = arith.constant 0 : index
    %96 = vector.load %arg6[%c0_22, %c0_23] : memref<32x32xbf16, #tpu.memory_space<vmem>>, vector<32x32xbf16>
    %cst_24 = arith.constant dense<0.000000e+00> : vector<8x32xf32>
    %97 = tpu.matmul %95, %96, %cst_24 {dimension_numbers = #tpu.dot_dimension_numbers<[1], [0], [0], [1], [0, 0, 1, 1], [], []>} : vector<8x32xbf16>, vector<32x32xbf16>, vector<8x32xf32> -> vector<8x32xf32>
    %c0_25 = arith.constant 0 : index
    %c0_26 = arith.constant 0 : index
    %98 = vector.load %arg7[%c0_25, %c0_26] : memref<1x32xf32, #tpu.memory_space<vmem>>, vector<1x32xf32>
    %99 = vector.broadcast %98 : vector<1x32xf32> to vector<8x32xf32>
    %100 = arith.addf %97, %99 : vector<8x32xf32>
    %101 = arith.addf %1, %100 : vector<8x32xf32>
    %c0_27 = arith.constant 0 : index
    %c0_28 = arith.constant 0 : index
    %102 = vector.load %arg8[%c0_27, %c0_28] : memref<1x32xf32, #tpu.memory_space<vmem>>, vector<1x32xf32>
    %c0_29 = arith.constant 0 : index
    %c0_30 = arith.constant 0 : index
    %103 = vector.load %arg9[%c0_29, %c0_30] : memref<1x32xf32, #tpu.memory_space<vmem>>, vector<1x32xf32>
    %cst_31 = arith.constant dense<0.000000e+00> : vector<8xf32>
    %104 = vector.multi_reduction <add>, %101, %cst_31 [1] : vector<8x32xf32> to vector<8xf32>
    %105 = vector.shape_cast %104 : vector<8xf32> to vector<8x1xf32>
    %cst_32 = arith.constant 3.200000e+01 : f32
    %106 = vector.broadcast %cst_32 : f32 to vector<8x1xf32>
    %107 = arith.divf %105, %106 : vector<8x1xf32>
    %108 = vector.broadcast %107 : vector<8x1xf32> to vector<8x32xf32>
    %109 = arith.subf %101, %108 : vector<8x32xf32>
    %110 = arith.mulf %109, %109 : vector<8x32xf32>
    %cst_33 = arith.constant dense<0.000000e+00> : vector<8xf32>
    %111 = vector.multi_reduction <add>, %110, %cst_33 [1] : vector<8x32xf32> to vector<8xf32>
    %112 = vector.shape_cast %111 : vector<8xf32> to vector<8x1xf32>
    %cst_34 = arith.constant 3.200000e+01 : f32
    %113 = vector.broadcast %cst_34 : f32 to vector<8x1xf32>
    %114 = arith.divf %112, %113 : vector<8x1xf32>
    %115 = vector.broadcast %107 : vector<8x1xf32> to vector<8x32xf32>
    %116 = arith.subf %101, %115 : vector<8x32xf32>
    %cst_35 = arith.constant 9.99999974E-6 : f32
    %117 = vector.broadcast %cst_35 : f32 to vector<8x1xf32>
    %118 = arith.addf %114, %117 : vector<8x1xf32>
    %119 = math.rsqrt %118 : vector<8x1xf32>
    %120 = vector.broadcast %119 : vector<8x1xf32> to vector<8x32xf32>
    %121 = arith.mulf %116, %120 : vector<8x32xf32>
    %122 = vector.broadcast %102 : vector<1x32xf32> to vector<8x32xf32>
    %123 = arith.mulf %121, %122 : vector<8x32xf32>
    %124 = vector.broadcast %103 : vector<1x32xf32> to vector<8x32xf32>
    %125 = arith.addf %123, %124 : vector<8x32xf32>
    %126 = arith.truncf %125 : vector<8x32xf32> to vector<8x32xbf16>
    %c0_36 = arith.constant 0 : index
    %c0_37 = arith.constant 0 : index
    %127 = vector.load %arg10[%c0_36, %c0_37] : memref<32x64xbf16, #tpu.memory_space<vmem>>, vector<32x64xbf16>
    %cst_38 = arith.constant dense<0.000000e+00> : vector<8x64xf32>
    %128 = tpu.matmul %126, %127, %cst_38 {dimension_numbers = #tpu.dot_dimension_numbers<[1], [0], [0], [1], [0, 0, 1, 1], [], []>} : vector<8x32xbf16>, vector<32x64xbf16>, vector<8x64xf32> -> vector<8x64xf32>
    %c0_39 = arith.constant 0 : index
    %c0_40 = arith.constant 0 : index
    %129 = vector.load %arg11[%c0_39, %c0_40] : memref<1x64xf32, #tpu.memory_space<vmem>>, vector<1x64xf32>
    %130 = vector.broadcast %129 : vector<1x64xf32> to vector<8x64xf32>
    %131 = arith.addf %128, %130 : vector<8x64xf32>
    %cst_41 = arith.constant 5.000000e-01 : f32
    %132 = vector.broadcast %cst_41 : f32 to vector<8x64xf32>
    %133 = arith.mulf %132, %131 : vector<8x64xf32>
    %cst_42 = arith.constant 2.000000e+00 : f32
    %134 = math.sqrt %cst_42 : f32
    %cst_43 = arith.constant 1.000000e+00 : f32
    %135 = arith.divf %cst_43, %134 : f32
    %136 = vector.broadcast %135 : f32 to vector<8x64xf32>
    %137 = arith.mulf %131, %136 : vector<8x64xf32>
    %138 = math.absf %137 : vector<8x64xf32>
    %cst_44 = arith.constant 0.327591091 : f32
    %139 = vector.broadcast %cst_44 : f32 to vector<8x64xf32>
    %140 = arith.mulf %139, %138 : vector<8x64xf32>
    %cst_45 = arith.constant 1.000000e+00 : f32
    %141 = vector.broadcast %cst_45 : f32 to vector<8x64xf32>
    %142 = arith.addf %141, %140 : vector<8x64xf32>
    %cst_46 = arith.constant 1.000000e+00 : f32
    %143 = vector.broadcast %cst_46 : f32 to vector<8x64xf32>
    %144 = arith.divf %143, %142 : vector<8x64xf32>
    %cst_47 = arith.constant 1.06140542 : f32
    %145 = vector.broadcast %cst_47 : f32 to vector<8x64xf32>
    %146 = arith.mulf %145, %144 : vector<8x64xf32>
    %cst_48 = arith.constant -1.45315206 : f32
    %147 = vector.broadcast %cst_48 : f32 to vector<8x64xf32>
    %148 = arith.addf %146, %147 : vector<8x64xf32>
    %149 = arith.mulf %148, %144 : vector<8x64xf32>
    %cst_49 = arith.constant 1.42141378 : f32
    %150 = vector.broadcast %cst_49 : f32 to vector<8x64xf32>
    %151 = arith.addf %149, %150 : vector<8x64xf32>
    %152 = arith.mulf %151, %144 : vector<8x64xf32>
    %cst_50 = arith.constant -0.284496725 : f32
    %153 = vector.broadcast %cst_50 : f32 to vector<8x64xf32>
    %154 = arith.addf %152, %153 : vector<8x64xf32>
    %155 = arith.mulf %154, %144 : vector<8x64xf32>
    %cst_51 = arith.constant 0.254829586 : f32
    %156 = vector.broadcast %cst_51 : f32 to vector<8x64xf32>
    %157 = arith.addf %155, %156 : vector<8x64xf32>
    %158 = arith.mulf %157, %144 : vector<8x64xf32>
    %cst_52 = arith.constant 0.000000e+00 : f32
    %159 = vector.broadcast %cst_52 : f32 to vector<8x64xf32>
    %160 = arith.subf %159, %138 : vector<8x64xf32>
    %161 = arith.mulf %160, %138 : vector<8x64xf32>
    %162 = math.exp %161 : vector<8x64xf32>
    %163 = arith.mulf %158, %162 : vector<8x64xf32>
    %cst_53 = arith.constant 1.000000e+00 : f32
    %164 = vector.broadcast %cst_53 : f32 to vector<8x64xf32>
    %165 = arith.subf %164, %163 : vector<8x64xf32>
    %cst_54 = arith.constant 0.000000e+00 : f32
    %166 = vector.broadcast %cst_54 : f32 to vector<8x64xf32>
    %167 = arith.cmpf oge, %137, %166 : vector<8x64xf32>
    %cst_55 = arith.constant 0.000000e+00 : f32
    %168 = vector.broadcast %cst_55 : f32 to vector<8x64xf32>
    %169 = arith.subf %168, %165 : vector<8x64xf32>
    %170 = arith.select %167, %165, %169 : vector<8x64xi1>, vector<8x64xf32>
    %cst_56 = arith.constant 1.000000e+00 : f32
    %171 = vector.broadcast %cst_56 : f32 to vector<8x64xf32>
    %172 = arith.addf %171, %170 : vector<8x64xf32>
    %173 = arith.mulf %133, %172 : vector<8x64xf32>
    %174 = arith.truncf %173 : vector<8x64xf32> to vector<8x64xbf16>
    %c0_57 = arith.constant 0 : index
    %c0_58 = arith.constant 0 : index
    %175 = vector.load %arg12[%c0_57, %c0_58] : memref<64x32xbf16, #tpu.memory_space<vmem>>, vector<64x32xbf16>
    %cst_59 = arith.constant dense<0.000000e+00> : vector<8x32xf32>
    %176 = tpu.matmul %174, %175, %cst_59 {dimension_numbers = #tpu.dot_dimension_numbers<[1], [0], [0], [1], [0, 0, 1, 1], [], []>} : vector<8x64xbf16>, vector<64x32xbf16>, vector<8x32xf32> -> vector<8x32xf32>
    %c0_60 = arith.constant 0 : index
    %c0_61 = arith.constant 0 : index
    %177 = vector.load %arg13[%c0_60, %c0_61] : memref<1x32xf32, #tpu.memory_space<vmem>>, vector<1x32xf32>
    %178 = vector.broadcast %177 : vector<1x32xf32> to vector<8x32xf32>
    %179 = arith.addf %176, %178 : vector<8x32xf32>
    %180 = arith.addf %101, %179 : vector<8x32xf32>
    %181 = vector.shape_cast %180 : vector<8x32xf32> to vector<1x8x32xf32>
    %c0_62 = arith.constant 0 : index
    %c0_63 = arith.constant 0 : index
    %c0_64 = arith.constant 0 : index
    %182 = vector.load %arg14[%c0_62, %c0_63, %c0_64] : memref<1x8x32xf32, #tpu.memory_space<vmem>>, vector<1x8x32xf32>
    tpu.vector_store %arg14[%c0_62, %c0_63, %c0_64], %181 {strides = array<i32>} : memref<1x8x32xf32, #tpu.memory_space<vmem>>, vector<1x8x32xf32>,
    return
  }
  func.func @transform_0(%arg0: i32) -> (i32, i32, i32) {
    %c0_i32 = arith.constant 0 : i32
    %c0_i32_0 = arith.constant 0 : i32
    %c0_i32_1 = arith.constant 0 : i32
    return %arg0, %c0_i32, %c0_i32_0 : i32, i32, i32
  }
  func.func @transform_1(%arg0: i32) -> (i32, i32) {
    %c0_i32 = arith.constant 0 : i32
    %c0_i32_0 = arith.constant 0 : i32
    %c0_i32_1 = arith.constant 0 : i32
    return %c0_i32, %c0_i32_0 : i32, i32
  }
  func.func @transform_2(%arg0: i32) -> (i32, i32) {
    %c0_i32 = arith.constant 0 : i32
    %c0_i32_0 = arith.constant 0 : i32
    %c0_i32_1 = arith.constant 0 : i32
    return %c0_i32, %c0_i32_0 : i32, i32
  }
  func.func @transform_3(%arg0: i32) -> (i32, i32) {
    %c0_i32 = arith.constant 0 : i32
    %c0_i32_0 = arith.constant 0 : i32
    %c0_i32_1 = arith.constant 0 : i32
    return %c0_i32, %c0_i32_0 : i32, i32
  }
  func.func @transform_4(%arg0: i32) -> (i32, i32) {
    %c0_i32 = arith.constant 0 : i32
    %c0_i32_0 = arith.constant 0 : i32
    %c0_i32_1 = arith.constant 0 : i32
    return %c0_i32, %c0_i32_0 : i32, i32
  }
  func.func @transform_5(%arg0: i32) -> (i32, i32) {
    %c0_i32 = arith.constant 0 : i32
    %c0_i32_0 = arith.constant 0 : i32
    %c0_i32_1 = arith.constant 0 : i32
    return %c0_i32, %c0_i32_0 : i32, i32
  }
  func.func @transform_6(%arg0: i32) -> (i32, i32) {
    %c0_i32 = arith.constant 0 : i32
    %c0_i32_0 = arith.constant 0 : i32
    %c0_i32_1 = arith.constant 0 : i32
    return %c0_i32, %c0_i32_0 : i32, i32
  }
  func.func @transform_7(%arg0: i32) -> (i32, i32) {
    %c0_i32 = arith.constant 0 : i32
    %c0_i32_0 = arith.constant 0 : i32
    %c0_i32_1 = arith.constant 0 : i32
    return %c0_i32, %c0_i32_0 : i32, i32
  }
  func.func @transform_8(%arg0: i32) -> (i32, i32) {
    %c0_i32 = arith.constant 0 : i32
    %c0_i32_0 = arith.constant 0 : i32
    %c0_i32_1 = arith.constant 0 : i32
    return %c0_i32, %c0_i32_0 : i32, i32
  }
  func.func @transform_9(%arg0: i32) -> (i32, i32) {
    %c0_i32 = arith.constant 0 : i32
    %c0_i32_0 = arith.constant 0 : i32
    %c0_i32_1 = arith.constant 0 : i32
    return %c0_i32, %c0_i32_0 : i32, i32
  }
  func.func @transform_10(%arg0: i32) -> (i32, i32) {
    %c0_i32 = arith.constant 0 : i32
    %c0_i32_0 = arith.constant 0 : i32
    %c0_i32_1 = arith.constant 0 : i32
    return %c0_i32, %c0_i32_0 : i32, i32
  }
  func.func @transform_11(%arg0: i32) -> (i32, i32) {
    %c0_i32 = arith.constant 0 : i32
    %c0_i32_0 = arith.constant 0 : i32
    %c0_i32_1 = arith.constant 0 : i32
    return %c0_i32, %c0_i32_0 : i32, i32
  }
  func.func @transform_12(%arg0: i32) -> (i32, i32) {
    %c0_i32 = arith.constant 0 : i32
    %c0_i32_0 = arith.constant 0 : i32
    %c0_i32_1 = arith.constant 0 : i32
    return %c0_i32, %c0_i32_0 : i32, i32
  }
  func.func @transform_13(%arg0: i32) -> (i32, i32, i32) {
    %c0_i32 = arith.constant 0 : i32
    %c0_i32_0 = arith.constant 0 : i32
    %c0_i32_1 = arith.constant 0 : i32
    return %arg0, %c0_i32, %c0_i32_0 : i32, i32, i32
  }
}

module attributes {stable_mosaic.version = 11 : i64} {
  func.func @attention_block_kernel(%arg0: i32, %arg1: memref<1x8x32xf32, #tpu.memory_space<vmem>>, %arg2: memref<1x32xf32, #tpu.memory_space<vmem>>, %arg3: memref<1x32xf32, #tpu.memory_space<vmem>>, %arg4: memref<32x96xbf16, #tpu.memory_space<vmem>>, %arg5: memref<1x96xf32, #tpu.memory_space<vmem>>, %arg6: memref<32x32xbf16, #tpu.memory_space<vmem>>, %arg7: memref<1x32xf32, #tpu.memory_space<vmem>>, %arg8: memref<1x32xf32, #tpu.memory_space<vmem>>, %arg9: memref<1x32xf32, #tpu.memory_space<vmem>>, %arg10: memref<32x64xbf16, #tpu.memory_space<vmem>>, %arg11: memref<1x64xf32, #tpu.memory_space<vmem>>, %arg12: memref<64x32xbf16, #tpu.memory_space<vmem>>, %arg13: memref<1x32xf32, #tpu.memory_space<vmem>>, %arg14: memref<1x8x32xf32, #tpu.memory_space<vmem>>) attributes {dimension_semantics = [#tpu.dimension_semantics<parallel>], iteration_bounds = array<i64: 2>, scalar_prefetch = 0 : i64, scratch_operands = 0 : i64, tpu.core_type = #tpu.core_type<tc>, window_params = [{transform_indices = @transform_0, window_bounds = array<i64: 1, 8, 32>}, {pipeline_mode = #tpu.pipeline_mode<synchronous>, transform_indices = @transform_1, window_bounds = array<i64: 1, 32>}, {pipeline_mode = #tpu.pipeline_mode<synchronous>, transform_indices = @transform_2, window_bounds = array<i64: 1, 32>}, {pipeline_mode = #tpu.pipeline_mode<synchronous>, transform_indices = @transform_3, window_bounds = array<i64: 32, 96>}, {pipeline_mode = #tpu.pipeline_mode<synchronous>, transform_indices = @transform_4, window_bounds = array<i64: 1, 96>}, {pipeline_mode = #tpu.pipeline_mode<synchronous>, transform_indices = @transform_5, window_bounds = array<i64: 32, 32>}, {pipeline_mode = #tpu.pipeline_mode<synchronous>, transform_indices = @transform_6, window_bounds = array<i64: 1, 32>}, {pipeline_mode = #tpu.pipeline_mode<synchronous>, transform_indices = @transform_7, window_bounds = array<i64: 1, 32>}, {pipeline_mode = #tpu.pipeline_mode<synchronous>, transform_indices = @transform_8, window_bounds = array<i64: 1, 32>}, {pipeline_mode = #tpu.pipeline_mode<synchronous>, transform_indices = @transform_9, window_bounds = array<i64: 32, 64>}, {pipeline_mode = #tpu.pipeline_mode<synchronous>, transform_indices = @transform_10, window_bounds = array<i64: 1, 64>}, {pipeline_mode = #tpu.pipeline_mode<synchronous>, transform_indices = @transform_11, window_bounds = array<i64: 64, 32>}, {pipeline_mode = #tpu.pipeline_mode<synchronous>, transform_indices = @transform_12, window_bounds = array<i64: 1, 32>}, {transform_indices = @transform_13, window_bounds = array<i64: 1, 8, 32>}]} {
    %c0 = arith.constant 0 : index
    %c0_0 = arith.constant 0 : index
    %c0_1 = arith.constant 0 : index
    %0 = vector.load %arg1[%c0, %c0_0, %c0_1] : memref<1x8x32xf32, #tpu.memory_space<vmem>>, vector<1x8x32xf32>
    %1 = vector.shape_cast %0 : vector<1x8x32xf32> to vector<8x32xf32>
    %c0_2 = arith.constant 0 : index
    %c0_3 = arith.constant 0 : index
    %2 = vector.load %arg2[%c0_2, %c0_3] : memref<1x32xf32, #tpu.memory_space<vmem>>, vector<1x32xf32>
    %c0_4 = arith.constant 0 : index
    %c0_5 = arith.constant 0 : index
    %3 = vector.load %arg3[%c0_4, %c0_5] : memref<1x32xf32, #tpu.memory_space<vmem>>, vector<1x32xf32>
    %cst = arith.constant dense<0.000000e+00> : vector<8xf32>
    %4 = vector.multi_reduction <add>, %1, %cst [1] : vector<8x32xf32> to vector<8xf32>
    %5 = vector.shape_cast %4 : vector<8xf32> to vector<8x1xf32>
    %cst_6 = arith.constant 3.200000e+01 : f32
    %6 = vector.broadcast %cst_6 : f32 to vector<8x1xf32>
    %7 = arith.divf %5, %6 : vector<8x1xf32>
    %8 = vector.broadcast %7 : vector<8x1xf32> to vector<8x32xf32>
    %9 = arith.subf %1, %8 : vector<8x32xf32>
    %10 = arith.mulf %9, %9 : vector<8x32xf32>
    %cst_7 = arith.constant dense<0.000000e+00> : vector<8xf32>
    %11 = vector.multi_reduction <add>, %10, %cst_7 [1] : vector<8x32xf32> to vector<8xf32>
    %12 = vector.shape_cast %11 : vector<8xf32> to vector<8x1xf32>
    %cst_8 = arith.constant 3.200000e+01 : f32
    %13 = vector.broadcast %cst_8 : f32 to vector<8x1xf32>
    %14 = arith.divf %12, %13 : vector<8x1xf32>
    %15 = vector.broadcast %7 : vector<8x1xf32> to vector<8x32xf32>
    %16 = arith.subf %1, %15 : vector<8x32xf32>
    %cst_9 = arith.constant 9.99999974E-6 : f32
    %17 = vector.broadcast %cst_9 : f32 to vector<8x1xf32>
    %18 = arith.addf %14, %17 : vector<8x1xf32>
    %19 = math.rsqrt %18 : vector<8x1xf32>
    %20 = vector.broadcast %19 : vector<8x1xf32> to vector<8x32xf32>
    %21 = arith.mulf %16, %20 : vector<8x32xf32>
    %22 = vector.broadcast %2 : vector<1x32xf32> to vector<8x32xf32>
    %23 = arith.mulf %21, %22 : vector<8x32xf32>
    %24 = vector.broadcast %3 : vector<1x32xf32> to vector<8x32xf32>
    %25 = arith.addf %23, %24 : vector<8x32xf32>
    %26 = arith.truncf %25 : vector<8x32xf32> to vector<8x32xbf16>
    %c0_10 = arith.constant 0 : index
    %c0_11 = arith.constant 0 : index
    %27 = vector.load %arg4[%c0_10, %c0_11] : memref<32x96xbf16, #tpu.memory_space<vmem>>, vector<32x96xbf16>
    %cst_12 = arith.constant dense<0.000000e+00> : vector<8x96xf32>
    %28 = tpu.matmul %26, %27, %cst_12 {dimension_numbers = #tpu.dot_dimension_numbers<[1], [0], [0], [1], [0, 0, 1, 1], [], []>} : vector<8x32xbf16>, vector<32x96xbf16>, vector<8x96xf32> -> vector<8x96xf32>
    %c0_13 = arith.constant 0 : index
    %c0_14 = arith.constant 0 : index
    %29 = vector.load %arg5[%c0_13, %c0_14] : memref<1x96xf32, #tpu.memory_space<vmem>>, vector<1x96xf32>
    %30 = vector.broadcast %29 : vector<1x96xf32> to vector<8x96xf32>
    %31 = arith.addf %28, %30 : vector<8x96xf32>
    %32 = vector.extract_strided_slice %31 {offsets = [0, 0], sizes = [8, 8], strides = [1, 1]} : vector<8x96xf32> to vector<8x8xf32>
    %33 = vector.extract_strided_slice %31 {offsets = [0, 8], sizes = [8, 8], strides = [1, 1]} : vector<8x96xf32> to vector<8x8xf32>
    %34 = vector.extract_strided_slice %31 {offsets = [0, 16], sizes = [8, 8], strides = [1, 1]} : vector<8x96xf32> to vector<8x8xf32>
    %35 = vector.extract_strided_slice %31 {offsets = [0, 24], sizes = [8, 8], strides = [1, 1]} : vector<8x96xf32> to vector<8x8xf32>
    %36 = vector.shape_cast %32 : vector<8x8xf32> to vector<1x8x8xf32>
    %37 = vector.shape_cast %33 : vector<8x8xf32> to vector<1x8x8xf32>
    %38 = vector.shape_cast %34 : vector<8x8xf32> to vector<1x8x8xf32>
    %39 = vector.shape_cast %35 : vector<8x8xf32> to vector<1x8x8xf32>
    %40 = tpu.concatenate %36, %37, %38, %39 in 0 : vector<1x8x8xf32>, vector<1x8x8xf32>, vector<1x8x8xf32>, vector<1x8x8xf32> -> vector<4x8x8xf32>
    %41 = vector.extract_strided_slice %31 {offsets = [0, 32], sizes = [8, 8], strides = [1, 1]} : vector<8x96xf32> to vector<8x8xf32>
    %42 = vector.extract_strided_slice %31 {offsets = [0, 40], sizes = [8, 8], strides = [1, 1]} : vector<8x96xf32> to vector<8x8xf32>
    %43 = vector.extract_strided_slice %31 {offsets = [0, 48], sizes = [8, 8], strides = [1, 1]} : vector<8x96xf32> to vector<8x8xf32>
    %44 = vector.extract_strided_slice %31 {offsets = [0, 56], sizes = [8, 8], strides = [1, 1]} : vector<8x96xf32> to vector<8x8xf32>
    %45 = vector.shape_cast %41 : vector<8x8xf32> to vector<1x8x8xf32>
    %46 = vector.shape_cast %42 : vector<8x8xf32> to vector<1x8x8xf32>
    %47 = vector.shape_cast %43 : vector<8x8xf32> to vector<1x8x8xf32>
    %48 = vector.shape_cast %44 : vector<8x8xf32> to vector<1x8x8xf32>
    %49 = tpu.concatenate %45, %46, %47, %48 in 0 : vector<1x8x8xf32>, vector<1x8x8xf32>, vector<1x8x8xf32>, vector<1x8x8xf32> -> vector<4x8x8xf32>
    %50 = vector.extract_strided_slice %31 {offsets = [0, 64], sizes = [8, 8], strides = [1, 1]} : vector<8x96xf32> to vector<8x8xf32>
    %51 = vector.extract_strided_slice %31 {offsets = [0, 72], sizes = [8, 8], strides = [1, 1]} : vector<8x96xf32> to vector<8x8xf32>
    %52 = vector.extract_strided_slice %31 {offsets = [0, 80], sizes = [8, 8], strides = [1, 1]} : vector<8x96xf32> to vector<8x8xf32>
    %53 = vector.extract_strided_slice %31 {offsets = [0, 88], sizes = [8, 8], strides = [1, 1]} : vector<8x96xf32> to vector<8x8xf32>
    %54 = vector.shape_cast %50 : vector<8x8xf32> to vector<1x8x8xf32>
    %55 = vector.shape_cast %51 : vector<8x8xf32> to vector<1x8x8xf32>
    %56 = vector.shape_cast %52 : vector<8x8xf32> to vector<1x8x8xf32>
    %57 = vector.shape_cast %53 : vector<8x8xf32> to vector<1x8x8xf32>
    %58 = tpu.concatenate %54, %55, %56, %57 in 0 : vector<1x8x8xf32>, vector<1x8x8xf32>, vector<1x8x8xf32>, vector<1x8x8xf32> -> vector<4x8x8xf32>
    %59 = arith.truncf %40 : vector<4x8x8xf32> to vector<4x8x8xbf16>
    %cst_15 = arith.constant 0xFF800000 : f32
    %60 = vector.broadcast %cst_15 : f32 to vector<4x8x1xf32>
    %cst_16 = arith.constant 0.000000e+00 : f32
    %61 = vector.broadcast %cst_16 : f32 to vector<4x8x1xf32>
    %cst_17 = arith.constant 0.000000e+00 : f32
    %62 = vector.broadcast %cst_17 : f32 to vector<4x8x8xf32>
    %63 = arith.truncf %49 : vector<4x8x8xf32> to vector<4x8x8xbf16>
    %64 = arith.truncf %58 : vector<4x8x8xf32> to vector<4x8x8xbf16>
    "tpu.trace_start"() <{level = 10 : i32, message = "gsd,gtd->gst"}> : () -> ()
    %cst_18 = arith.constant dense<0.000000e+00> : vector<4x8x8xf32>
    %65 = tpu.matmul %59, %63, %cst_18 {dimension_numbers = #tpu.dot_dimension_numbers<[2], [2], [1], [1], [0, 0, 0, 1, 1, 1], [0], [0]>} : vector<4x8x8xbf16>, vector<4x8x8xbf16>, vector<4x8x8xf32> -> vector<4x8x8xf32>
    "tpu.trace_stop"() : () -> ()
    %cst_19 = arith.constant dense<0xFF800000> : vector<4x8xf32>
    %66 = vector.multi_reduction <maximumf>, %65, %cst_19 [2] : vector<4x8x8xf32> to vector<4x8xf32>
    %67 = vector.shape_cast %66 : vector<4x8xf32> to vector<4x8x1xf32>
    %68 = arith.maximumf %60, %67 : vector<4x8x1xf32>
    %69 = arith.subf %60, %68 : vector<4x8x1xf32>
    %70 = math.exp %69 : vector<4x8x1xf32>
    %71 = vector.broadcast %68 : vector<4x8x1xf32> to vector<4x8x8xf32>
    %72 = arith.subf %65, %71 : vector<4x8x8xf32>
    %73 = math.exp %72 : vector<4x8x8xf32>
    %74 = arith.mulf %70, %61 : vector<4x8x1xf32>
    %cst_20 = arith.constant dense<0.000000e+00> : vector<4x8xf32>
    %75 = vector.multi_reduction <add>, %73, %cst_20 [2] : vector<4x8x8xf32> to vector<4x8xf32>
    %76 = vector.shape_cast %75 : vector<4x8xf32> to vector<4x8x1xf32>
    %77 = arith.addf %74, %76 : vector<4x8x1xf32>
    %78 = vector.broadcast %70 : vector<4x8x1xf32> to vector<4x8x8xf32>
    %79 = arith.mulf %78, %62 : vector<4x8x8xf32>
    %80 = arith.truncf %73 : vector<4x8x8xf32> to vector<4x8x8xbf16>
    "tpu.trace_start"() <{level = 10 : i32, message = "gst,gtd->gsd"}> : () -> ()
    %cst_21 = arith.constant dense<0.000000e+00> : vector<4x8x8xf32>
    %81 = tpu.matmul %80, %64, %cst_21 {dimension_numbers = #tpu.dot_dimension_numbers<[2], [1], [1], [2], [0, 0, 0, 1, 1, 2], [0], [0]>} : vector<4x8x8xbf16>, vector<4x8x8xbf16>, vector<4x8x8xf32> -> vector<4x8x8xf32>
    "tpu.trace_stop"() : () -> ()
    %82 = arith.addf %79, %81 : vector<4x8x8xf32>
    %83 = tpu.reciprocal %77 {approx = true} : vector<4x8x1xf32> -> vector<4x8x1xf32>
    %84 = vector.broadcast %83 : vector<4x8x1xf32> to vector<4x8x8xf32>
    %85 = arith.mulf %82, %84 : vector<4x8x8xf32>
    %86 = vector.extract_strided_slice %85 {offsets = [0, 0, 0], sizes = [1, 8, 8], strides = [1, 1, 1]} : vector<4x8x8xf32> to vector<1x8x8xf32>
    %87 = vector.shape_cast %86 : vector<1x8x8xf32> to vector<8x8xf32>
    %88 = vector.extract_strided_slice %85 {offsets = [1, 0, 0], sizes = [1, 8, 8], strides = [1, 1, 1]} : vector<4x8x8xf32> to vector<1x8x8xf32>
    %89 = vector.shape_cast %88 : vector<1x8x8xf32> to vector<8x8xf32>
    %90 = vector.extract_strided_slice %85 {offsets = [2, 0, 0], sizes = [1, 8, 8], strides = [1, 1, 1]} : vector<4x8x8xf32> to vector<1x8x8xf32>
    %91 = vector.shape_cast %90 : vector<1x8x8xf32> to vector<8x8xf32>
    %92 = vector.extract_strided_slice %85 {offsets = [3, 0, 0], sizes = [1, 8, 8], strides = [1, 1, 1]} : vector<4x8x8xf32> to vector<1x8x8xf32>
    %93 = vector.shape_cast %92 : vector<1x8x8xf32> to vector<8x8xf32>
    %94 = tpu.concatenate %87, %89, %91, %93 in 1 : vector<8x8xf32>, vector<8x8xf32>, vector<8x8xf32>, vector<8x8xf32> -> vector<8x32xf32>
    %95 = arith.truncf %94 : vector<8x32xf32> to vector<8x32xbf16>
    %c0_22 = arith.constant 0 : index
    %c0_23 = arith.constant 0 : index
    %96 = vector.load %arg6[%c0_22, %c0_23] : memref<32x32xbf16, #tpu.memory_space<vmem>>, vector<32x32xbf16>
    %cst_24 = arith.constant dense<0.000000e+00> : vector<8x32xf32>
    %97 = tpu.matmul %95, %96, %cst_24 {dimension_numbers = #tpu.dot_dimension_numbers<[1], [0], [0], [1], [0, 0, 1, 1], [], []>} : vector<8x32xbf16>, vector<32x32xbf16>, vector<8x32xf32> -> vector<8x32xf32>
    %c0_25 = arith.constant 0 : index
    %c0_26 = arith.constant 0 : index
    %98 = vector.load %arg7[%c0_25, %c0_26] : memref<1x32xf32, #tpu.memory_space<vmem>>, vector<1x32xf32>
    %99 = vector.broadcast %98 : vector<1x32xf32> to vector<8x32xf32>
    %100 = arith.addf %97, %99 : vector<8x32xf32>
    %101 = arith.addf %1, %100 : vector<8x32xf32>
    %c0_27 = arith.constant 0 : index
    %c0_28 = arith.constant 0 : index
    %102 = vector.load %arg8[%c0_27, %c0_28] : memref<1x32xf32, #tpu.memory_space<vmem>>, vector<1x32xf32>
    %c0_29 = arith.constant 0 : index
    %c0_30 = arith.constant 0 : index
    %103 = vector.load %arg9[%c0_29, %c0_30] : memref<1x32xf32, #tpu.memory_space<vmem>>, vector<1x32xf32>
    %cst_31 = arith.constant dense<0.000000e+00> : vector<8xf32>
    %104 = vector.multi_reduction <add>, %101, %cst_31 [1] : vector<8x32xf32> to vector<8xf32>
    %105 = vector.shape_cast %104 : vector<8xf32> to vector<8x1xf32>
    %cst_32 = arith.constant 3.200000e+01 : f32
    %106 = vector.broadcast %cst_32 : f32 to vector<8x1xf32>
    %107 = arith.divf %105, %106 : vector<8x1xf32>
    %108 = vector.broadcast %107 : vector<8x1xf32> to vector<8x32xf32>
    %109 = arith.subf %101, %108 : vector<8x32xf32>
    %110 = arith.mulf %109, %109 : vector<8x32xf32>
    %cst_33 = arith.constant dense<0.000000e+00> : vector<8xf32>
    %111 = vector.multi_reduction <add>, %110, %cst_33 [1] : vector<8x32xf32> to vector<8xf32>
    %112 = vector.shape_cast %111 : vector<8xf32> to vector<8x1xf32>
    %cst_34 = arith.constant 3.200000e+01 : f32
    %113 = vector.broadcast %cst_34 : f32 to vector<8x1xf32>
    %114 = arith.divf %112, %113 : vector<8x1xf32>
    %115 = vector.broadcast %107 : vector<8x1xf32> to vector<8x32xf32>
    %116 = arith.subf %101, %115 : vector<8x32xf32>
    %cst_35 = arith.constant 9.99999974E-6 : f32
    %117 = vector.broadcast %cst_35 : f32 to vector<8x1xf32>
    %118 = arith.addf %114, %117 : vector<8x1xf32>
    %119 = math.rsqrt %118 : vector<8x1xf32>
    %120 = vector.broadcast %119 : vector<8x1xf32> to vector<8x32xf32>
    %121 = arith.mulf %116, %120 : vector<8x32xf32>
    %122 = vector.broadcast %102 : vector<1x32xf32> to vector<8x32xf32>
    %123 = arith.mulf %121, %122 : vector<8x32xf32>
    %124 = vector.broadcast %103 : vector<1x32xf32> to vector<8x32xf32>
    %125 = arith.addf %123, %124 : vector<8x32xf32>
    %126 = arith.truncf %125 : vector<8x32xf32> to vector<8x32xbf16>
    %c0_36 = arith.constant 0 : index
    %c0_37 = arith.constant 0 : index
    %127 = vector.load %arg10[%c0_36, %c0_37] : memref<32x64xbf16, #tpu.memory_space<vmem>>, vector<32x64xbf16>
    %cst_38 = arith.constant dense<0.000000e+00> : vector<8x64xf32>
    %128 = tpu.matmul %126, %127, %cst_38 {dimension_numbers = #tpu.dot_dimension_numbers<[1], [0], [0], [1], [0, 0, 1, 1], [], []>} : vector<8x32xbf16>, vector<32x64xbf16>, vector<8x64xf32> -> vector<8x64xf32>
    %c0_39 = arith.constant 0 : index
    %c0_40 = arith.constant 0 : index
    %129 = vector.load %arg11[%c0_39, %c0_40] : memref<1x64xf32, #tpu.memory_space<vmem>>, vector<1x64xf32>
    %130 = vector.broadcast %129 : vector<1x64xf32> to vector<8x64xf32>
    %131 = arith.addf %128, %130 : vector<8x64xf32>
    %cst_41 = arith.constant 5.000000e-01 : f32
    %132 = vector.broadcast %cst_41 : f32 to vector<8x64xf32>
    %133 = arith.mulf %132, %131 : vector<8x64xf32>
    %cst_42 = arith.constant 2.000000e+00 : f32
    %134 = math.sqrt %cst_42 : f32
    %cst_43 = arith.constant 1.000000e+00 : f32
    %135 = arith.divf %cst_43, %134 : f32
    %136 = vector.broadcast %135 : f32 to vector<8x64xf32>
    %137 = arith.mulf %131, %136 : vector<8x64xf32>
    %138 = math.absf %137 : vector<8x64xf32>
    %cst_44 = arith.constant 0.327591091 : f32
    %139 = vector.broadcast %cst_44 : f32 to vector<8x64xf32>
    %140 = arith.mulf %139, %138 : vector<8x64xf32>
    %cst_45 = arith.constant 1.000000e+00 : f32
    %141 = vector.broadcast %cst_45 : f32 to vector<8x64xf32>
    %142 = arith.addf %141, %140 : vector<8x64xf32>
    %cst_46 = arith.constant 1.000000e+00 : f32
    %143 = vector.broadcast %cst_46 : f32 to vector<8x64xf32>
    %144 = arith.divf %143, %142 : vector<8x64xf32>
    %cst_47 = arith.constant 1.06140542 : f32
    %145 = vector.broadcast %cst_47 : f32 to vector<8x64xf32>
    %146 = arith.mulf %145, %144 : vector<8x64xf32>
    %cst_48 = arith.constant -1.45315206 : f32
    %147 = vector.broadcast %cst_48 : f32 to vector<8x64xf32>
    %148 = arith.addf %146, %147 : vector<8x64xf32>
    %149 = arith.mulf %148, %144 : vector<8x64xf32>
    %cst_49 = arith.constant 1.42141378 : f32
    %150 = vector.broadcast %cst_49 : f32 to vector<8x64xf32>
    %151 = arith.addf %149, %150 : vector<8x64xf32>
    %152 = arith.mulf %151, %144 : vector<8x64xf32>
    %cst_50 = arith.constant -0.284496725 : f32
    %153 = vector.broadcast %cst_50 : f32 to vector<8x64xf32>
    %154 = arith.addf %152, %153 : vector<8x64xf32>
    %155 = arith.mulf %154, %144 : vector<8x64xf32>
    %cst_51 = arith.constant 0.254829586 : f32
    %156 = vector.broadcast %cst_51 : f32 to vector<8x64xf32>
    %157 = arith.addf %155, %156 : vector<8x64xf32>
    %158 = arith.mulf %157, %144 : vector<8x64xf32>
    %cst_52 = arith.constant 0.000000e+00 : f32
    %159 = vector.broadcast %cst_52 : f32 to vector<8x64xf32>
    %160 = arith.subf %159, %138 : vector<8x64xf32>
    %161 = arith.mulf %160, %138 : vector<8x64xf32>
    %162 = math.exp %161 : vector<8x64xf32>
    %163 = arith.mulf %158, %162 : vector<8x64xf32>
    %cst_53 = arith.constant 1.000000e+00 : f32
    %164 = vector.broadcast %cst_53 : f32 to vector<8x64xf32>
    %165 = arith.subf %164, %163 : vector<8x64xf32>
    %cst_54 = arith.constant 0.000000e+00 : f32
    %166 = vector.broadcast %cst_54 : f32 to vector<8x64xf32>
    %167 = arith.cmpf oge, %137, %166 : vector<8x64xf32>
    %cst_55 = arith.constant 0.000000e+00 : f32
    %168 = vector.broadcast %cst_55 : f32 to vector<8x64xf32>
    %169 = arith.subf %168, %165 : vector<8x64xf32>
    %170 = arith.select %167, %165, %169 : vector<8x64xi1>, vector<8x64xf32>
    %cst_56 = arith.constant 1.000000e+00 : f32
    %171 = vector.broadcast %cst_56 : f32 to vector<8x64xf32>
    %172 = arith.addf %171, %170 : vector<8x64xf32>
    %173 = arith.mulf %133, %172 : vector<8x64xf32>
    %174 = arith.truncf %173 : vector<8x64xf32> to vector<8x64xbf16>
    %c0_57 = arith.constant 0 : index
    %c0_58 = arith.constant 0 : index
    %175 = vector.load %arg12[%c0_57, %c0_58] : memref<64x32xbf16, #tpu.memory_space<vmem>>, vector<64x32xbf16>
    %cst_59 = arith.constant dense<0.000000e+00> : vector<8x32xf32>
    %176 = tpu.matmul %174, %175, %cst_59 {dimension_numbers = #tpu.dot_dimension_numbers<[1], [0], [0], [1], [0, 0, 1, 1], [], []>} : vector<8x64xbf16>, vector<64x32xbf16>, vector<8x32xf32> -> vector<8x32xf32>
    %c0_60 = arith.constant 0 : index
    %c0_61 = arith.constant 0 : index
    %177 = vector.load %arg13[%c0_60, %c0_61] : memref<1x32xf32, #tpu.memory_space<vmem>>, vector<1x32xf32>
    %178 = vector.broadcast %177 : vector<1x32xf32> to vector<8x32xf32>
    %179 = arith.addf %176, %178 : vector<8x32xf32>
    %180 = arith.addf %101, %179 : vector<8x32xf32>
    %181 = vector.shape_cast %180 : vector<8x32xf32> to vector<1x8x32xf32>
    %c0_62 = arith.constant 0 : index
    %c0_63 = arith.constant 0 : index
    %c0_64 = arith.constant 0 : index
    %182 = vector.load %arg14[%c0_62, %c0_63, %c0_64] : memref<1x8x32xf32, #tpu.memory_space<vmem>>, vector<1x8x32xf32>
    tpu.vector_store %arg14[%c0_62, %c0_63, %c0_64], %181 {strides = array<i32>} : memref<1x8x32xf32, #tpu.memory_space<vmem>>, vector<1x8x32xf32>,
    return
  }
  func.func @transform_0(%arg0: i32) -> (i32, i32, i32) {
    %c0_i32 = arith.constant 0 : i32
    %c0_i32_0 = arith.constant 0 : i32
    %c0_i32_1 = arith.constant 0 : i32
    return %arg0, %c0_i32, %c0_i32_0 : i32, i32, i32
  }
  func.func @transform_1(%arg0: i32) -> (i32, i32) {
    %c0_i32 = arith.constant 0 : i32
    %c0_i32_0 = arith.constant 0 : i32
    %c0_i32_1 = arith.constant 0 : i32
    return %c0_i32, %c0_i32_0 : i32, i32
  }
  func.func @transform_2(%arg0: i32) -> (i32, i32) {
    %c0_i32 = arith.constant 0 : i32
    %c0_i32_0 = arith.constant 0 : i32
    %c0_i32_1 = arith.constant 0 : i32
    return %c0_i32, %c0_i32_0 : i32, i32
  }
  func.func @transform_3(%arg0: i32) -> (i32, i32) {
    %c0_i32 = arith.constant 0 : i32
    %c0_i32_0 = arith.constant 0 : i32
    %c0_i32_1 = arith.constant 0 : i32
    return %c0_i32, %c0_i32_0 : i32, i32
  }
  func.func @transform_4(%arg0: i32) -> (i32, i32) {
    %c0_i32 = arith.constant 0 : i32
    %c0_i32_0 = arith.constant 0 : i32
    %c0_i32_1 = arith.constant 0 : i32
    return %c0_i32, %c0_i32_0 : i32, i32
  }
  func.func @transform_5(%arg0: i32) -> (i32, i32) {
    %c0_i32 = arith.constant 0 : i32
    %c0_i32_0 = arith.constant 0 : i32
    %c0_i32_1 = arith.constant 0 : i32
    return %c0_i32, %c0_i32_0 : i32, i32
  }
  func.func @transform_6(%arg0: i32) -> (i32, i32) {
    %c0_i32 = arith.constant 0 : i32
    %c0_i32_0 = arith.constant 0 : i32
    %c0_i32_1 = arith.constant 0 : i32
    return %c0_i32, %c0_i32_0 : i32, i32
  }
  func.func @transform_7(%arg0: i32) -> (i32, i32) {
    %c0_i32 = arith.constant 0 : i32
    %c0_i32_0 = arith.constant 0 : i32
    %c0_i32_1 = arith.constant 0 : i32
    return %c0_i32, %c0_i32_0 : i32, i32
  }
  func.func @transform_8(%arg0: i32) -> (i32, i32) {
    %c0_i32 = arith.constant 0 : i32
    %c0_i32_0 = arith.constant 0 : i32
    %c0_i32_1 = arith.constant 0 : i32
    return %c0_i32, %c0_i32_0 : i32, i32
  }
  func.func @transform_9(%arg0: i32) -> (i32, i32) {
    %c0_i32 = arith.constant 0 : i32
    %c0_i32_0 = arith.constant 0 : i32
    %c0_i32_1 = arith.constant 0 : i32
    return %c0_i32, %c0_i32_0 : i32, i32
  }
  func.func @transform_10(%arg0: i32) -> (i32, i32) {
    %c0_i32 = arith.constant 0 : i32
    %c0_i32_0 = arith.constant 0 : i32
    %c0_i32_1 = arith.constant 0 : i32
    return %c0_i32, %c0_i32_0 : i32, i32
  }
  func.func @transform_11(%arg0: i32) -> (i32, i32) {
    %c0_i32 = arith.constant 0 : i32
    %c0_i32_0 = arith.constant 0 : i32
    %c0_i32_1 = arith.constant 0 : i32
    return %c0_i32, %c0_i32_0 : i32, i32
  }
  func.func @transform_12(%arg0: i32) -> (i32, i32) {
    %c0_i32 = arith.constant 0 : i32
    %c0_i32_0 = arith.constant 0 : i32
    %c0_i32_1 = arith.constant 0 : i32
    return %c0_i32, %c0_i32_0 : i32, i32
  }
  func.func @transform_13(%arg0: i32) -> (i32, i32, i32) {
    %c0_i32 = arith.constant 0 : i32
    %c0_i32_0 = arith.constant 0 : i32
    %c0_i32_1 = arith.constant 0 : i32
    return %arg0, %c0_i32, %c0_i32_0 : i32, i32, i32
  }
}

</mosaic_0001>

<llo_original>
// kernel: tpu_custom_call.1
$region0: #{tpu_custom_call.1}
  #allocation0 [shape = 'u32[]', space=smem, size = 0x4, offset = 0x4, fixed_abs, tag = 'smem constant byte address 0x4 - core index']
  #allocation1 [shape = 'u32[144,128]{1,0:T(1,128)}', space=vmem, size = 0x12000, scoped, tag = 'internal scratch']
  %s0 = inlined_call_operand.hbm [shape: f32[2,8,32], index: 0, kind: input, shape index: {}]
  %s1 = inlined_call_operand.hbm [shape: f32[1,32], index: 1, kind: input, shape index: {}]
  %s2 = inlined_call_operand.hbm [shape: f32[1,32], index: 2, kind: input, shape index: {}]
  %s3 = inlined_call_operand.hbm [shape: bf16[32,96], index: 3, kind: input, shape index: {}]
  %s4 = inlined_call_operand.hbm [shape: f32[1,96], index: 4, kind: input, shape index: {}]
  %s5 = inlined_call_operand.hbm [shape: bf16[32,32], index: 5, kind: input, shape index: {}]
  %s6 = inlined_call_operand.hbm [shape: f32[1,32], index: 6, kind: input, shape index: {}]
  %s7 = inlined_call_operand.hbm [shape: f32[1,32], index: 7, kind: input, shape index: {}]
  %s8 = inlined_call_operand.hbm [shape: f32[1,32], index: 8, kind: input, shape index: {}]
  %s9 = inlined_call_operand.hbm [shape: bf16[32,64], index: 9, kind: input, shape index: {}]
  %s10 = inlined_call_operand.hbm [shape: f32[1,64], index: 10, kind: input, shape index: {}]
  %s11 = inlined_call_operand.hbm [shape: bf16[64,32], index: 11, kind: input, shape index: {}]
  %s12 = inlined_call_operand.hbm [shape: f32[1,32], index: 12, kind: input, shape index: {}]
  %s13 = inlined_call_operand.hbm [shape: f32[2,8,32], index: 13, kind: output, shape index: {}]
  %s14 = sld [smem:[#allocation0]]
  $region137: #{tpu_custom_call.1} parent=0
    _
  %s16 = ssub.s32 1, %s14
  %s17 = scalar_select 0, %s16, %s14
  $region1: #{tpu_custom_call.1} parent=0
    #allocation2 [shape = 'u8[8192]{0}', space=vmem, size = 0x2000, scoped, tag = 'input window, operand 0']
    #allocation3 [shape = 's32[2]{0}', space=sflag, size = 0x8, scoped, tag = 'scoped memory for tpu_custom_call.1']
    #allocation4 [shape = 's32[2]{0}', space=sflag, size = 0x8, scoped, tag = 'scoped memory for tpu_custom_call.1']
    #allocation5 [shape = 'u8[512]{0}', space=vmem, size = 0x400, scoped, tag = 'input window, operand 1, single buffered']
    #allocation6 [shape = 's32[1]{0}', space=sflag, size = 0x4, scoped, tag = 'scoped memory for tpu_custom_call.1']
    #allocation7 [shape = 'u8[512]{0}', space=vmem, size = 0x400, scoped, tag = 'input window, operand 2, single buffered']
    #allocation8 [shape = 'u8[8192]{0}', space=vmem, size = 0x2000, scoped, tag = 'input window, operand 3, single buffered']
    #allocation9 [shape = 's32[1]{0}', space=sflag, size = 0x4, scoped, tag = 'scoped memory for tpu_custom_call.1']
    #allocation10 [shape = 'u8[512]{0}', space=vmem, size = 0x400, scoped, tag = 'input window, operand 4, single buffered']
    #allocation11 [shape = 'u8[8192]{0}', space=vmem, size = 0x2000, scoped, tag = 'input window, operand 5, single buffered']
    #allocation12 [shape = 's32[1]{0}', space=sflag, size = 0x4, scoped, tag = 'scoped memory for tpu_custom_call.1']
    #allocation13 [shape = 'u8[512]{0}', space=vmem, size = 0x400, scoped, tag = 'input window, operand 6, single buffered']
    #allocation14 [shape = 'u8[512]{0}', space=vmem, size = 0x400, scoped, tag = 'input window, operand 7, single buffered']
    #allocation15 [shape = 's32[1]{0}', space=sflag, size = 0x4, scoped, tag = 'scoped memory for tpu_custom_call.1']
    #allocation16 [shape = 'u8[512]{0}', space=vmem, size = 0x400, scoped, tag = 'input window, operand 8, single buffered']
    #allocation17 [shape = 'u8[8192]{0}', space=vmem, size = 0x2000, scoped, tag = 'input window, operand 9, single buffered']
    #allocation18 [shape = 's32[1]{0}', space=sflag, size = 0x4, scoped, tag = 'scoped memory for tpu_custom_call.1']
    #allocation19 [shape = 'u8[512]{0}', space=vmem, size = 0x400, scoped, tag = 'input window, operand 10, single buffered']
    #allocation20 [shape = 'u8[16384]{0}', space=vmem, size = 0x4000, scoped, tag = 'input window, operand 11, single buffered']
    #allocation21 [shape = 's32[1]{0}', space=sflag, size = 0x4, scoped, tag = 'scoped memory for tpu_custom_call.1']
    #allocation22 [shape = 'u8[512]{0}', space=vmem, size = 0x400, scoped, tag = 'input window, operand 12, single buffered']
    #allocation23 [shape = 'u8[8192]{0}', space=vmem, size = 0x2000, scoped, tag = 'output window, operand 0']
    %18 = vsyncpa [#allocation3], 0
    %s19 = scalar_lea.sflag [#allocation3], 1
    %20 = vsyncpa %s19, 0
    %21 = vsyncpa [#allocation6], 0
    %22 = vsyncpa [#allocation9], 0
    %23 = vsyncpa [#allocation12], 0
    %24 = vsyncpa [#allocation15], 0
    %25 = vsyncpa [#allocation18], 0
    %26 = vsyncpa [#allocation21], 0
    %27 = vsyncpa [#allocation4], 0
    %s28 = scalar_lea.sflag [#allocation4], 1
    %29 = vsyncpa %s28, 0
    loop: start=0, step=1, limit=4
    $region2: #{tpu_custom_call.1} parent=1 // loop_pre_header
      _
    $region3: #{tpu_custom_call.1} parent=1 // loop_header
      %s31 = sphi 0, %s35
      %p32 = scmp.ge.s32.totalorder %s31, 4
      %s41 = sphi 0, %s43
      %s44 = sphi 0, %s41
      %s45 = sphi 0, %s44
      %s61 = sphi 0, %s45
      %s65 = sphi 0, %s65
      %s67 = sphi 0, %s65
      %s68 = sphi 0, %s67
      %s82 = sphi 0, %s68
      %s86 = sphi 0, %s86
      %s88 = sphi 0, %s86
      %s89 = sphi 0, %s88
      %s103 = sphi 0, %s89
      %s107 = sphi 0, %s107
      %s109 = sphi 0, %s107
      %s110 = sphi 0, %s109
      %s124 = sphi 0, %s110
      %s128 = sphi 0, %s128
      %s130 = sphi 0, %s128
      %s131 = sphi 0, %s130
      %s145 = sphi 0, %s131
      %s149 = sphi 0, %s149
      %s151 = sphi 0, %s149
      %s152 = sphi 0, %s151
      %s166 = sphi 0, %s152
      %s170 = sphi 0, %s170
      %s172 = sphi 0, %s170
      %s173 = sphi 0, %s172
      %s187 = sphi 0, %s173
      %s191 = sphi 0, %s191
      %s193 = sphi 0, %s191
      %s194 = sphi 0, %s193
      %s208 = sphi 0, %s194
      %s212 = sphi 0, %s212
      %s214 = sphi 0, %s212
      %s215 = sphi 0, %s214
      %s229 = sphi 0, %s215
      %s233 = sphi 0, %s233
      %s235 = sphi 0, %s233
      %s236 = sphi 0, %s235
      %s250 = sphi 0, %s236
      %s254 = sphi 0, %s254
      %s256 = sphi 0, %s254
      %s257 = sphi 0, %s256
      %s271 = sphi 0, %s257
      %s275 = sphi 0, %s275
      %s277 = sphi 0, %s275
      %s278 = sphi 0, %s277
      %s292 = sphi 0, %s278
      %s296 = sphi 0, %s296
      %s298 = sphi 0, %s296
      %s299 = sphi 0, %s298
      %s313 = sphi 0, %s299
      %s319 = sphi 0, %s321
      %s322 = sphi 0, %s319
      %s323 = sphi 0, %s322
      %s339 = sphi 0, %s323
    $region4: #{tpu_custom_call.1} parent=1 // loop_header_branch
      %34 = sbr.rel (%p32) target = $region8
    $region5: #{tpu_custom_call.1} parent=1 // loop_body
      %s36 = ssub.s32 %s31, 1
      %s37 = ssub.s32 %s31, 2
      %s38 = sadd.s32 %s31, 1
      %s39 = ssub.s32 %s31, %s38
      %p40 = scmp.eq.s32.totalorder %s39, 0
      %s42 = sadd.s32 %s41, 1
      %s43 = scalar_select %p40, %s41, %s42
      %p46 = pneg %p40
      %p47 = scmp.eq.s32.totalorder %s31, 1
      %p48 = por %p46, %p47
      %p49 = scmp.ne.s32.totalorder %s41, %s44
      %p50 = scmp.eq.s32.totalorder %s31, 0
      %p51 = por %p49, %p50
      %p52 = scmp.ne.s32.totalorder %s41, %s44
      %p53 = scmp.eq.s32.totalorder %s36, 1
      %p54 = por %p52, %p53
      %p55 = scmp.ne.s32.totalorder %s44, %s45
      %p56 = scmp.eq.s32.totalorder %s36, 0
      %p57 = por %p55, %p56
      %p58 = scmp.ne.s32.totalorder %s44, %s45
      %p59 = scmp.eq.s32.totalorder %s37, 1
      %p60 = por %p58, %p59
      %p62 = scmp.ne.s32.totalorder %s45, %s61
      %p63 = scmp.eq.s32.totalorder %s37, 0
      %p64 = por %p62, %p63
      %s66 = sadd.s32 %s65, 1
      %p69 = scmp.eq.s32.totalorder %s31, 1
      %p70 = scmp.ne.s32.totalorder %s65, %s67
      %p71 = scmp.eq.s32.totalorder %s31, 0
      %p72 = por %p70, %p71
      %p73 = scmp.ne.s32.totalorder %s65, %s67
      %p74 = scmp.eq.s32.totalorder %s36, 1
      %p75 = por %p73, %p74
      %p76 = scmp.ne.s32.totalorder %s67, %s68
      %p77 = scmp.eq.s32.totalorder %s36, 0
      %p78 = por %p76, %p77
      %p79 = scmp.ne.s32.totalorder %s67, %s68
      %p80 = scmp.eq.s32.totalorder %s37, 1
      %p81 = por %p79, %p80
      %p83 = scmp.ne.s32.totalorder %s68, %s82
      %p84 = scmp.eq.s32.totalorder %s37, 0
      %p85 = por %p83, %p84
      %s87 = sadd.s32 %s86, 1
      %p90 = scmp.eq.s32.totalorder %s31, 1
      %p91 = scmp.ne.s32.totalorder %s86, %s88
      %p92 = scmp.eq.s32.totalorder %s31, 0
      %p93 = por %p91, %p92
      %p94 = scmp.ne.s32.totalorder %s86, %s88
      %p95 = scmp.eq.s32.totalorder %s36, 1
      %p96 = por %p94, %p95
      %p97 = scmp.ne.s32.totalorder %s88, %s89
      %p98 = scmp.eq.s32.totalorder %s36, 0
      %p99 = por %p97, %p98
      %p100 = scmp.ne.s32.totalorder %s88, %s89
      %p101 = scmp.eq.s32.totalorder %s37, 1
      %p102 = por %p100, %p101
      %p104 = scmp.ne.s32.totalorder %s89, %s103
      %p105 = scmp.eq.s32.totalorder %s37, 0
      %p106 = por %p104, %p105
      %s108 = sadd.s32 %s107, 1
      %p111 = scmp.eq.s32.totalorder %s31, 1
      %p112 = scmp.ne.s32.totalorder %s107, %s109
      %p113 = scmp.eq.s32.totalorder %s31, 0
      %p114 = por %p112, %p113
      %p115 = scmp.ne.s32.totalorder %s107, %s109
      %p116 = scmp.eq.s32.totalorder %s36, 1
      %p117 = por %p115, %p116
      %p118 = scmp.ne.s32.totalorder %s109, %s110
      %p119 = scmp.eq.s32.totalorder %s36, 0
      %p120 = por %p118, %p119
      %p121 = scmp.ne.s32.totalorder %s109, %s110
      %p122 = scmp.eq.s32.totalorder %s37, 1
      %p123 = por %p121, %p122
      %p125 = scmp.ne.s32.totalorder %s110, %s124
      %p126 = scmp.eq.s32.totalorder %s37, 0
      %p127 = por %p125, %p126
      %s129 = sadd.s32 %s128, 1
      %p132 = scmp.eq.s32.totalorder %s31, 1
      %p133 = scmp.ne.s32.totalorder %s128, %s130
      %p134 = scmp.eq.s32.totalorder %s31, 0
      %p135 = por %p133, %p134
      %p136 = scmp.ne.s32.totalorder %s128, %s130
      %p137 = scmp.eq.s32.totalorder %s36, 1
      %p138 = por %p136, %p137
      %p139 = scmp.ne.s32.totalorder %s130, %s131
      %p140 = scmp.eq.s32.totalorder %s36, 0
      %p141 = por %p139, %p140
      %p142 = scmp.ne.s32.totalorder %s130, %s131
      %p143 = scmp.eq.s32.totalorder %s37, 1
      %p144 = por %p142, %p143
      %p146 = scmp.ne.s32.totalorder %s131, %s145
      %p147 = scmp.eq.s32.totalorder %s37, 0
      %p148 = por %p146, %p147
      %s150 = sadd.s32 %s149, 1
      %p153 = scmp.eq.s32.totalorder %s31, 1
      %p154 = scmp.ne.s32.totalorder %s149, %s151
      %p155 = scmp.eq.s32.totalorder %s31, 0
      %p156 = por %p154, %p155
      %p157 = scmp.ne.s32.totalorder %s149, %s151
      %p158 = scmp.eq.s32.totalorder %s36, 1
      %p159 = por %p157, %p158
      %p160 = scmp.ne.s32.totalorder %s151, %s152
      %p161 = scmp.eq.s32.totalorder %s36, 0
      %p162 = por %p160, %p161
      %p163 = scmp.ne.s32.totalorder %s151, %s152
      %p164 = scmp.eq.s32.totalorder %s37, 1
      %p165 = por %p163, %p164
      %p167 = scmp.ne.s32.totalorder %s152, %s166
      %p168 = scmp.eq.s32.totalorder %s37, 0
      %p169 = por %p167, %p168
      %s171 = sadd.s32 %s170, 1
      %p174 = scmp.eq.s32.totalorder %s31, 1
      %p175 = scmp.ne.s32.totalorder %s170, %s172
      %p176 = scmp.eq.s32.totalorder %s31, 0
      %p177 = por %p175, %p176
      %p178 = scmp.ne.s32.totalorder %s170, %s172
      %p179 = scmp.eq.s32.totalorder %s36, 1
      %p180 = por %p178, %p179
      %p181 = scmp.ne.s32.totalorder %s172, %s173
      %p182 = scmp.eq.s32.totalorder %s36, 0
      %p183 = por %p181, %p182
      %p184 = scmp.ne.s32.totalorder %s172, %s173
      %p185 = scmp.eq.s32.totalorder %s37, 1
      %p186 = por %p184, %p185
      %p188 = scmp.ne.s32.totalorder %s173, %s187
      %p189 = scmp.eq.s32.totalorder %s37, 0
      %p190 = por %p188, %p189
      %s192 = sadd.s32 %s191, 1
      %p195 = scmp.eq.s32.totalorder %s31, 1
      %p196 = scmp.ne.s32.totalorder %s191, %s193
      %p197 = scmp.eq.s32.totalorder %s31, 0
      %p198 = por %p196, %p197
      %p199 = scmp.ne.s32.totalorder %s191, %s193
      %p200 = scmp.eq.s32.totalorder %s36, 1
      %p201 = por %p199, %p200
      %p202 = scmp.ne.s32.totalorder %s193, %s194
      %p203 = scmp.eq.s32.totalorder %s36, 0
      %p204 = por %p202, %p203
      %p205 = scmp.ne.s32.totalorder %s193, %s194
      %p206 = scmp.eq.s32.totalorder %s37, 1
      %p207 = por %p205, %p206
      %p209 = scmp.ne.s32.totalorder %s194, %s208
      %p210 = scmp.eq.s32.totalorder %s37, 0
      %p211 = por %p209, %p210
      %s213 = sadd.s32 %s212, 1
      %p216 = scmp.eq.s32.totalorder %s31, 1
      %p217 = scmp.ne.s32.totalorder %s212, %s214
      %p218 = scmp.eq.s32.totalorder %s31, 0
      %p219 = por %p217, %p218
      %p220 = scmp.ne.s32.totalorder %s212, %s214
      %p221 = scmp.eq.s32.totalorder %s36, 1
      %p222 = por %p220, %p221
      %p223 = scmp.ne.s32.totalorder %s214, %s215
      %p224 = scmp.eq.s32.totalorder %s36, 0
      %p225 = por %p223, %p224
      %p226 = scmp.ne.s32.totalorder %s214, %s215
      %p227 = scmp.eq.s32.totalorder %s37, 1
      %p228 = por %p226, %p227
      %p230 = scmp.ne.s32.totalorder %s215, %s229
      %p231 = scmp.eq.s32.totalorder %s37, 0
      %p232 = por %p230, %p231
      %s234 = sadd.s32 %s233, 1
      %p237 = scmp.eq.s32.totalorder %s31, 1
      %p238 = scmp.ne.s32.totalorder %s233, %s235
      %p239 = scmp.eq.s32.totalorder %s31, 0
      %p240 = por %p238, %p239
      %p241 = scmp.ne.s32.totalorder %s233, %s235
      %p242 = scmp.eq.s32.totalorder %s36, 1
      %p243 = por %p241, %p242
      %p244 = scmp.ne.s32.totalorder %s235, %s236
      %p245 = scmp.eq.s32.totalorder %s36, 0
      %p246 = por %p244, %p245
      %p247 = scmp.ne.s32.totalorder %s235, %s236
      %p248 = scmp.eq.s32.totalorder %s37, 1
      %p249 = por %p247, %p248
      %p251 = scmp.ne.s32.totalorder %s236, %s250
      %p252 = scmp.eq.s32.totalorder %s37, 0
      %p253 = por %p251, %p252
      %s255 = sadd.s32 %s254, 1
      %p258 = scmp.eq.s32.totalorder %s31, 1
      %p259 = scmp.ne.s32.totalorder %s254, %s256
      %p260 = scmp.eq.s32.totalorder %s31, 0
      %p261 = por %p259, %p260
      %p262 = scmp.ne.s32.totalorder %s254, %s256
      %p263 = scmp.eq.s32.totalorder %s36, 1
      %p264 = por %p262, %p263
      %p265 = scmp.ne.s32.totalorder %s256, %s257
      %p266 = scmp.eq.s32.totalorder %s36, 0
      %p267 = por %p265, %p266
      %p268 = scmp.ne.s32.totalorder %s256, %s257
      %p269 = scmp.eq.s32.totalorder %s37, 1
      %p270 = por %p268, %p269
      %p272 = scmp.ne.s32.totalorder %s257, %s271
      %p273 = scmp.eq.s32.totalorder %s37, 0
      %p274 = por %p272, %p273
      %s276 = sadd.s32 %s275, 1
      %p279 = scmp.eq.s32.totalorder %s31, 1
      %p280 = scmp.ne.s32.totalorder %s275, %s277
      %p281 = scmp.eq.s32.totalorder %s31, 0
      %p282 = por %p280, %p281
      %p283 = scmp.ne.s32.totalorder %s275, %s277
      %p284 = scmp.eq.s32.totalorder %s36, 1
      %p285 = por %p283, %p284
      %p286 = scmp.ne.s32.totalorder %s277, %s278
      %p287 = scmp.eq.s32.totalorder %s36, 0
      %p288 = por %p286, %p287
      %p289 = scmp.ne.s32.totalorder %s277, %s278
      %p290 = scmp.eq.s32.totalorder %s37, 1
      %p291 = por %p289, %p290
      %p293 = scmp.ne.s32.totalorder %s278, %s292
      %p294 = scmp.eq.s32.totalorder %s37, 0
      %p295 = por %p293, %p294
      %s297 = sadd.s32 %s296, 1
      %p300 = scmp.eq.s32.totalorder %s31, 1
      %p301 = scmp.ne.s32.totalorder %s296, %s298
      %p302 = scmp.eq.s32.totalorder %s31, 0
      %p303 = por %p301, %p302
      %p304 = scmp.ne.s32.totalorder %s296, %s298
      %p305 = scmp.eq.s32.totalorder %s36, 1
      %p306 = por %p304, %p305
      %p307 = scmp.ne.s32.totalorder %s298, %s299
      %p308 = scmp.eq.s32.totalorder %s36, 0
      %p309 = por %p307, %p308
      %p310 = scmp.ne.s32.totalorder %s298, %s299
      %p311 = scmp.eq.s32.totalorder %s37, 1
      %p312 = por %p310, %p311
      %p314 = scmp.ne.s32.totalorder %s299, %s313
      %p315 = scmp.eq.s32.totalorder %s37, 0
      %p316 = por %p314, %p315
      %s317 = ssub.s32 %s31, %s38
      %p318 = scmp.eq.s32.totalorder %s317, 0
      %s320 = sadd.s32 %s319, 1
      %s321 = scalar_select %p318, %s319, %s320
      %p324 = pneg %p318
      %p325 = scmp.eq.s32.totalorder %s31, 1
      %p326 = por %p324, %p325
      %p327 = scmp.ne.s32.totalorder %s319, %s322
      %p328 = scmp.eq.s32.totalorder %s31, 0
      %p329 = por %p327, %p328
      %p330 = scmp.ne.s32.totalorder %s319, %s322
      %p331 = scmp.eq.s32.totalorder %s36, 1
      %p332 = por %p330, %p331
      %p333 = scmp.ne.s32.totalorder %s322, %s323
      %p334 = scmp.eq.s32.totalorder %s36, 0
      %p335 = por %p333, %p334
      %p336 = scmp.ne.s32.totalorder %s322, %s323
      %p337 = scmp.eq.s32.totalorder %s37, 1
      %p338 = por %p336, %p337
      %p340 = scmp.ne.s32.totalorder %s323, %s339
      %p341 = scmp.eq.s32.totalorder %s37, 0
      %p342 = por %p340, %p341
      %p343 = scmp.le.s32.totalorder 1, %s31
      %p344 = scmp.lt.s32.totalorder %s31, 3
      %p345 = pnand %p343, %p344
      %p346 = pneg %p345
      // Predicated region
      $region9: #{tpu_custom_call.1} parent=5 // pred_check
        _
      $region10: #{tpu_custom_call.1} parent=5 // pred_check_branch
        %348 = sbr.rel (%p345) target = $region12
      $region11: #{tpu_custom_call.1} parent=5 // pred_region
        %s349 = ssub.s32 %s31, 1
        // Predicated region
        $region13: #{tpu_custom_call.1} parent=11 // pred_check
          %p350 = pneg %p78
        $region14: #{tpu_custom_call.1} parent=11 // pred_check_branch
          %352 = sbr.rel (%p350) target = $region16
        $region15: #{tpu_custom_call.1} parent=11 // pred_region
          %s354 = ssub.s32 16, 16
          %355 = vsyncadd [#allocation6], %s354
          %s357 = sshll.u32 [#allocation5], 4
          %s358 = int_to_ptr.vmem [resolvable:$true] %s357
          %360 = dma.hbm_to_vmem [thread:$0]  %s1, 16, %s358, [#allocation6]
        $region16: #{tpu_custom_call.1} parent=11 // pred_fallthru
          _
        // Predicated region
        $region17: #{tpu_custom_call.1} parent=11 // pred_check
          %p361 = pneg %p99
        $region18: #{tpu_custom_call.1} parent=11 // pred_check_branch
          %363 = sbr.rel (%p361) target = $region20
        $region19: #{tpu_custom_call.1} parent=11 // pred_region
          %s365 = ssub.s32 16, 16
          %366 = vsyncadd [#allocation6], %s365
          %s368 = sshll.u32 [#allocation7], 4
          %s369 = int_to_ptr.vmem [resolvable:$true] %s368
          %371 = dma.hbm_to_vmem [thread:$0]  %s2, 16, %s369, [#allocation6]
        $region20: #{tpu_custom_call.1} parent=11 // pred_fallthru
          _
        // Predicated region
        $region21: #{tpu_custom_call.1} parent=11 // pred_check
          %p372 = pneg %p120
        $region22: #{tpu_custom_call.1} parent=11 // pred_check_branch
          %374 = sbr.rel (%p372) target = $region24
        $region23: #{tpu_custom_call.1} parent=11 // pred_region
          %s376 = ssub.s32 256, 256
          %377 = vsyncadd [#allocation9], %s376
          %s378 = sshll.u32 [#allocation8], 4
          %s379 = int_to_ptr.vmem [resolvable:$true] %s378
          %384 = dma.hbm_to_vmem [thread:$0]  %s3, 256, %s379, [#allocation9], 64, 64, 4
        $region24: #{tpu_custom_call.1} parent=11 // pred_fallthru
          _
        // Predicated region
        $region25: #{tpu_custom_call.1} parent=11 // pred_check
          %p385 = pneg %p141
        $region26: #{tpu_custom_call.1} parent=11 // pred_check_branch
          %387 = sbr.rel (%p385) target = $region28
        $region27: #{tpu_custom_call.1} parent=11 // pred_region
          %s389 = ssub.s32 16, 16
          %390 = vsyncadd [#allocation9], %s389
          %s392 = sshll.u32 [#allocation10], 4
          %s393 = int_to_ptr.vmem [resolvable:$true] %s392
          %395 = dma.hbm_to_vmem [thread:$0]  %s4, 16, %s393, [#allocation9]
        $region28: #{tpu_custom_call.1} parent=11 // pred_fallthru
          _
        // Predicated region
        $region29: #{tpu_custom_call.1} parent=11 // pred_check
          %p396 = pneg %p162
        $region30: #{tpu_custom_call.1} parent=11 // pred_check_branch
          %398 = sbr.rel (%p396) target = $region32
        $region31: #{tpu_custom_call.1} parent=11 // pred_region
          %s400 = ssub.s32 256, 256
          %401 = vsyncadd [#allocation12], %s400
          %s402 = sshll.u32 [#allocation11], 4
          %s403 = int_to_ptr.vmem [resolvable:$true] %s402
          %408 = dma.hbm_to_vmem [thread:$0]  %s5, 256, %s403, [#allocation12], 64, 64, 4
        $region32: #{tpu_custom_call.1} parent=11 // pred_fallthru
          _
        // Predicated region
        $region33: #{tpu_custom_call.1} parent=11 // pred_check
          %p409 = pneg %p183
        $region34: #{tpu_custom_call.1} parent=11 // pred_check_branch
          %411 = sbr.rel (%p409) target = $region36
        $region35: #{tpu_custom_call.1} parent=11 // pred_region
          %s413 = ssub.s32 16, 16
          %414 = vsyncadd [#allocation12], %s413
          %s416 = sshll.u32 [#allocation13], 4
          %s417 = int_to_ptr.vmem [resolvable:$true] %s416
          %419 = dma.hbm_to_vmem [thread:$0]  %s6, 16, %s417, [#allocation12]
        $region36: #{tpu_custom_call.1} parent=11 // pred_fallthru
          _
        // Predicated region
        $region37: #{tpu_custom_call.1} parent=11 // pred_check
          %p420 = pneg %p204
        $region38: #{tpu_custom_call.1} parent=11 // pred_check_branch
          %422 = sbr.rel (%p420) target = $region40
        $region39: #{tpu_custom_call.1} parent=11 // pred_region
          %s424 = ssub.s32 16, 16
          %425 = vsyncadd [#allocation15], %s424
          %s427 = sshll.u32 [#allocation14], 4
          %s428 = int_to_ptr.vmem [resolvable:$true] %s427
          %430 = dma.hbm_to_vmem [thread:$0]  %s7, 16, %s428, [#allocation15]
        $region40: #{tpu_custom_call.1} parent=11 // pred_fallthru
          _
        // Predicated region
        $region41: #{tpu_custom_call.1} parent=11 // pred_check
          %p431 = pneg %p225
        $region42: #{tpu_custom_call.1} parent=11 // pred_check_branch
          %433 = sbr.rel (%p431) target = $region44
        $region43: #{tpu_custom_call.1} parent=11 // pred_region
          %s435 = ssub.s32 16, 16
          %436 = vsyncadd [#allocation15], %s435
          %s438 = sshll.u32 [#allocation16], 4
          %s439 = int_to_ptr.vmem [resolvable:$true] %s438
          %441 = dma.hbm_to_vmem [thread:$0]  %s8, 16, %s439, [#allocation15]
        $region44: #{tpu_custom_call.1} parent=11 // pred_fallthru
          _
        // Predicated region
        $region45: #{tpu_custom_call.1} parent=11 // pred_check
          %p442 = pneg %p246
        $region46: #{tpu_custom_call.1} parent=11 // pred_check_branch
          %444 = sbr.rel (%p442) target = $region48
        $region47: #{tpu_custom_call.1} parent=11 // pred_region
          %s446 = ssub.s32 256, 256
          %447 = vsyncadd [#allocation18], %s446
          %s448 = sshll.u32 [#allocation17], 4
          %s449 = int_to_ptr.vmem [resolvable:$true] %s448
          %454 = dma.hbm_to_vmem [thread:$0]  %s9, 256, %s449, [#allocation18], 64, 64, 4
        $region48: #{tpu_custom_call.1} parent=11 // pred_fallthru
          _
        // Predicated region
        $region49: #{tpu_custom_call.1} parent=11 // pred_check
          %p455 = pneg %p267
        $region50: #{tpu_custom_call.1} parent=11 // pred_check_branch
          %457 = sbr.rel (%p455) target = $region52
        $region51: #{tpu_custom_call.1} parent=11 // pred_region
          %s459 = ssub.s32 16, 16
          %460 = vsyncadd [#allocation18], %s459
          %s462 = sshll.u32 [#allocation19], 4
          %s463 = int_to_ptr.vmem [resolvable:$true] %s462
          %465 = dma.hbm_to_vmem [thread:$0]  %s10, 16, %s463, [#allocation18]
        $region52: #{tpu_custom_call.1} parent=11 // pred_fallthru
          _
        // Predicated region
        $region53: #{tpu_custom_call.1} parent=11 // pred_check
          %p466 = pneg %p288
        $region54: #{tpu_custom_call.1} parent=11 // pred_check_branch
          %468 = sbr.rel (%p466) target = $region56
        $region55: #{tpu_custom_call.1} parent=11 // pred_region
          %s470 = ssub.s32 512, 512
          %471 = vsyncadd [#allocation21], %s470
          %s472 = sshll.u32 [#allocation20], 4
          %s473 = int_to_ptr.vmem [resolvable:$true] %s472
          %478 = dma.hbm_to_vmem [thread:$0]  %s11, 512, %s473, [#allocation21], 64, 64, 4
        $region56: #{tpu_custom_call.1} parent=11 // pred_fallthru
          _
        // Predicated region
        $region57: #{tpu_custom_call.1} parent=11 // pred_check
          %p479 = pneg %p309
        $region58: #{tpu_custom_call.1} parent=11 // pred_check_branch
          %481 = sbr.rel (%p479) target = $region60
        $region59: #{tpu_custom_call.1} parent=11 // pred_region
          %s483 = ssub.s32 16, 16
          %484 = vsyncadd [#allocation21], %s483
          %s486 = sshll.u32 [#allocation22], 4
          %s487 = int_to_ptr.vmem [resolvable:$true] %s486
          %489 = dma.hbm_to_vmem [thread:$0]  %s12, 16, %s487, [#allocation21]
        $region60: #{tpu_custom_call.1} parent=11 // pred_fallthru
          _
      $region12: #{tpu_custom_call.1} parent=5 // pred_fallthru
        _
      %p490 = scmp.lt.s32.totalorder %s31, 2
      // Predicated region
      $region61: #{tpu_custom_call.1} parent=5 // pred_check
        %p491 = pneg %p490
      $region62: #{tpu_custom_call.1} parent=5 // pred_check_branch
        %493 = sbr.rel (%p491) target = $region64
      $region63: #{tpu_custom_call.1} parent=5 // pred_region
        // Predicated region
        $region65: #{tpu_custom_call.1} parent=63 // pred_check
          %p494 = pneg %p51
        $region66: #{tpu_custom_call.1} parent=63 // pred_check_branch
          %496 = sbr.rel (%p494) target = $region68
        $region67: #{tpu_custom_call.1} parent=63 // pred_region
          %s497 = sand.u32 %s41, 1
          %s498 = scalar_lea.sflag [#allocation3], %s497
          %s499 = sand.u32 %s41, 1
          %s500 = smul.addr %s499, 8
          %s501 = scalar_lea.vmem [#allocation2], %s500
          %s503 = ssub.s32 128, 128
          %504 = vsyncadd %s498, %s503
          %s505 = smul.addr %s31, 128
          %s506 = scalar_lea.hbm %s0, %s505
          %s508 = sshll.u32 %s501, 4
          %s509 = int_to_ptr.vmem [resolvable:$true] %s508
          %511 = dma.hbm_to_vmem [thread:$0]  %s506, 128, %s509, %s498
        $region68: #{tpu_custom_call.1} parent=63 // pred_fallthru
          _
      $region64: #{tpu_custom_call.1} parent=5 // pred_fallthru
        _
      %p512 = scmp.le.s32.totalorder 1, %s31
      %p513 = scmp.lt.s32.totalorder %s31, 3
      %p514 = pnand %p512, %p513
      %p515 = pneg %p514
      // Predicated region
      $region69: #{tpu_custom_call.1} parent=5 // pred_check
        _
      $region70: #{tpu_custom_call.1} parent=5 // pred_check_branch
        %517 = sbr.rel (%p514) target = $region72
      $region71: #{tpu_custom_call.1} parent=5 // pred_region
        %s518 = ssub.s32 %s31, 1
        %s519 = sand.u32 %s44, 1
        %s520 = scalar_lea.sflag [#allocation3], %s519
        %s521 = sand.u32 %s44, 1
        %s522 = smul.addr %s521, 8
        %s523 = scalar_lea.vmem [#allocation2], %s522
        // Predicated region
        $region73: #{tpu_custom_call.1} parent=71 // pred_check
          %p524 = pneg %p57
        $region74: #{tpu_custom_call.1} parent=71 // pred_check_branch
          %526 = sbr.rel (%p524) target = $region76
        $region75: #{tpu_custom_call.1} parent=71 // pred_region
          %527 = dma.done %s520, 128
        $region76: #{tpu_custom_call.1} parent=71 // pred_fallthru
          _
        // Predicated region
        $region77: #{tpu_custom_call.1} parent=71 // pred_check
          %p528 = pneg %p78
        $region78: #{tpu_custom_call.1} parent=71 // pred_check_branch
          %530 = sbr.rel (%p528) target = $region80
        $region79: #{tpu_custom_call.1} parent=71 // pred_region
          %531 = dma.done [#allocation6], 16
        $region80: #{tpu_custom_call.1} parent=71 // pred_fallthru
          _
        // Predicated region
        $region81: #{tpu_custom_call.1} parent=71 // pred_check
          %p532 = pneg %p99
        $region82: #{tpu_custom_call.1} parent=71 // pred_check_branch
          %534 = sbr.rel (%p532) target = $region84
        $region83: #{tpu_custom_call.1} parent=71 // pred_region
          %535 = dma.done [#allocation6], 16
        $region84: #{tpu_custom_call.1} parent=71 // pred_fallthru
          _
        // Predicated region
        $region85: #{tpu_custom_call.1} parent=71 // pred_check
          %p536 = pneg %p120
        $region86: #{tpu_custom_call.1} parent=71 // pred_check_branch
          %538 = sbr.rel (%p536) target = $region88
        $region87: #{tpu_custom_call.1} parent=71 // pred_region
          %539 = dma.done [#allocation9], 256
        $region88: #{tpu_custom_call.1} parent=71 // pred_fallthru
          _
        // Predicated region
        $region89: #{tpu_custom_call.1} parent=71 // pred_check
          %p540 = pneg %p141
        $region90: #{tpu_custom_call.1} parent=71 // pred_check_branch
          %542 = sbr.rel (%p540) target = $region92
        $region91: #{tpu_custom_call.1} parent=71 // pred_region
          %543 = dma.done [#allocation9], 16
        $region92: #{tpu_custom_call.1} parent=71 // pred_fallthru
          _
        // Predicated region
        $region93: #{tpu_custom_call.1} parent=71 // pred_check
          %p544 = pneg %p162
        $region94: #{tpu_custom_call.1} parent=71 // pred_check_branch
          %546 = sbr.rel (%p544) target = $region96
        $region95: #{tpu_custom_call.1} parent=71 // pred_region
          %547 = dma.done [#allocation12], 256
        $region96: #{tpu_custom_call.1} parent=71 // pred_fallthru
          _
        // Predicated region
        $region97: #{tpu_custom_call.1} parent=71 // pred_check
          %p548 = pneg %p183
        $region98: #{tpu_custom_call.1} parent=71 // pred_check_branch
          %550 = sbr.rel (%p548) target = $region100
        $region99: #{tpu_custom_call.1} parent=71 // pred_region
          %551 = dma.done [#allocation12], 16
        $region100: #{tpu_custom_call.1} parent=71 // pred_fallthru
          _
        // Predicated region
        $region101: #{tpu_custom_call.1} parent=71 // pred_check
          %p552 = pneg %p204
        $region102: #{tpu_custom_call.1} parent=71 // pred_check_branch
          %554 = sbr.rel (%p552) target = $region104
        $region103: #{tpu_custom_call.1} parent=71 // pred_region
          %555 = dma.done [#allocation15], 16
        $region104: #{tpu_custom_call.1} parent=71 // pred_fallthru
          _
        // Predicated region
        $region105: #{tpu_custom_call.1} parent=71 // pred_check
          %p556 = pneg %p225
        $region106: #{tpu_custom_call.1} parent=71 // pred_check_branch
          %558 = sbr.rel (%p556) target = $region108
        $region107: #{tpu_custom_call.1} parent=71 // pred_region
          %559 = dma.done [#allocation15], 16
        $region108: #{tpu_custom_call.1} parent=71 // pred_fallthru
          _
        // Predicated region
        $region109: #{tpu_custom_call.1} parent=71 // pred_check
          %p560 = pneg %p246
        $region110: #{tpu_custom_call.1} parent=71 // pred_check_branch
          %562 = sbr.rel (%p560) target = $region112
        $region111: #{tpu_custom_call.1} parent=71 // pred_region
          %563 = dma.done [#allocation18], 256
        $region112: #{tpu_custom_call.1} parent=71 // pred_fallthru
          _
        // Predicated region
        $region113: #{tpu_custom_call.1} parent=71 // pred_check
          %p564 = pneg %p267
        $region114: #{tpu_custom_call.1} parent=71 // pred_check_branch
          %566 = sbr.rel (%p564) target = $region116
        $region115: #{tpu_custom_call.1} parent=71 // pred_region
          %567 = dma.done [#allocation18], 16
        $region116: #{tpu_custom_call.1} parent=71 // pred_fallthru
          _
        // Predicated region
        $region117: #{tpu_custom_call.1} parent=71 // pred_check
          %p568 = pneg %p288
        $region118: #{tpu_custom_call.1} parent=71 // pred_check_branch
          %570 = sbr.rel (%p568) target = $region120
        $region119: #{tpu_custom_call.1} parent=71 // pred_region
          %571 = dma.done [#allocation21], 512
        $region120: #{tpu_custom_call.1} parent=71 // pred_fallthru
          _
        // Predicated region
        $region121: #{tpu_custom_call.1} parent=71 // pred_check
          %p572 = pneg %p309
        $region122: #{tpu_custom_call.1} parent=71 // pred_check_branch
          %574 = sbr.rel (%p572) target = $region124
        $region123: #{tpu_custom_call.1} parent=71 // pred_region
          %575 = dma.done [#allocation21], 16
        $region124: #{tpu_custom_call.1} parent=71 // pred_fallthru
          _
        %s576 = sand.u32 %s44, 1
        %s577 = scalar_lea.sflag [#allocation3], %s576
        %s578 = sand.u32 %s44, 1
        %s579 = smul.addr %s578, 8
        %s580 = scalar_lea.vmem [#allocation2], %s579
        %p581 = pneg %p57
        %p582 = pneg %p54
        %p583 = pneg %p78
        %p584 = pneg %p75
        %p585 = pneg %p99
        %p586 = pneg %p96
        %p587 = pneg %p120
        %p588 = pneg %p117
        %p589 = pneg %p141
        %p590 = pneg %p138
        %p591 = pneg %p162
        %p592 = pneg %p159
        %p593 = pneg %p183
        %p594 = pneg %p180
        %p595 = pneg %p204
        %p596 = pneg %p201
        %p597 = pneg %p225
        %p598 = pneg %p222
        %p599 = pneg %p246
        %p600 = pneg %p243
        %p601 = pneg %p267
        %p602 = pneg %p264
        %p603 = pneg %p288
        %p604 = pneg %p285
        %p605 = pneg %p309
        %p606 = pneg %p306
        %p607 = pneg %p335
        %p608 = pneg %p332
        %s609 = sand.u32 %s322, 1
        %s610 = scalar_lea.sflag [#allocation4], %s609
        %s611 = sand.u32 %s322, 1
        %s612 = smul.addr %s611, 8
        %s613 = scalar_lea.vmem [#allocation23], %s612
        %v615 = vld [vmem:[%s523] sm:$0xff]
        %v616 = vld [vmem:[#allocation5] sm:$0x1]
        %v617 = vld [vmem:[#allocation7] sm:$0x1]
        %vm618 = vcmask 261120
        %v619 = vsel %vm618, %v615, 0.0
        %620 = vadd.xlane.f32.xlu0 %v619
        %v621 = vpop.xlane.xlu0 %620
        %v622 = vrcp.pop 32.0
        %v623 = vmul.f32 %v621, %v622
        %v624 = vsub.f32 %v615, %v623
        %v625 = vmul.f32 %v624, %v624
        %v626 = vsel %vm618, %v625, 0.0
        %627 = vadd.xlane.f32.xlu0 %v626
        %v628 = vpop.xlane.xlu0 %627
        %v629 = vmul.f32 %v628, %v622
        %v630 = vadd.f32 %v629, 1e-05
        %v631 = vrsqrt.pop %v630
        %v632 = vmul.f32 %v624, %v631
        %v634 = vlaneseq
        %v635 = vshrl.u32 %v634, 7
        %v636 = vsub.s32 0, %v635
        %v637 = vrot.slane %v616, %v636
        %v639 = vmul.f32 %v632, %v637
        %v641 = vlaneseq
        %v642 = vshrl.u32 %v641, 7
        %v643 = vsub.s32 0, %v642
        %v644 = vrot.slane %v617, %v643
        %v646 = vadd.f32 %v639, %v644
        %v647 = vpack.c.bf16 %v646, %v646
        %v648 = vld [vmem:[#allocation8] sm:$0xf]
        %v649 = vld [vmem:[#allocation8 + $0x4] sm:$0xf]
        %v650 = vld [vmem:[#allocation8 + $0x8] sm:$0xf]
        %v651 = vld [vmem:[#allocation8 + $0xc] sm:$0xf]
        %v652 = vld [vmem:[#allocation10] sm:$0x1]
        %v654 = vlaneseq
        %v655 = vshrl.u32 %v654, 7
        %v656 = vsub.s32 0, %v655
        %v657 = vrot.slane %v652, %v656
        %v663 = vunpack.c.l.b16 %v648
        %v664 = vunpack.c.l.b16 %v649
        %v665 = vunpack.c.l.b16 %v650
        %v666 = vunpack.c.l.b16 %v651
        %v667 = vpack.c.b16 %v664, %v663
        %v668 = vpack.c.b16 %v666, %v665
        %v672 = vsel %vm618, %v647, 0
        %674 = vmatprep.subr.bf16.mxu0 0
        %675 = vmatpush1.bf16.msra.mxu0 %v667
        %676 = vmatprep.subr.bf16.mxu0 0
        %677 = vmatpush1.bf16.msra.mxu0 %v668
        %678 = vmatprep.subr.bf16.mxu0 0
        %679 = vmatpush1.bf16.msra.mxu0 0
        %680 = vmatprep.subr.bf16.mxu0 0
        %681 = vmatpush1.bf16.msra.mxu0 0
        %682 = vmatprep.subr.bf16.mxu0 0
        %683 = vmatpush1.bf16.msra.mxu0 0
        %684 = vmatprep.subr.bf16.mxu0 0
        %685 = vmatpush1.bf16.msra.mxu0 0
        %686 = vmatprep.subr.bf16.mxu0 0
        %687 = vmatpush1.bf16.msra.mxu0 0
        %688 = vmatprep.subr.bf16.mxu0 0
        %689 = vmatpush1.bf16.msra.mxu0 0
        %690 = vmatprep.subr.bf16.mxu0 0
        %691 = vmatpush1.bf16.msra.mxu0 0
        %692 = vmatprep.subr.bf16.mxu0 0
        %693 = vmatpush1.bf16.msra.mxu0 0
        %694 = vmatprep.subr.bf16.mxu0 0
        %695 = vmatpush1.bf16.msra.mxu0 0
        %696 = vmatprep.subr.bf16.mxu0 0
        %697 = vmatpush1.bf16.msra.mxu0 0
        %698 = vmatprep.subr.bf16.mxu0 0
        %699 = vmatpush1.bf16.msra.mxu0 0
        %700 = vmatprep.subr.bf16.mxu0 0
        %701 = vmatpush1.bf16.msra.mxu0 0
        %702 = vmatprep.subr.bf16.mxu0 0
        %703 = vmatpush1.bf16.msra.mxu0 0
        %704 = vmatprep.subr.bf16.mxu0 0
        %705 = vmatpush1.bf16.msra.mxu0 0
        %706 = vmatprep.mubr.bf16.mxu0 0
        %707 = vmatmul.mubr.bf16.gmra.mrb[0].mxu0 %v672
        %v708 = vpop.f32.mrb[0].mxu0
        %v709 = vadd.f32 %v657, %v708
        %v710 = vpop.f32.mrb[0].mxu0
        %v711 = vpop.f32.mrb[0].mxu0
        %v712 = vpop.f32.mrb[0].mxu0
        %713 = vdwg.mxu0
        %715 = vrot.lane.b32.xlu0 %v709, 120
        %v716 = vpop.permute.xlu0 %715
        %718 = vrot.lane.b32.xlu0 %v709, 112
        %v719 = vpop.permute.xlu0 %718
        %721 = vrot.lane.b32.xlu0 %v709, 104
        %v722 = vpop.permute.xlu0 %721
        %v724 = vpack.c.bf16 %v709, %v709
        %v725 = vpack.c.bf16 %v716, %v716
        %v726 = vpack.c.bf16 %v719, %v719
        %v727 = vpack.c.bf16 %v722, %v722
        %729 = vrot.lane.b32.xlu0 %v724, 96
        %v730 = vpop.permute.xlu0 %729
        %vm731 = vcmask 64512
        %v733 = vsel %vm731, %v724, 0
        %v736 = vsel %vm731, %v730, 0
        %738 = vmatprep.subr.bf16.mxu0 0
        %739 = vmatpush1.bf16.xpose.msra.mxu0 %v736
        %740 = vmatprep.subr.bf16.mxu0 0
        %741 = vmatpush1.bf16.xpose.msra.mxu0 0
        %742 = vmatprep.subr.bf16.mxu0 0
        %743 = vmatpush1.bf16.xpose.msra.mxu0 0
        %744 = vmatprep.subr.bf16.mxu0 0
        %745 = vmatpush1.bf16.xpose.msra.mxu0 0
        %746 = vmatprep.subr.bf16.mxu0 0
        %747 = vmatpush1.bf16.xpose.msra.mxu0 0
        %748 = vmatprep.subr.bf16.mxu0 0
        %749 = vmatpush1.bf16.xpose.msra.mxu0 0
        %750 = vmatprep.subr.bf16.mxu0 0
        %751 = vmatpush1.bf16.xpose.msra.mxu0 0
        %752 = vmatprep.subr.bf16.mxu0 0
        %753 = vmatpush1.bf16.xpose.msra.mxu0 0
        %754 = vmatprep.subr.bf16.mxu0 0
        %755 = vmatpush1.bf16.xpose.msra.mxu0 0
        %756 = vmatprep.subr.bf16.mxu0 0
        %757 = vmatpush1.bf16.xpose.msra.mxu0 0
        %758 = vmatprep.subr.bf16.mxu0 0
        %759 = vmatpush1.bf16.xpose.msra.mxu0 0
        %760 = vmatprep.subr.bf16.mxu0 0
        %761 = vmatpush1.bf16.xpose.msra.mxu0 0
        %762 = vmatprep.subr.bf16.mxu0 0
        %763 = vmatpush1.bf16.xpose.msra.mxu0 0
        %764 = vmatprep.subr.bf16.mxu0 0
        %765 = vmatpush1.bf16.xpose.msra.mxu0 0
        %766 = vmatprep.subr.bf16.mxu0 0
        %767 = vmatpush1.bf16.xpose.msra.mxu0 0
        %768 = vmatprep.subr.bf16.mxu0 0
        %769 = vmatpush1.bf16.xpose.msra.mxu0 0
        %770 = vmatprep.mubr.bf16.mxu0 0
        %771 = vmatmul.mubr.bf16.gmra.mrb[0].mxu0 %v733
        %v772 = vpop.f32.mrb[0].mxu0
        %v773 = vadd.f32 0.0, %v772
        %v774 = vpop.f32.mrb[0].mxu0
        %v775 = vpop.f32.mrb[0].mxu0
        %v776 = vpop.f32.mrb[0].mxu0
        %777 = vdwg.mxu0
        %779 = vrot.lane.b32.xlu0 %v725, 96
        %v780 = vpop.permute.xlu0 %779
        %v782 = vsel %vm731, %v725, 0
        %v785 = vsel %vm731, %v780, 0
        %787 = vmatprep.subr.bf16.mxu0 0
        %788 = vmatpush1.bf16.xpose.msra.mxu0 %v785
        %789 = vmatprep.subr.bf16.mxu0 0
        %790 = vmatpush1.bf16.xpose.msra.mxu0 0
        %791 = vmatprep.subr.bf16.mxu0 0
        %792 = vmatpush1.bf16.xpose.msra.mxu0 0
        %793 = vmatprep.subr.bf16.mxu0 0
        %794 = vmatpush1.bf16.xpose.msra.mxu0 0
        %795 = vmatprep.subr.bf16.mxu0 0
        %796 = vmatpush1.bf16.xpose.msra.mxu0 0
        %797 = vmatprep.subr.bf16.mxu0 0
        %798 = vmatpush1.bf16.xpose.msra.mxu0 0
        %799 = vmatprep.subr.bf16.mxu0 0
        %800 = vmatpush1.bf16.xpose.msra.mxu0 0
        %801 = vmatprep.subr.bf16.mxu0 0
        %802 = vmatpush1.bf16.xpose.msra.mxu0 0
        %803 = vmatprep.subr.bf16.mxu0 0
        %804 = vmatpush1.bf16.xpose.msra.mxu0 0
        %805 = vmatprep.subr.bf16.mxu0 0
        %806 = vmatpush1.bf16.xpose.msra.mxu0 0
        %807 = vmatprep.subr.bf16.mxu0 0
        %808 = vmatpush1.bf16.xpose.msra.mxu0 0
        %809 = vmatprep.subr.bf16.mxu0 0
        %810 = vmatpush1.bf16.xpose.msra.mxu0 0
        %811 = vmatprep.subr.bf16.mxu0 0
        %812 = vmatpush1.bf16.xpose.msra.mxu0 0
        %813 = vmatprep.subr.bf16.mxu0 0
        %814 = vmatpush1.bf16.xpose.msra.mxu0 0
        %815 = vmatprep.subr.bf16.mxu0 0
        %816 = vmatpush1.bf16.xpose.msra.mxu0 0
        %817 = vmatprep.subr.bf16.mxu0 0
        %818 = vmatpush1.bf16.xpose.msra.mxu0 0
        %819 = vmatprep.mubr.bf16.mxu0 0
        %820 = vmatmul.mubr.bf16.gmra.mrb[0].mxu0 %v782
        %v821 = vpop.f32.mrb[0].mxu0
        %v822 = vadd.f32 0.0, %v821
        %v823 = vpop.f32.mrb[0].mxu0
        %v824 = vpop.f32.mrb[0].mxu0
        %v825 = vpop.f32.mrb[0].mxu0
        %826 = vdwg.mxu0
        %828 = vrot.lane.b32.xlu0 %v726, 96
        %v829 = vpop.permute.xlu0 %828
        %v831 = vsel %vm731, %v726, 0
        %v834 = vsel %vm731, %v829, 0
        %836 = vmatprep.subr.bf16.mxu0 0
        %837 = vmatpush1.bf16.xpose.msra.mxu0 %v834
        %838 = vmatprep.subr.bf16.mxu0 0
        %839 = vmatpush1.bf16.xpose.msra.mxu0 0
        %840 = vmatprep.subr.bf16.mxu0 0
        %841 = vmatpush1.bf16.xpose.msra.mxu0 0
        %842 = vmatprep.subr.bf16.mxu0 0
        %843 = vmatpush1.bf16.xpose.msra.mxu0 0
        %844 = vmatprep.subr.bf16.mxu0 0
        %845 = vmatpush1.bf16.xpose.msra.mxu0 0
        %846 = vmatprep.subr.bf16.mxu0 0
        %847 = vmatpush1.bf16.xpose.msra.mxu0 0
        %848 = vmatprep.subr.bf16.mxu0 0
        %849 = vmatpush1.bf16.xpose.msra.mxu0 0
        %850 = vmatprep.subr.bf16.mxu0 0
        %851 = vmatpush1.bf16.xpose.msra.mxu0 0
        %852 = vmatprep.subr.bf16.mxu0 0
        %853 = vmatpush1.bf16.xpose.msra.mxu0 0
        %854 = vmatprep.subr.bf16.mxu0 0
        %855 = vmatpush1.bf16.xpose.msra.mxu0 0
        %856 = vmatprep.subr.bf16.mxu0 0
        %857 = vmatpush1.bf16.xpose.msra.mxu0 0
        %858 = vmatprep.subr.bf16.mxu0 0
        %859 = vmatpush1.bf16.xpose.msra.mxu0 0
        %860 = vmatprep.subr.bf16.mxu0 0
        %861 = vmatpush1.bf16.xpose.msra.mxu0 0
        %862 = vmatprep.subr.bf16.mxu0 0
        %863 = vmatpush1.bf16.xpose.msra.mxu0 0
        %864 = vmatprep.subr.bf16.mxu0 0
        %865 = vmatpush1.bf16.xpose.msra.mxu0 0
        %866 = vmatprep.subr.bf16.mxu0 0
        %867 = vmatpush1.bf16.xpose.msra.mxu0 0
        %868 = vmatprep.mubr.bf16.mxu0 0
        %869 = vmatmul.mubr.bf16.gmra.mrb[0].mxu0 %v831
        %v870 = vpop.f32.mrb[0].mxu0
        %v871 = vadd.f32 0.0, %v870
        %v872 = vpop.f32.mrb[0].mxu0
        %v873 = vpop.f32.mrb[0].mxu0
        %v874 = vpop.f32.mrb[0].mxu0
        %875 = vdwg.mxu0
        %877 = vrot.lane.b32.xlu0 %v727, 96
        %v878 = vpop.permute.xlu0 %877
        %v880 = vsel %vm731, %v727, 0
        %v883 = vsel %vm731, %v878, 0
        %885 = vmatprep.subr.bf16.mxu0 0
        %886 = vmatpush1.bf16.xpose.msra.mxu0 %v883
        %887 = vmatprep.subr.bf16.mxu0 0
        %888 = vmatpush1.bf16.xpose.msra.mxu0 0
        %889 = vmatprep.subr.bf16.mxu0 0
        %890 = vmatpush1.bf16.xpose.msra.mxu0 0
        %891 = vmatprep.subr.bf16.mxu0 0
        %892 = vmatpush1.bf16.xpose.msra.mxu0 0
        %893 = vmatprep.subr.bf16.mxu0 0
        %894 = vmatpush1.bf16.xpose.msra.mxu0 0
        %895 = vmatprep.subr.bf16.mxu0 0
        %896 = vmatpush1.bf16.xpose.msra.mxu0 0
        %897 = vmatprep.subr.bf16.mxu0 0
        %898 = vmatpush1.bf16.xpose.msra.mxu0 0
        %899 = vmatprep.subr.bf16.mxu0 0
        %900 = vmatpush1.bf16.xpose.msra.mxu0 0
        %901 = vmatprep.subr.bf16.mxu0 0
        %902 = vmatpush1.bf16.xpose.msra.mxu0 0
        %903 = vmatprep.subr.bf16.mxu0 0
        %904 = vmatpush1.bf16.xpose.msra.mxu0 0
        %905 = vmatprep.subr.bf16.mxu0 0
        %906 = vmatpush1.bf16.xpose.msra.mxu0 0
        %907 = vmatprep.subr.bf16.mxu0 0
        %908 = vmatpush1.bf16.xpose.msra.mxu0 0
        %909 = vmatprep.subr.bf16.mxu0 0
        %910 = vmatpush1.bf16.xpose.msra.mxu0 0
        %911 = vmatprep.subr.bf16.mxu0 0
        %912 = vmatpush1.bf16.xpose.msra.mxu0 0
        %913 = vmatprep.subr.bf16.mxu0 0
        %914 = vmatpush1.bf16.xpose.msra.mxu0 0
        %915 = vmatprep.subr.bf16.mxu0 0
        %916 = vmatpush1.bf16.xpose.msra.mxu0 0
        %917 = vmatprep.mubr.bf16.mxu0 0
        %918 = vmatmul.mubr.bf16.gmra.mrb[0].mxu0 %v880
        %v919 = vpop.f32.mrb[0].mxu0
        %v920 = vadd.f32 0.0, %v919
        %v921 = vpop.f32.mrb[0].mxu0
        %v922 = vpop.f32.mrb[0].mxu0
        %v923 = vpop.f32.mrb[0].mxu0
        %924 = vdwg.mxu0
        %v925 = vsel %vm731, %v773, -inf
        %926 = vmax.xlane.f32.xlu0 %v925
        %v927 = vpop.xlane.xlu0 %926
        %v928 = vsel %vm731, %v822, -inf
        %929 = vmax.xlane.f32.xlu0 %v928
        %v930 = vpop.xlane.xlu0 %929
        %v931 = vsel %vm731, %v871, -inf
        %932 = vmax.xlane.f32.xlu0 %v931
        %v933 = vpop.xlane.xlu0 %932
        %v934 = vsel %vm731, %v920, -inf
        %935 = vmax.xlane.f32.xlu0 %v934
        %v936 = vpop.xlane.xlu0 %935
        %v937 = vsub.f32 -inf, %v927
        %v938 = vsub.f32 -inf, %v930
        %v939 = vsub.f32 -inf, %v933
        %v940 = vsub.f32 -inf, %v936
        %v941 = vmul.f32 %v937, 1.442695
        %v942 = vpow.pop %v941
        %v943 = vmul.f32 %v938, 1.442695
        %v944 = vpow.pop %v943
        %v945 = vmul.f32 %v939, 1.442695
        %v946 = vpow.pop %v945
        %v947 = vmul.f32 %v940, 1.442695
        %v948 = vpow.pop %v947
        %v949 = vsub.f32 %v773, %v927
        %v950 = vsub.f32 %v822, %v930
        %v951 = vsub.f32 %v871, %v933
        %v952 = vsub.f32 %v920, %v936
        %v953 = vmul.f32 %v949, 1.442695
        %v954 = vpow.pop %v953
        %v955 = vmul.f32 %v950, 1.442695
        %v956 = vpow.pop %v955
        %v957 = vmul.f32 %v951, 1.442695
        %v958 = vpow.pop %v957
        %v959 = vmul.f32 %v952, 1.442695
        %v960 = vpow.pop %v959
        %v961 = vmul.f32 %v942, 0.0
        %v962 = vmul.f32 %v944, 0.0
        %v963 = vmul.f32 %v946, 0.0
        %v964 = vmul.f32 %v948, 0.0
        %v965 = vsel %vm731, %v954, 0.0
        %966 = vadd.xlane.f32.xlu0 %v965
        %v967 = vpop.xlane.xlu0 %966
        %v968 = vsel %vm731, %v956, 0.0
        %969 = vadd.xlane.f32.xlu0 %v968
        %v970 = vpop.xlane.xlu0 %969
        %v971 = vsel %vm731, %v958, 0.0
        %972 = vadd.xlane.f32.xlu0 %v971
        %v973 = vpop.xlane.xlu0 %972
        %v974 = vsel %vm731, %v960, 0.0
        %975 = vadd.xlane.f32.xlu0 %v974
        %v976 = vpop.xlane.xlu0 %975
        %v977 = vadd.f32 %v961, %v967
        %v978 = vadd.f32 %v962, %v970
        %v979 = vadd.f32 %v963, %v973
        %v980 = vadd.f32 %v964, %v976
        %v981 = vpack.c.bf16 %v954, %v954
        %v982 = vpack.c.bf16 %v956, %v956
        %v983 = vpack.c.bf16 %v958, %v958
        %v984 = vpack.c.bf16 %v960, %v960
        %985 = vrot.lane.b32.xlu0 %v724, 64
        %v986 = vpop.permute.xlu0 %985
        %v988 = vsel %vm731, %v981, 0
        %vm990 = vcmask 1043456
        %v992 = vsel %vm990, %v986, 0
        %994 = vmatprep.subr.bf16.mxu0 0
        %995 = vmatpush1.bf16.msra.mxu0 %v992
        %996 = vmatprep.subr.bf16.mxu0 0
        %997 = vmatpush1.bf16.msra.mxu0 0
        %998 = vmatprep.subr.bf16.mxu0 0
        %999 = vmatpush1.bf16.msra.mxu0 0
        %1000 = vmatprep.subr.bf16.mxu0 0
        %1001 = vmatpush1.bf16.msra.mxu0 0
        %1002 = vmatprep.subr.bf16.mxu0 0
        %1003 = vmatpush1.bf16.msra.mxu0 0
        %1004 = vmatprep.subr.bf16.mxu0 0
        %1005 = vmatpush1.bf16.msra.mxu0 0
        %1006 = vmatprep.subr.bf16.mxu0 0
        %1007 = vmatpush1.bf16.msra.mxu0 0
        %1008 = vmatprep.subr.bf16.mxu0 0
        %1009 = vmatpush1.bf16.msra.mxu0 0
        %1010 = vmatprep.subr.bf16.mxu0 0
        %1011 = vmatpush1.bf16.msra.mxu0 0
        %1012 = vmatprep.subr.bf16.mxu0 0
        %1013 = vmatpush1.bf16.msra.mxu0 0
        %1014 = vmatprep.subr.bf16.mxu0 0
        %1015 = vmatpush1.bf16.msra.mxu0 0
        %1016 = vmatprep.subr.bf16.mxu0 0
        %1017 = vmatpush1.bf16.msra.mxu0 0
        %1018 = vmatprep.subr.bf16.mxu0 0
        %1019 = vmatpush1.bf16.msra.mxu0 0
        %1020 = vmatprep.subr.bf16.mxu0 0
        %1021 = vmatpush1.bf16.msra.mxu0 0
        %1022 = vmatprep.subr.bf16.mxu0 0
        %1023 = vmatpush1.bf16.msra.mxu0 0
        %1024 = vmatprep.subr.bf16.mxu0 0
        %1025 = vmatpush1.bf16.msra.mxu0 0
        %1026 = vmatprep.mubr.bf16.mxu0 0
        %1027 = vmatmul.mubr.bf16.gmra.mrb[0].mxu0 %v988
        %v1028 = vpop.f32.mrb[0].mxu0
        %v1029 = vadd.f32 0.0, %v1028
        %v1030 = vpop.f32.mrb[0].mxu0
        %v1031 = vpop.f32.mrb[0].mxu0
        %v1032 = vpop.f32.mrb[0].mxu0
        %1033 = vdwg.mxu0
        %1034 = vrot.lane.b32.xlu0 %v725, 64
        %v1035 = vpop.permute.xlu0 %1034
        %v1037 = vsel %vm731, %v982, 0
        %v1040 = vsel %vm990, %v1035, 0
        %1042 = vmatprep.subr.bf16.mxu0 0
        %1043 = vmatpush1.bf16.msra.mxu0 %v1040
        %1044 = vmatprep.subr.bf16.mxu0 0
        %1045 = vmatpush1.bf16.msra.mxu0 0
        %1046 = vmatprep.subr.bf16.mxu0 0
        %1047 = vmatpush1.bf16.msra.mxu0 0
        %1048 = vmatprep.subr.bf16.mxu0 0
        %1049 = vmatpush1.bf16.msra.mxu0 0
        %1050 = vmatprep.subr.bf16.mxu0 0
        %1051 = vmatpush1.bf16.msra.mxu0 0
        %1052 = vmatprep.subr.bf16.mxu0 0
        %1053 = vmatpush1.bf16.msra.mxu0 0
        %1054 = vmatprep.subr.bf16.mxu0 0
        %1055 = vmatpush1.bf16.msra.mxu0 0
        %1056 = vmatprep.subr.bf16.mxu0 0
        %1057 = vmatpush1.bf16.msra.mxu0 0
        %1058 = vmatprep.subr.bf16.mxu0 0
        %1059 = vmatpush1.bf16.msra.mxu0 0
        %1060 = vmatprep.subr.bf16.mxu0 0
        %1061 = vmatpush1.bf16.msra.mxu0 0
        %1062 = vmatprep.subr.bf16.mxu0 0
        %1063 = vmatpush1.bf16.msra.mxu0 0
        %1064 = vmatprep.subr.bf16.mxu0 0
        %1065 = vmatpush1.bf16.msra.mxu0 0
        %1066 = vmatprep.subr.bf16.mxu0 0
        %1067 = vmatpush1.bf16.msra.mxu0 0
        %1068 = vmatprep.subr.bf16.mxu0 0
        %1069 = vmatpush1.bf16.msra.mxu0 0
        %1070 = vmatprep.subr.bf16.mxu0 0
        %1071 = vmatpush1.bf16.msra.mxu0 0
        %1072 = vmatprep.subr.bf16.mxu0 0
        %1073 = vmatpush1.bf16.msra.mxu0 0
        %1074 = vmatprep.mubr.bf16.mxu0 0
        %1075 = vmatmul.mubr.bf16.gmra.mrb[0].mxu0 %v1037
        %v1076 = vpop.f32.mrb[0].mxu0
        %v1077 = vadd.f32 0.0, %v1076
        %v1078 = vpop.f32.mrb[0].mxu0
        %v1079 = vpop.f32.mrb[0].mxu0
        %v1080 = vpop.f32.mrb[0].mxu0
        %1081 = vdwg.mxu0
        %1082 = vrot.lane.b32.xlu0 %v726, 64
        %v1083 = vpop.permute.xlu0 %1082
        %v1085 = vsel %vm731, %v983, 0
        %v1088 = vsel %vm990, %v1083, 0
        %1090 = vmatprep.subr.bf16.mxu0 0
        %1091 = vmatpush1.bf16.msra.mxu0 %v1088
        %1092 = vmatprep.subr.bf16.mxu0 0
        %1093 = vmatpush1.bf16.msra.mxu0 0
        %1094 = vmatprep.subr.bf16.mxu0 0
        %1095 = vmatpush1.bf16.msra.mxu0 0
        %1096 = vmatprep.subr.bf16.mxu0 0
        %1097 = vmatpush1.bf16.msra.mxu0 0
        %1098 = vmatprep.subr.bf16.mxu0 0
        %1099 = vmatpush1.bf16.msra.mxu0 0
        %1100 = vmatprep.subr.bf16.mxu0 0
        %1101 = vmatpush1.bf16.msra.mxu0 0
        %1102 = vmatprep.subr.bf16.mxu0 0
        %1103 = vmatpush1.bf16.msra.mxu0 0
        %1104 = vmatprep.subr.bf16.mxu0 0
        %1105 = vmatpush1.bf16.msra.mxu0 0
        %1106 = vmatprep.subr.bf16.mxu0 0
        %1107 = vmatpush1.bf16.msra.mxu0 0
        %1108 = vmatprep.subr.bf16.mxu0 0
        %1109 = vmatpush1.bf16.msra.mxu0 0
        %1110 = vmatprep.subr.bf16.mxu0 0
        %1111 = vmatpush1.bf16.msra.mxu0 0
        %1112 = vmatprep.subr.bf16.mxu0 0
        %1113 = vmatpush1.bf16.msra.mxu0 0
        %1114 = vmatprep.subr.bf16.mxu0 0
        %1115 = vmatpush1.bf16.msra.mxu0 0
        %1116 = vmatprep.subr.bf16.mxu0 0
        %1117 = vmatpush1.bf16.msra.mxu0 0
        %1118 = vmatprep.subr.bf16.mxu0 0
        %1119 = vmatpush1.bf16.msra.mxu0 0
        %1120 = vmatprep.subr.bf16.mxu0 0
        %1121 = vmatpush1.bf16.msra.mxu0 0
        %1122 = vmatprep.mubr.bf16.mxu0 0
        %1123 = vmatmul.mubr.bf16.gmra.mrb[0].mxu0 %v1085
        %v1124 = vpop.f32.mrb[0].mxu0
        %v1125 = vadd.f32 0.0, %v1124
        %v1126 = vpop.f32.mrb[0].mxu0
        %v1127 = vpop.f32.mrb[0].mxu0
        %v1128 = vpop.f32.mrb[0].mxu0
        %1129 = vdwg.mxu0
        %1130 = vrot.lane.b32.xlu0 %v727, 64
        %v1131 = vpop.permute.xlu0 %1130
        %v1133 = vsel %vm731, %v984, 0
        %v1136 = vsel %vm990, %v1131, 0
        %1138 = vmatprep.subr.bf16.mxu0 0
        %1139 = vmatpush1.bf16.msra.mxu0 %v1136
        %1140 = vmatprep.subr.bf16.mxu0 0
        %1141 = vmatpush1.bf16.msra.mxu0 0
        %1142 = vmatprep.subr.bf16.mxu0 0
        %1143 = vmatpush1.bf16.msra.mxu0 0
        %1144 = vmatprep.subr.bf16.mxu0 0
        %1145 = vmatpush1.bf16.msra.mxu0 0
        %1146 = vmatprep.subr.bf16.mxu0 0
        %1147 = vmatpush1.bf16.msra.mxu0 0
        %1148 = vmatprep.subr.bf16.mxu0 0
        %1149 = vmatpush1.bf16.msra.mxu0 0
        %1150 = vmatprep.subr.bf16.mxu0 0
        %1151 = vmatpush1.bf16.msra.mxu0 0
        %1152 = vmatprep.subr.bf16.mxu0 0
        %1153 = vmatpush1.bf16.msra.mxu0 0
        %1154 = vmatprep.subr.bf16.mxu0 0
        %1155 = vmatpush1.bf16.msra.mxu0 0
        %1156 = vmatprep.subr.bf16.mxu0 0
        %1157 = vmatpush1.bf16.msra.mxu0 0
        %1158 = vmatprep.subr.bf16.mxu0 0
        %1159 = vmatpush1.bf16.msra.mxu0 0
        %1160 = vmatprep.subr.bf16.mxu0 0
        %1161 = vmatpush1.bf16.msra.mxu0 0
        %1162 = vmatprep.subr.bf16.mxu0 0
        %1163 = vmatpush1.bf16.msra.mxu0 0
        %1164 = vmatprep.subr.bf16.mxu0 0
        %1165 = vmatpush1.bf16.msra.mxu0 0
        %1166 = vmatprep.subr.bf16.mxu0 0
        %1167 = vmatpush1.bf16.msra.mxu0 0
        %1168 = vmatprep.subr.bf16.mxu0 0
        %1169 = vmatpush1.bf16.msra.mxu0 0
        %1170 = vmatprep.mubr.bf16.mxu0 0
        %1171 = vmatmul.mubr.bf16.gmra.mrb[0].mxu0 %v1133
        %v1172 = vpop.f32.mrb[0].mxu0
        %v1173 = vadd.f32 0.0, %v1172
        %v1174 = vpop.f32.mrb[0].mxu0
        %v1175 = vpop.f32.mrb[0].mxu0
        %v1176 = vpop.f32.mrb[0].mxu0
        %1177 = vdwg.mxu0
        %v1178 = vadd.f32 %v961, %v1029
        %v1179 = vadd.f32 %v962, %v1077
        %v1180 = vadd.f32 %v963, %v1125
        %v1181 = vadd.f32 %v964, %v1173
        %v1182 = vrcp.pop %v977
        %v1183 = vrcp.pop %v978
        %v1184 = vrcp.pop %v979
        %v1185 = vrcp.pop %v980
        %v1186 = vmul.f32 %v1178, %v1182
        %v1187 = vmul.f32 %v1179, %v1183
        %v1188 = vmul.f32 %v1180, %v1184
        %v1189 = vmul.f32 %v1181, %v1185
        %1191 = vrot.lane.b32.xlu0 %v1187, 8
        %v1192 = vpop.permute.xlu0 %1191
        %1195 = vrot.lane.b32.xlu0 %v1188, 16
        %v1196 = vpop.permute.xlu0 %1195
        %1199 = vrot.lane.b32.xlu0 %v1189, 24
        %v1200 = vpop.permute.xlu0 %1199
        %v1202 = vsel %vm731, %v1186, %v1192
        %vm1203 = vcmask 130048
        %v1204 = vsel %vm1203, %v1202, %v1196
        %vm1205 = vcmask 195584
        %v1206 = vsel %vm1205, %v1204, %v1200
        %v1207 = vpack.c.bf16 %v1206, %v1206
        %v1208 = vld [vmem:[#allocation11] sm:$0xf]
        %v1209 = vld [vmem:[#allocation11 + $0x4] sm:$0xf]
        %v1210 = vld [vmem:[#allocation11 + $0x8] sm:$0xf]
        %v1211 = vld [vmem:[#allocation11 + $0xc] sm:$0xf]
        %v1212 = vld [vmem:[#allocation13] sm:$0x1]
        %v1214 = vlaneseq
        %v1215 = vshrl.u32 %v1214, 7
        %v1216 = vsub.s32 0, %v1215
        %v1217 = vrot.slane %v1212, %v1216
        %v1223 = vunpack.c.l.b16 %v1208
        %v1224 = vunpack.c.l.b16 %v1209
        %v1225 = vunpack.c.l.b16 %v1210
        %v1226 = vunpack.c.l.b16 %v1211
        %v1227 = vpack.c.b16 %v1224, %v1223
        %v1228 = vpack.c.b16 %v1226, %v1225
        %v1232 = vsel %vm618, %v1207, 0
        %1234 = vmatprep.subr.bf16.mxu0 0
        %1235 = vmatpush1.bf16.msra.mxu0 %v1227
        %1236 = vmatprep.subr.bf16.mxu0 0
        %1237 = vmatpush1.bf16.msra.mxu0 %v1228
        %1238 = vmatprep.subr.bf16.mxu0 0
        %1239 = vmatpush1.bf16.msra.mxu0 0
        %1240 = vmatprep.subr.bf16.mxu0 0
        %1241 = vmatpush1.bf16.msra.mxu0 0
        %1242 = vmatprep.subr.bf16.mxu0 0
        %1243 = vmatpush1.bf16.msra.mxu0 0
        %1244 = vmatprep.subr.bf16.mxu0 0
        %1245 = vmatpush1.bf16.msra.mxu0 0
        %1246 = vmatprep.subr.bf16.mxu0 0
        %1247 = vmatpush1.bf16.msra.mxu0 0
        %1248 = vmatprep.subr.bf16.mxu0 0
        %1249 = vmatpush1.bf16.msra.mxu0 0
        %1250 = vmatprep.subr.bf16.mxu0 0
        %1251 = vmatpush1.bf16.msra.mxu0 0
        %1252 = vmatprep.subr.bf16.mxu0 0
        %1253 = vmatpush1.bf16.msra.mxu0 0
        %1254 = vmatprep.subr.bf16.mxu0 0
        %1255 = vmatpush1.bf16.msra.mxu0 0
        %1256 = vmatprep.subr.bf16.mxu0 0
        %1257 = vmatpush1.bf16.msra.mxu0 0
        %1258 = vmatprep.subr.bf16.mxu0 0
        %1259 = vmatpush1.bf16.msra.mxu0 0
        %1260 = vmatprep.subr.bf16.mxu0 0
        %1261 = vmatpush1.bf16.msra.mxu0 0
        %1262 = vmatprep.subr.bf16.mxu0 0
        %1263 = vmatpush1.bf16.msra.mxu0 0
        %1264 = vmatprep.subr.bf16.mxu0 0
        %1265 = vmatpush1.bf16.msra.mxu0 0
        %1266 = vmatprep.mubr.bf16.mxu0 0
        %1267 = vmatmul.mubr.bf16.gmra.mrb[0].mxu0 %v1232
        %v1268 = vpop.f32.mrb[0].mxu0
        %v1269 = vadd.f32 %v1217, %v1268
        %v1270 = vpop.f32.mrb[0].mxu0
        %v1271 = vpop.f32.mrb[0].mxu0
        %v1272 = vpop.f32.mrb[0].mxu0
        %1273 = vdwg.mxu0
        %v1274 = vadd.f32 %v615, %v1269
        %v1275 = vld [vmem:[#allocation14] sm:$0x1]
        %v1276 = vld [vmem:[#allocation16] sm:$0x1]
        %v1277 = vsel %vm618, %v1274, 0.0
        %1278 = vadd.xlane.f32.xlu0 %v1277
        %v1279 = vpop.xlane.xlu0 %1278
        %v1280 = vmul.f32 %v1279, %v622
        %v1281 = vsub.f32 %v1274, %v1280
        %v1282 = vmul.f32 %v1281, %v1281
        %v1283 = vsel %vm618, %v1282, 0.0
        %1284 = vadd.xlane.f32.xlu0 %v1283
        %v1285 = vpop.xlane.xlu0 %1284
        %v1286 = vmul.f32 %v1285, %v622
        %v1287 = vadd.f32 %v1286, 1e-05
        %v1288 = vrsqrt.pop %v1287
        %v1289 = vmul.f32 %v1281, %v1288
        %v1291 = vlaneseq
        %v1292 = vshrl.u32 %v1291, 7
        %v1293 = vsub.s32 0, %v1292
        %v1294 = vrot.slane %v1275, %v1293
        %v1296 = vmul.f32 %v1289, %v1294
        %v1298 = vlaneseq
        %v1299 = vshrl.u32 %v1298, 7
        %v1300 = vsub.s32 0, %v1299
        %v1301 = vrot.slane %v1276, %v1300
        %v1303 = vadd.f32 %v1296, %v1301
        %v1304 = vpack.c.bf16 %v1303, %v1303
        %v1305 = vld [vmem:[#allocation17] sm:$0xf]
        %v1306 = vld [vmem:[#allocation17 + $0x4] sm:$0xf]
        %v1307 = vld [vmem:[#allocation17 + $0x8] sm:$0xf]
        %v1308 = vld [vmem:[#allocation17 + $0xc] sm:$0xf]
        %v1309 = vld [vmem:[#allocation19] sm:$0x1]
        %v1311 = vlaneseq
        %v1312 = vshrl.u32 %v1311, 7
        %v1313 = vsub.s32 0, %v1312
        %v1314 = vrot.slane %v1309, %v1313
        %v1320 = vunpack.c.l.b16 %v1305
        %v1321 = vunpack.c.l.b16 %v1306
        %v1322 = vunpack.c.l.b16 %v1307
        %v1323 = vunpack.c.l.b16 %v1308
        %v1324 = vpack.c.b16 %v1321, %v1320
        %v1325 = vpack.c.b16 %v1323, %v1322
        %v1329 = vsel %vm618, %v1304, 0
        %1331 = vmatprep.subr.bf16.mxu0 0
        %1332 = vmatpush1.bf16.msra.mxu0 %v1324
        %1333 = vmatprep.subr.bf16.mxu0 0
        %1334 = vmatpush1.bf16.msra.mxu0 %v1325
        %1335 = vmatprep.subr.bf16.mxu0 0
        %1336 = vmatpush1.bf16.msra.mxu0 0
        %1337 = vmatprep.subr.bf16.mxu0 0
        %1338 = vmatpush1.bf16.msra.mxu0 0
        %1339 = vmatprep.subr.bf16.mxu0 0
        %1340 = vmatpush1.bf16.msra.mxu0 0
        %1341 = vmatprep.subr.bf16.mxu0 0
        %1342 = vmatpush1.bf16.msra.mxu0 0
        %1343 = vmatprep.subr.bf16.mxu0 0
        %1344 = vmatpush1.bf16.msra.mxu0 0
        %1345 = vmatprep.subr.bf16.mxu0 0
        %1346 = vmatpush1.bf16.msra.mxu0 0
        %1347 = vmatprep.subr.bf16.mxu0 0
        %1348 = vmatpush1.bf16.msra.mxu0 0
        %1349 = vmatprep.subr.bf16.mxu0 0
        %1350 = vmatpush1.bf16.msra.mxu0 0
        %1351 = vmatprep.subr.bf16.mxu0 0
        %1352 = vmatpush1.bf16.msra.mxu0 0
        %1353 = vmatprep.subr.bf16.mxu0 0
        %1354 = vmatpush1.bf16.msra.mxu0 0
        %1355 = vmatprep.subr.bf16.mxu0 0
        %1356 = vmatpush1.bf16.msra.mxu0 0
        %1357 = vmatprep.subr.bf16.mxu0 0
        %1358 = vmatpush1.bf16.msra.mxu0 0
        %1359 = vmatprep.subr.bf16.mxu0 0
        %1360 = vmatpush1.bf16.msra.mxu0 0
        %1361 = vmatprep.subr.bf16.mxu0 0
        %1362 = vmatpush1.bf16.msra.mxu0 0
        %1363 = vmatprep.mubr.bf16.mxu0 0
        %1364 = vmatmul.mubr.bf16.gmra.mrb[0].mxu0 %v1329
        %v1365 = vpop.f32.mrb[0].mxu0
        %v1366 = vadd.f32 %v1314, %v1365
        %v1367 = vpop.f32.mrb[0].mxu0
        %v1368 = vpop.f32.mrb[0].mxu0
        %v1369 = vpop.f32.mrb[0].mxu0
        %1370 = vdwg.mxu0
        %v1371 = vmul.f32 %v1366, 0.5
        %v1372 = vmul.f32 %v1366, 0.70710677
        %v1373 = vand.u32 2147483647, %v1372
        %v1374 = vmul.f32 %v1373, 0.3275911
        %v1375 = vadd.f32 %v1374, 1.0
        %v1376 = vrcp.pop %v1375
        %v1377 = vmul.f32 1.0, %v1376
        %v1378 = vmul.f32 %v1377, 1.0614054
        %v1379 = vadd.f32 %v1378, -1.4531521
        %v1380 = vmul.f32 %v1379, %v1377
        %v1381 = vadd.f32 %v1380, 1.4214138
        %v1382 = vmul.f32 %v1381, %v1377
        %v1383 = vadd.f32 %v1382, -0.28449672
        %v1384 = vmul.f32 %v1383, %v1377
        %v1385 = vadd.f32 %v1384, 0.2548296
        %v1386 = vmul.f32 %v1385, %v1377
        %v1387 = vsub.f32 0.0, %v1373
        %v1388 = vmul.f32 %v1387, %v1373
        %v1389 = vmul.f32 %v1388, 1.442695
        %v1390 = vpow.pop %v1389
        %v1391 = vmul.f32 %v1386, %v1390
        %v1392 = vsub.f32 1.0, %v1391
        %vm1393 = vcmp.ge.f32.partialorder %v1372, 0.0
        %v1394 = vsub.f32 0.0, %v1392
        %v1395 = vsel %vm1393, %v1392, %v1394
        %v1396 = vadd.f32 %v1395, 1.0
        %v1397 = vmul.f32 %v1371, %v1396
        %v1398 = vpack.c.bf16 %v1397, %v1397
        %v1399 = vld [vmem:[#allocation20] sm:$0xf]
        %v1400 = vld [vmem:[#allocation20 + $0x4] sm:$0xf]
        %v1401 = vld [vmem:[#allocation20 + $0x8] sm:$0xf]
        %v1402 = vld [vmem:[#allocation20 + $0xc] sm:$0xf]
        %v1403 = vld [vmem:[#allocation20 + $0x10] sm:$0xf]
        %v1404 = vld [vmem:[#allocation20 + $0x14] sm:$0xf]
        %v1405 = vld [vmem:[#allocation20 + $0x18] sm:$0xf]
        %v1406 = vld [vmem:[#allocation20 + $0x1c] sm:$0xf]
        %v1407 = vld [vmem:[#allocation22] sm:$0x1]
        %v1409 = vlaneseq
        %v1410 = vshrl.u32 %v1409, 7
        %v1411 = vsub.s32 0, %v1410
        %v1412 = vrot.slane %v1407, %v1411
        %v1422 = vunpack.c.l.b16 %v1399
        %v1423 = vunpack.c.l.b16 %v1400
        %v1424 = vunpack.c.l.b16 %v1401
        %v1425 = vunpack.c.l.b16 %v1402
        %v1426 = vunpack.c.l.b16 %v1403
        %v1427 = vunpack.c.l.b16 %v1404
        %v1428 = vunpack.c.l.b16 %v1405
        %v1429 = vunpack.c.l.b16 %v1406
        %v1430 = vpack.c.b16 %v1423, %v1422
        %v1431 = vpack.c.b16 %v1425, %v1424
        %v1432 = vpack.c.b16 %v1427, %v1426
        %v1433 = vpack.c.b16 %v1429, %v1428
        %vm1438 = vcmask 523264
        %v1440 = vsel %vm1438, %v1398, 0
        %1442 = vmatprep.subr.bf16.mxu0 0
        %1443 = vmatpush1.bf16.msra.mxu0 %v1430
        %1444 = vmatprep.subr.bf16.mxu0 0
        %1445 = vmatpush1.bf16.msra.mxu0 %v1431
        %1446 = vmatprep.subr.bf16.mxu0 0
        %1447 = vmatpush1.bf16.msra.mxu0 %v1432
        %1448 = vmatprep.subr.bf16.mxu0 0
        %1449 = vmatpush1.bf16.msra.mxu0 %v1433
        %1450 = vmatprep.subr.bf16.mxu0 0
        %1451 = vmatpush1.bf16.msra.mxu0 0
        %1452 = vmatprep.subr.bf16.mxu0 0
        %1453 = vmatpush1.bf16.msra.mxu0 0
        %1454 = vmatprep.subr.bf16.mxu0 0
        %1455 = vmatpush1.bf16.msra.mxu0 0
        %1456 = vmatprep.subr.bf16.mxu0 0
        %1457 = vmatpush1.bf16.msra.mxu0 0
        %1458 = vmatprep.subr.bf16.mxu0 0
        %1459 = vmatpush1.bf16.msra.mxu0 0
        %1460 = vmatprep.subr.bf16.mxu0 0
        %1461 = vmatpush1.bf16.msra.mxu0 0
        %1462 = vmatprep.subr.bf16.mxu0 0
        %1463 = vmatpush1.bf16.msra.mxu0 0
        %1464 = vmatprep.subr.bf16.mxu0 0
        %1465 = vmatpush1.bf16.msra.mxu0 0
        %1466 = vmatprep.subr.bf16.mxu0 0
        %1467 = vmatpush1.bf16.msra.mxu0 0
        %1468 = vmatprep.subr.bf16.mxu0 0
        %1469 = vmatpush1.bf16.msra.mxu0 0
        %1470 = vmatprep.subr.bf16.mxu0 0
        %1471 = vmatpush1.bf16.msra.mxu0 0
        %1472 = vmatprep.subr.bf16.mxu0 0
        %1473 = vmatpush1.bf16.msra.mxu0 0
        %1474 = vmatprep.mubr.bf16.mxu0 0
        %1475 = vmatmul.mubr.bf16.gmra.mrb[0].mxu0 %v1440
        %v1476 = vpop.f32.mrb[0].mxu0
        %v1477 = vadd.f32 %v1412, %v1476
        %v1478 = vpop.f32.mrb[0].mxu0
        %v1479 = vpop.f32.mrb[0].mxu0
        %v1480 = vpop.f32.mrb[0].mxu0
        %1481 = vdwg.mxu0
        %v1482 = vadd.f32 %v1274, %v1477
        %1483 = vst.msk [vmem:[%s613] sm:$0xff] %vm618, %v1482
        %s1484 = sand.u32 %s322, 1
        %s1485 = scalar_lea.sflag [#allocation4], %s1484
        %s1486 = sand.u32 %s322, 1
        %s1487 = smul.addr %s1486, 8
        %s1488 = scalar_lea.vmem [#allocation23], %s1487
        // Predicated region
        $region125: #{tpu_custom_call.1} parent=71 // pred_check
          %p1489 = pneg %p332
        $region126: #{tpu_custom_call.1} parent=71 // pred_check_branch
          %1491 = sbr.rel (%p1489) target = $region128
        $region127: #{tpu_custom_call.1} parent=71 // pred_region
          %s1493 = ssub.s32 128, 128
          %1494 = vsyncadd %s1485, %s1493
          %s1495 = smul.addr %s36, 128
          %s1496 = scalar_lea.hbm %s13, %s1495
          %s1498 = sshll.u32 %s1488, 4
          %s1499 = int_to_ptr.vmem [resolvable:$true] %s1498
          %1501 = dma.vmem_to_hbm [thread:$0]  %s1499, 128, %s1496, %s1485
        $region128: #{tpu_custom_call.1} parent=71 // pred_fallthru
          _
      $region72: #{tpu_custom_call.1} parent=5 // pred_fallthru
        _
      %p1502 = scmp.le.s32.totalorder 2, %s31
      // Predicated region
      $region129: #{tpu_custom_call.1} parent=5 // pred_check
        %p1503 = pneg %p1502
      $region130: #{tpu_custom_call.1} parent=5 // pred_check_branch
        %1505 = sbr.rel (%p1503) target = $region132
      $region131: #{tpu_custom_call.1} parent=5 // pred_region
        %s1506 = ssub.s32 %s31, 2
        // Predicated region
        $region133: #{tpu_custom_call.1} parent=131 // pred_check
          %p1507 = pneg %p338
        $region134: #{tpu_custom_call.1} parent=131 // pred_check_branch
          %1509 = sbr.rel (%p1507) target = $region136
        $region135: #{tpu_custom_call.1} parent=131 // pred_region
          %s1510 = sand.u32 %s323, 1
          %s1511 = scalar_lea.sflag [#allocation4], %s1510
          %s1512 = sand.u32 %s323, 1
          %s1513 = smul.addr %s1512, 8
          %s1514 = scalar_lea.vmem [#allocation23], %s1513
          %1515 = dma.done %s1511, 128
        $region136: #{tpu_custom_call.1} parent=131 // pred_fallthru
          _
      $region132: #{tpu_custom_call.1} parent=5 // pred_fallthru
        _
    $region6: #{tpu_custom_call.1} parent=1 // loop_footer
      %s35 = sadd.s32 1, %s31
    $region7: #{tpu_custom_call.1} parent=1 // loop_footer_branch
      %30 = sbr.rel target = $region3
    $region8: #{tpu_custom_call.1} parent=1 // loop_exit
      _
    %1516 = vsyncpa [#allocation3], 1
    %s1517 = scalar_lea.sflag [#allocation3], 1
    %1518 = vsyncpa %s1517, 1
    %1519 = vsyncpa [#allocation6], 1
    %1520 = vsyncpa [#allocation9], 1
    %1521 = vsyncpa [#allocation12], 1
    %1522 = vsyncpa [#allocation15], 1
    %1523 = vsyncpa [#allocation18], 1
    %1524 = vsyncpa [#allocation21], 1
    %1525 = vsyncpa [#allocation4], 1
    %s1526 = scalar_lea.sflag [#allocation4], 1
    %1527 = vsyncpa %s1526, 1

// kernel: tpu_custom_call.1
$region0: #{tpu_custom_call.1}
  #allocation0 [shape = 'u32[]', space=smem, size = 0x4, offset = 0x4, fixed_abs, tag = 'smem constant byte address 0x4 - core index']
  #allocation1 [shape = 'u32[144,128]{1,0:T(1,128)}', space=vmem, size = 0x12000, scoped, tag = 'internal scratch']
  %s0 = inlined_call_operand.hbm [shape: f32[2,8,32], index: 0, kind: input, shape index: {}]
  %s1 = inlined_call_operand.hbm [shape: f32[1,32], index: 1, kind: input, shape index: {}]
  %s2 = inlined_call_operand.hbm [shape: f32[1,32], index: 2, kind: input, shape index: {}]
  %s3 = inlined_call_operand.hbm [shape: bf16[32,96], index: 3, kind: input, shape index: {}]
  %s4 = inlined_call_operand.hbm [shape: f32[1,96], index: 4, kind: input, shape index: {}]
  %s5 = inlined_call_operand.hbm [shape: bf16[32,32], index: 5, kind: input, shape index: {}]
  %s6 = inlined_call_operand.hbm [shape: f32[1,32], index: 6, kind: input, shape index: {}]
  %s7 = inlined_call_operand.hbm [shape: f32[1,32], index: 7, kind: input, shape index: {}]
  %s8 = inlined_call_operand.hbm [shape: f32[1,32], index: 8, kind: input, shape index: {}]
  %s9 = inlined_call_operand.hbm [shape: bf16[32,64], index: 9, kind: input, shape index: {}]
  %s10 = inlined_call_operand.hbm [shape: f32[1,64], index: 10, kind: input, shape index: {}]
  %s11 = inlined_call_operand.hbm [shape: bf16[64,32], index: 11, kind: input, shape index: {}]
  %s12 = inlined_call_operand.hbm [shape: f32[1,32], index: 12, kind: input, shape index: {}]
  %s13 = inlined_call_operand.hbm [shape: f32[2,8,32], index: 13, kind: output, shape index: {}]
  %s14 = sld [smem:[#allocation0]]
  $region137: #{tpu_custom_call.1} parent=0
    _
  %s16 = ssub.s32 1, %s14
  %s17 = scalar_select 0, %s16, %s14
  $region1: #{tpu_custom_call.1} parent=0
    #allocation2 [shape = 'u8[8192]{0}', space=vmem, size = 0x2000, scoped, tag = 'input window, operand 0']
    #allocation3 [shape = 's32[2]{0}', space=sflag, size = 0x8, scoped, tag = 'scoped memory for tpu_custom_call.1']
    #allocation4 [shape = 's32[2]{0}', space=sflag, size = 0x8, scoped, tag = 'scoped memory for tpu_custom_call.1']
    #allocation5 [shape = 'u8[512]{0}', space=vmem, size = 0x400, scoped, tag = 'input window, operand 1, single buffered']
    #allocation6 [shape = 's32[1]{0}', space=sflag, size = 0x4, scoped, tag = 'scoped memory for tpu_custom_call.1']
    #allocation7 [shape = 'u8[512]{0}', space=vmem, size = 0x400, scoped, tag = 'input window, operand 2, single buffered']
    #allocation8 [shape = 'u8[8192]{0}', space=vmem, size = 0x2000, scoped, tag = 'input window, operand 3, single buffered']
    #allocation9 [shape = 's32[1]{0}', space=sflag, size = 0x4, scoped, tag = 'scoped memory for tpu_custom_call.1']
    #allocation10 [shape = 'u8[512]{0}', space=vmem, size = 0x400, scoped, tag = 'input window, operand 4, single buffered']
    #allocation11 [shape = 'u8[8192]{0}', space=vmem, size = 0x2000, scoped, tag = 'input window, operand 5, single buffered']
    #allocation12 [shape = 's32[1]{0}', space=sflag, size = 0x4, scoped, tag = 'scoped memory for tpu_custom_call.1']
    #allocation13 [shape = 'u8[512]{0}', space=vmem, size = 0x400, scoped, tag = 'input window, operand 6, single buffered']
    #allocation14 [shape = 'u8[512]{0}', space=vmem, size = 0x400, scoped, tag = 'input window, operand 7, single buffered']
    #allocation15 [shape = 's32[1]{0}', space=sflag, size = 0x4, scoped, tag = 'scoped memory for tpu_custom_call.1']
    #allocation16 [shape = 'u8[512]{0}', space=vmem, size = 0x400, scoped, tag = 'input window, operand 8, single buffered']
    #allocation17 [shape = 'u8[8192]{0}', space=vmem, size = 0x2000, scoped, tag = 'input window, operand 9, single buffered']
    #allocation18 [shape = 's32[1]{0}', space=sflag, size = 0x4, scoped, tag = 'scoped memory for tpu_custom_call.1']
    #allocation19 [shape = 'u8[512]{0}', space=vmem, size = 0x400, scoped, tag = 'input window, operand 10, single buffered']
    #allocation20 [shape = 'u8[16384]{0}', space=vmem, size = 0x4000, scoped, tag = 'input window, operand 11, single buffered']
    #allocation21 [shape = 's32[1]{0}', space=sflag, size = 0x4, scoped, tag = 'scoped memory for tpu_custom_call.1']
    #allocation22 [shape = 'u8[512]{0}', space=vmem, size = 0x400, scoped, tag = 'input window, operand 12, single buffered']
    #allocation23 [shape = 'u8[8192]{0}', space=vmem, size = 0x2000, scoped, tag = 'output window, operand 0']
    %18 = vsyncpa [#allocation3], 0
    %s19 = scalar_lea.sflag [#allocation3], 1
    %20 = vsyncpa %s19, 0
    %21 = vsyncpa [#allocation6], 0
    %22 = vsyncpa [#allocation9], 0
    %23 = vsyncpa [#allocation12], 0
    %24 = vsyncpa [#allocation15], 0
    %25 = vsyncpa [#allocation18], 0
    %26 = vsyncpa [#allocation21], 0
    %27 = vsyncpa [#allocation4], 0
    %s28 = scalar_lea.sflag [#allocation4], 1
    %29 = vsyncpa %s28, 0
    loop: start=0, step=1, limit=4
    $region2: #{tpu_custom_call.1} parent=1 // loop_pre_header
      _
    $region3: #{tpu_custom_call.1} parent=1 // loop_header
      %s31 = sphi 0, %s35
      %p32 = scmp.ge.s32.totalorder %s31, 4
      %s41 = sphi 0, %s43
      %s44 = sphi 0, %s41
      %s45 = sphi 0, %s44
      %s61 = sphi 0, %s45
      %s65 = sphi 0, %s65
      %s67 = sphi 0, %s65
      %s68 = sphi 0, %s67
      %s82 = sphi 0, %s68
      %s86 = sphi 0, %s86
      %s88 = sphi 0, %s86
      %s89 = sphi 0, %s88
      %s103 = sphi 0, %s89
      %s107 = sphi 0, %s107
      %s109 = sphi 0, %s107
      %s110 = sphi 0, %s109
      %s124 = sphi 0, %s110
      %s128 = sphi 0, %s128
      %s130 = sphi 0, %s128
      %s131 = sphi 0, %s130
      %s145 = sphi 0, %s131
      %s149 = sphi 0, %s149
      %s151 = sphi 0, %s149
      %s152 = sphi 0, %s151
      %s166 = sphi 0, %s152
      %s170 = sphi 0, %s170
      %s172 = sphi 0, %s170
      %s173 = sphi 0, %s172
      %s187 = sphi 0, %s173
      %s191 = sphi 0, %s191
      %s193 = sphi 0, %s191
      %s194 = sphi 0, %s193
      %s208 = sphi 0, %s194
      %s212 = sphi 0, %s212
      %s214 = sphi 0, %s212
      %s215 = sphi 0, %s214
      %s229 = sphi 0, %s215
      %s233 = sphi 0, %s233
      %s235 = sphi 0, %s233
      %s236 = sphi 0, %s235
      %s250 = sphi 0, %s236
      %s254 = sphi 0, %s254
      %s256 = sphi 0, %s254
      %s257 = sphi 0, %s256
      %s271 = sphi 0, %s257
      %s275 = sphi 0, %s275
      %s277 = sphi 0, %s275
      %s278 = sphi 0, %s277
      %s292 = sphi 0, %s278
      %s296 = sphi 0, %s296
      %s298 = sphi 0, %s296
      %s299 = sphi 0, %s298
      %s313 = sphi 0, %s299
      %s319 = sphi 0, %s321
      %s322 = sphi 0, %s319
      %s323 = sphi 0, %s322
      %s339 = sphi 0, %s323
    $region4: #{tpu_custom_call.1} parent=1 // loop_header_branch
      %34 = sbr.rel (%p32) target = $region8
    $region5: #{tpu_custom_call.1} parent=1 // loop_body
      %s36 = ssub.s32 %s31, 1
      %s37 = ssub.s32 %s31, 2
      %s38 = sadd.s32 %s31, 1
      %s39 = ssub.s32 %s31, %s38
      %p40 = scmp.eq.s32.totalorder %s39, 0
      %s42 = sadd.s32 %s41, 1
      %s43 = scalar_select %p40, %s41, %s42
      %p46 = pneg %p40
      %p47 = scmp.eq.s32.totalorder %s31, 1
      %p48 = por %p46, %p47
      %p49 = scmp.ne.s32.totalorder %s41, %s44
      %p50 = scmp.eq.s32.totalorder %s31, 0
      %p51 = por %p49, %p50
      %p52 = scmp.ne.s32.totalorder %s41, %s44
      %p53 = scmp.eq.s32.totalorder %s36, 1
      %p54 = por %p52, %p53
      %p55 = scmp.ne.s32.totalorder %s44, %s45
      %p56 = scmp.eq.s32.totalorder %s36, 0
      %p57 = por %p55, %p56
      %p58 = scmp.ne.s32.totalorder %s44, %s45
      %p59 = scmp.eq.s32.totalorder %s37, 1
      %p60 = por %p58, %p59
      %p62 = scmp.ne.s32.totalorder %s45, %s61
      %p63 = scmp.eq.s32.totalorder %s37, 0
      %p64 = por %p62, %p63
      %s66 = sadd.s32 %s65, 1
      %p69 = scmp.eq.s32.totalorder %s31, 1
      %p70 = scmp.ne.s32.totalorder %s65, %s67
      %p71 = scmp.eq.s32.totalorder %s31, 0
      %p72 = por %p70, %p71
      %p73 = scmp.ne.s32.totalorder %s65, %s67
      %p74 = scmp.eq.s32.totalorder %s36, 1
      %p75 = por %p73, %p74
      %p76 = scmp.ne.s32.totalorder %s67, %s68
      %p77 = scmp.eq.s32.totalorder %s36, 0
      %p78 = por %p76, %p77
      %p79 = scmp.ne.s32.totalorder %s67, %s68
      %p80 = scmp.eq.s32.totalorder %s37, 1
      %p81 = por %p79, %p80
      %p83 = scmp.ne.s32.totalorder %s68, %s82
      %p84 = scmp.eq.s32.totalorder %s37, 0
      %p85 = por %p83, %p84
      %s87 = sadd.s32 %s86, 1
      %p90 = scmp.eq.s32.totalorder %s31, 1
      %p91 = scmp.ne.s32.totalorder %s86, %s88
      %p92 = scmp.eq.s32.totalorder %s31, 0
      %p93 = por %p91, %p92
      %p94 = scmp.ne.s32.totalorder %s86, %s88
      %p95 = scmp.eq.s32.totalorder %s36, 1
      %p96 = por %p94, %p95
      %p97 = scmp.ne.s32.totalorder %s88, %s89
      %p98 = scmp.eq.s32.totalorder %s36, 0
      %p99 = por %p97, %p98
      %p100 = scmp.ne.s32.totalorder %s88, %s89
      %p101 = scmp.eq.s32.totalorder %s37, 1
      %p102 = por %p100, %p101
      %p104 = scmp.ne.s32.totalorder %s89, %s103
      %p105 = scmp.eq.s32.totalorder %s37, 0
      %p106 = por %p104, %p105
      %s108 = sadd.s32 %s107, 1
      %p111 = scmp.eq.s32.totalorder %s31, 1
      %p112 = scmp.ne.s32.totalorder %s107, %s109
      %p113 = scmp.eq.s32.totalorder %s31, 0
      %p114 = por %p112, %p113
      %p115 = scmp.ne.s32.totalorder %s107, %s109
      %p116 = scmp.eq.s32.totalorder %s36, 1
      %p117 = por %p115, %p116
      %p118 = scmp.ne.s32.totalorder %s109, %s110
      %p119 = scmp.eq.s32.totalorder %s36, 0
      %p120 = por %p118, %p119
      %p121 = scmp.ne.s32.totalorder %s109, %s110
      %p122 = scmp.eq.s32.totalorder %s37, 1
      %p123 = por %p121, %p122
      %p125 = scmp.ne.s32.totalorder %s110, %s124
      %p126 = scmp.eq.s32.totalorder %s37, 0
      %p127 = por %p125, %p126
      %s129 = sadd.s32 %s128, 1
      %p132 = scmp.eq.s32.totalorder %s31, 1
      %p133 = scmp.ne.s32.totalorder %s128, %s130
      %p134 = scmp.eq.s32.totalorder %s31, 0
      %p135 = por %p133, %p134
      %p136 = scmp.ne.s32.totalorder %s128, %s130
      %p137 = scmp.eq.s32.totalorder %s36, 1
      %p138 = por %p136, %p137
      %p139 = scmp.ne.s32.totalorder %s130, %s131
      %p140 = scmp.eq.s32.totalorder %s36, 0
      %p141 = por %p139, %p140
      %p142 = scmp.ne.s32.totalorder %s130, %s131
      %p143 = scmp.eq.s32.totalorder %s37, 1
      %p144 = por %p142, %p143
      %p146 = scmp.ne.s32.totalorder %s131, %s145
      %p147 = scmp.eq.s32.totalorder %s37, 0
      %p148 = por %p146, %p147
      %s150 = sadd.s32 %s149, 1
      %p153 = scmp.eq.s32.totalorder %s31, 1
      %p154 = scmp.ne.s32.totalorder %s149, %s151
      %p155 = scmp.eq.s32.totalorder %s31, 0
      %p156 = por %p154, %p155
      %p157 = scmp.ne.s32.totalorder %s149, %s151
      %p158 = scmp.eq.s32.totalorder %s36, 1
      %p159 = por %p157, %p158
      %p160 = scmp.ne.s32.totalorder %s151, %s152
      %p161 = scmp.eq.s32.totalorder %s36, 0
      %p162 = por %p160, %p161
      %p163 = scmp.ne.s32.totalorder %s151, %s152
      %p164 = scmp.eq.s32.totalorder %s37, 1
      %p165 = por %p163, %p164
      %p167 = scmp.ne.s32.totalorder %s152, %s166
      %p168 = scmp.eq.s32.totalorder %s37, 0
      %p169 = por %p167, %p168
      %s171 = sadd.s32 %s170, 1
      %p174 = scmp.eq.s32.totalorder %s31, 1
      %p175 = scmp.ne.s32.totalorder %s170, %s172
      %p176 = scmp.eq.s32.totalorder %s31, 0
      %p177 = por %p175, %p176
      %p178 = scmp.ne.s32.totalorder %s170, %s172
      %p179 = scmp.eq.s32.totalorder %s36, 1
      %p180 = por %p178, %p179
      %p181 = scmp.ne.s32.totalorder %s172, %s173
      %p182 = scmp.eq.s32.totalorder %s36, 0
      %p183 = por %p181, %p182
      %p184 = scmp.ne.s32.totalorder %s172, %s173
      %p185 = scmp.eq.s32.totalorder %s37, 1
      %p186 = por %p184, %p185
      %p188 = scmp.ne.s32.totalorder %s173, %s187
      %p189 = scmp.eq.s32.totalorder %s37, 0
      %p190 = por %p188, %p189
      %s192 = sadd.s32 %s191, 1
      %p195 = scmp.eq.s32.totalorder %s31, 1
      %p196 = scmp.ne.s32.totalorder %s191, %s193
      %p197 = scmp.eq.s32.totalorder %s31, 0
      %p198 = por %p196, %p197
      %p199 = scmp.ne.s32.totalorder %s191, %s193
      %p200 = scmp.eq.s32.totalorder %s36, 1
      %p201 = por %p199, %p200
      %p202 = scmp.ne.s32.totalorder %s193, %s194
      %p203 = scmp.eq.s32.totalorder %s36, 0
      %p204 = por %p202, %p203
      %p205 = scmp.ne.s32.totalorder %s193, %s194
      %p206 = scmp.eq.s32.totalorder %s37, 1
      %p207 = por %p205, %p206
      %p209 = scmp.ne.s32.totalorder %s194, %s208
      %p210 = scmp.eq.s32.totalorder %s37, 0
      %p211 = por %p209, %p210
      %s213 = sadd.s32 %s212, 1
      %p216 = scmp.eq.s32.totalorder %s31, 1
      %p217 = scmp.ne.s32.totalorder %s212, %s214
      %p218 = scmp.eq.s32.totalorder %s31, 0
      %p219 = por %p217, %p218
      %p220 = scmp.ne.s32.totalorder %s212, %s214
      %p221 = scmp.eq.s32.totalorder %s36, 1
      %p222 = por %p220, %p221
      %p223 = scmp.ne.s32.totalorder %s214, %s215
      %p224 = scmp.eq.s32.totalorder %s36, 0
      %p225 = por %p223, %p224
      %p226 = scmp.ne.s32.totalorder %s214, %s215
      %p227 = scmp.eq.s32.totalorder %s37, 1
      %p228 = por %p226, %p227
      %p230 = scmp.ne.s32.totalorder %s215, %s229
      %p231 = scmp.eq.s32.totalorder %s37, 0
      %p232 = por %p230, %p231
      %s234 = sadd.s32 %s233, 1
      %p237 = scmp.eq.s32.totalorder %s31, 1
      %p238 = scmp.ne.s32.totalorder %s233, %s235
      %p239 = scmp.eq.s32.totalorder %s31, 0
      %p240 = por %p238, %p239
      %p241 = scmp.ne.s32.totalorder %s233, %s235
      %p242 = scmp.eq.s32.totalorder %s36, 1
      %p243 = por %p241, %p242
      %p244 = scmp.ne.s32.totalorder %s235, %s236
      %p245 = scmp.eq.s32.totalorder %s36, 0
      %p246 = por %p244, %p245
      %p247 = scmp.ne.s32.totalorder %s235, %s236
      %p248 = scmp.eq.s32.totalorder %s37, 1
      %p249 = por %p247, %p248
      %p251 = scmp.ne.s32.totalorder %s236, %s250
      %p252 = scmp.eq.s32.totalorder %s37, 0
      %p253 = por %p251, %p252
      %s255 = sadd.s32 %s254, 1
      %p258 = scmp.eq.s32.totalorder %s31, 1
      %p259 = scmp.ne.s32.totalorder %s254, %s256
      %p260 = scmp.eq.s32.totalorder %s31, 0
      %p261 = por %p259, %p260
      %p262 = scmp.ne.s32.totalorder %s254, %s256
      %p263 = scmp.eq.s32.totalorder %s36, 1
      %p264 = por %p262, %p263
      %p265 = scmp.ne.s32.totalorder %s256, %s257
      %p266 = scmp.eq.s32.totalorder %s36, 0
      %p267 = por %p265, %p266
      %p268 = scmp.ne.s32.totalorder %s256, %s257
      %p269 = scmp.eq.s32.totalorder %s37, 1
      %p270 = por %p268, %p269
      %p272 = scmp.ne.s32.totalorder %s257, %s271
      %p273 = scmp.eq.s32.totalorder %s37, 0
      %p274 = por %p272, %p273
      %s276 = sadd.s32 %s275, 1
      %p279 = scmp.eq.s32.totalorder %s31, 1
      %p280 = scmp.ne.s32.totalorder %s275, %s277
      %p281 = scmp.eq.s32.totalorder %s31, 0
      %p282 = por %p280, %p281
      %p283 = scmp.ne.s32.totalorder %s275, %s277
      %p284 = scmp.eq.s32.totalorder %s36, 1
      %p285 = por %p283, %p284
      %p286 = scmp.ne.s32.totalorder %s277, %s278
      %p287 = scmp.eq.s32.totalorder %s36, 0
      %p288 = por %p286, %p287
      %p289 = scmp.ne.s32.totalorder %s277, %s278
      %p290 = scmp.eq.s32.totalorder %s37, 1
      %p291 = por %p289, %p290
      %p293 = scmp.ne.s32.totalorder %s278, %s292
      %p294 = scmp.eq.s32.totalorder %s37, 0
      %p295 = por %p293, %p294
      %s297 = sadd.s32 %s296, 1
      %p300 = scmp.eq.s32.totalorder %s31, 1
      %p301 = scmp.ne.s32.totalorder %s296, %s298
      %p302 = scmp.eq.s32.totalorder %s31, 0
      %p303 = por %p301, %p302
      %p304 = scmp.ne.s32.totalorder %s296, %s298
      %p305 = scmp.eq.s32.totalorder %s36, 1
      %p306 = por %p304, %p305
      %p307 = scmp.ne.s32.totalorder %s298, %s299
      %p308 = scmp.eq.s32.totalorder %s36, 0
      %p309 = por %p307, %p308
      %p310 = scmp.ne.s32.totalorder %s298, %s299
      %p311 = scmp.eq.s32.totalorder %s37, 1
      %p312 = por %p310, %p311
      %p314 = scmp.ne.s32.totalorder %s299, %s313
      %p315 = scmp.eq.s32.totalorder %s37, 0
      %p316 = por %p314, %p315
      %s317 = ssub.s32 %s31, %s38
      %p318 = scmp.eq.s32.totalorder %s317, 0
      %s320 = sadd.s32 %s319, 1
      %s321 = scalar_select %p318, %s319, %s320
      %p324 = pneg %p318
      %p325 = scmp.eq.s32.totalorder %s31, 1
      %p326 = por %p324, %p325
      %p327 = scmp.ne.s32.totalorder %s319, %s322
      %p328 = scmp.eq.s32.totalorder %s31, 0
      %p329 = por %p327, %p328
      %p330 = scmp.ne.s32.totalorder %s319, %s322
      %p331 = scmp.eq.s32.totalorder %s36, 1
      %p332 = por %p330, %p331
      %p333 = scmp.ne.s32.totalorder %s322, %s323
      %p334 = scmp.eq.s32.totalorder %s36, 0
      %p335 = por %p333, %p334
      %p336 = scmp.ne.s32.totalorder %s322, %s323
      %p337 = scmp.eq.s32.totalorder %s37, 1
      %p338 = por %p336, %p337
      %p340 = scmp.ne.s32.totalorder %s323, %s339
      %p341 = scmp.eq.s32.totalorder %s37, 0
      %p342 = por %p340, %p341
      %p343 = scmp.le.s32.totalorder 1, %s31
      %p344 = scmp.lt.s32.totalorder %s31, 3
      %p345 = pnand %p343, %p344
      %p346 = pneg %p345
      // Predicated region
      $region9: #{tpu_custom_call.1} parent=5 // pred_check
        _
      $region10: #{tpu_custom_call.1} parent=5 // pred_check_branch
        %348 = sbr.rel (%p345) target = $region12
      $region11: #{tpu_custom_call.1} parent=5 // pred_region
        %s349 = ssub.s32 %s31, 1
        // Predicated region
        $region13: #{tpu_custom_call.1} parent=11 // pred_check
          %p350 = pneg %p78
        $region14: #{tpu_custom_call.1} parent=11 // pred_check_branch
          %352 = sbr.rel (%p350) target = $region16
        $region15: #{tpu_custom_call.1} parent=11 // pred_region
          %s354 = ssub.s32 16, 16
          %355 = vsyncadd [#allocation6], %s354
          %s357 = sshll.u32 [#allocation5], 4
          %s358 = int_to_ptr.vmem [resolvable:$true] %s357
          %360 = dma.hbm_to_vmem [thread:$0]  %s1, 16, %s358, [#allocation6]
        $region16: #{tpu_custom_call.1} parent=11 // pred_fallthru
          _
        // Predicated region
        $region17: #{tpu_custom_call.1} parent=11 // pred_check
          %p361 = pneg %p99
        $region18: #{tpu_custom_call.1} parent=11 // pred_check_branch
          %363 = sbr.rel (%p361) target = $region20
        $region19: #{tpu_custom_call.1} parent=11 // pred_region
          %s365 = ssub.s32 16, 16
          %366 = vsyncadd [#allocation6], %s365
          %s368 = sshll.u32 [#allocation7], 4
          %s369 = int_to_ptr.vmem [resolvable:$true] %s368
          %371 = dma.hbm_to_vmem [thread:$0]  %s2, 16, %s369, [#allocation6]
        $region20: #{tpu_custom_call.1} parent=11 // pred_fallthru
          _
        // Predicated region
        $region21: #{tpu_custom_call.1} parent=11 // pred_check
          %p372 = pneg %p120
        $region22: #{tpu_custom_call.1} parent=11 // pred_check_branch
          %374 = sbr.rel (%p372) target = $region24
        $region23: #{tpu_custom_call.1} parent=11 // pred_region
          %s376 = ssub.s32 256, 256
          %377 = vsyncadd [#allocation9], %s376
          %s378 = sshll.u32 [#allocation8], 4
          %s379 = int_to_ptr.vmem [resolvable:$true] %s378
          %384 = dma.hbm_to_vmem [thread:$0]  %s3, 256, %s379, [#allocation9], 64, 64, 4
        $region24: #{tpu_custom_call.1} parent=11 // pred_fallthru
          _
        // Predicated region
        $region25: #{tpu_custom_call.1} parent=11 // pred_check
          %p385 = pneg %p141
        $region26: #{tpu_custom_call.1} parent=11 // pred_check_branch
          %387 = sbr.rel (%p385) target = $region28
        $region27: #{tpu_custom_call.1} parent=11 // pred_region
          %s389 = ssub.s32 16, 16
          %390 = vsyncadd [#allocation9], %s389
          %s392 = sshll.u32 [#allocation10], 4
          %s393 = int_to_ptr.vmem [resolvable:$true] %s392
          %395 = dma.hbm_to_vmem [thread:$0]  %s4, 16, %s393, [#allocation9]
        $region28: #{tpu_custom_call.1} parent=11 // pred_fallthru
          _
        // Predicated region
        $region29: #{tpu_custom_call.1} parent=11 // pred_check
          %p396 = pneg %p162
        $region30: #{tpu_custom_call.1} parent=11 // pred_check_branch
          %398 = sbr.rel (%p396) target = $region32
        $region31: #{tpu_custom_call.1} parent=11 // pred_region
          %s400 = ssub.s32 256, 256
          %401 = vsyncadd [#allocation12], %s400
          %s402 = sshll.u32 [#allocation11], 4
          %s403 = int_to_ptr.vmem [resolvable:$true] %s402
          %408 = dma.hbm_to_vmem [thread:$0]  %s5, 256, %s403, [#allocation12], 64, 64, 4
        $region32: #{tpu_custom_call.1} parent=11 // pred_fallthru
          _
        // Predicated region
        $region33: #{tpu_custom_call.1} parent=11 // pred_check
          %p409 = pneg %p183
        $region34: #{tpu_custom_call.1} parent=11 // pred_check_branch
          %411 = sbr.rel (%p409) target = $region36
        $region35: #{tpu_custom_call.1} parent=11 // pred_region
          %s413 = ssub.s32 16, 16
          %414 = vsyncadd [#allocation12], %s413
          %s416 = sshll.u32 [#allocation13], 4
          %s417 = int_to_ptr.vmem [resolvable:$true] %s416
          %419 = dma.hbm_to_vmem [thread:$0]  %s6, 16, %s417, [#allocation12]
        $region36: #{tpu_custom_call.1} parent=11 // pred_fallthru
          _
        // Predicated region
        $region37: #{tpu_custom_call.1} parent=11 // pred_check
          %p420 = pneg %p204
        $region38: #{tpu_custom_call.1} parent=11 // pred_check_branch
          %422 = sbr.rel (%p420) target = $region40
        $region39: #{tpu_custom_call.1} parent=11 // pred_region
          %s424 = ssub.s32 16, 16
          %425 = vsyncadd [#allocation15], %s424
          %s427 = sshll.u32 [#allocation14], 4
          %s428 = int_to_ptr.vmem [resolvable:$true] %s427
          %430 = dma.hbm_to_vmem [thread:$0]  %s7, 16, %s428, [#allocation15]
        $region40: #{tpu_custom_call.1} parent=11 // pred_fallthru
          _
        // Predicated region
        $region41: #{tpu_custom_call.1} parent=11 // pred_check
          %p431 = pneg %p225
        $region42: #{tpu_custom_call.1} parent=11 // pred_check_branch
          %433 = sbr.rel (%p431) target = $region44
        $region43: #{tpu_custom_call.1} parent=11 // pred_region
          %s435 = ssub.s32 16, 16
          %436 = vsyncadd [#allocation15], %s435
          %s438 = sshll.u32 [#allocation16], 4
          %s439 = int_to_ptr.vmem [resolvable:$true] %s438
          %441 = dma.hbm_to_vmem [thread:$0]  %s8, 16, %s439, [#allocation15]
        $region44: #{tpu_custom_call.1} parent=11 // pred_fallthru
          _
        // Predicated region
        $region45: #{tpu_custom_call.1} parent=11 // pred_check
          %p442 = pneg %p246
        $region46: #{tpu_custom_call.1} parent=11 // pred_check_branch
          %444 = sbr.rel (%p442) target = $region48
        $region47: #{tpu_custom_call.1} parent=11 // pred_region
          %s446 = ssub.s32 256, 256
          %447 = vsyncadd [#allocation18], %s446
          %s448 = sshll.u32 [#allocation17], 4
          %s449 = int_to_ptr.vmem [resolvable:$true] %s448
          %454 = dma.hbm_to_vmem [thread:$0]  %s9, 256, %s449, [#allocation18], 64, 64, 4
        $region48: #{tpu_custom_call.1} parent=11 // pred_fallthru
          _
        // Predicated region
        $region49: #{tpu_custom_call.1} parent=11 // pred_check
          %p455 = pneg %p267
        $region50: #{tpu_custom_call.1} parent=11 // pred_check_branch
          %457 = sbr.rel (%p455) target = $region52
        $region51: #{tpu_custom_call.1} parent=11 // pred_region
          %s459 = ssub.s32 16, 16
          %460 = vsyncadd [#allocation18], %s459
          %s462 = sshll.u32 [#allocation19], 4
          %s463 = int_to_ptr.vmem [resolvable:$true] %s462
          %465 = dma.hbm_to_vmem [thread:$0]  %s10, 16, %s463, [#allocation18]
        $region52: #{tpu_custom_call.1} parent=11 // pred_fallthru
          _
        // Predicated region
        $region53: #{tpu_custom_call.1} parent=11 // pred_check
          %p466 = pneg %p288
        $region54: #{tpu_custom_call.1} parent=11 // pred_check_branch
          %468 = sbr.rel (%p466) target = $region56
        $region55: #{tpu_custom_call.1} parent=11 // pred_region
          %s470 = ssub.s32 512, 512
          %471 = vsyncadd [#allocation21], %s470
          %s472 = sshll.u32 [#allocation20], 4
          %s473 = int_to_ptr.vmem [resolvable:$true] %s472
          %478 = dma.hbm_to_vmem [thread:$0]  %s11, 512, %s473, [#allocation21], 64, 64, 4
        $region56: #{tpu_custom_call.1} parent=11 // pred_fallthru
          _
        // Predicated region
        $region57: #{tpu_custom_call.1} parent=11 // pred_check
          %p479 = pneg %p309
        $region58: #{tpu_custom_call.1} parent=11 // pred_check_branch
          %481 = sbr.rel (%p479) target = $region60
        $region59: #{tpu_custom_call.1} parent=11 // pred_region
          %s483 = ssub.s32 16, 16
          %484 = vsyncadd [#allocation21], %s483
          %s486 = sshll.u32 [#allocation22], 4
          %s487 = int_to_ptr.vmem [resolvable:$true] %s486
          %489 = dma.hbm_to_vmem [thread:$0]  %s12, 16, %s487, [#allocation21]
        $region60: #{tpu_custom_call.1} parent=11 // pred_fallthru
          _
      $region12: #{tpu_custom_call.1} parent=5 // pred_fallthru
        _
      %p490 = scmp.lt.s32.totalorder %s31, 2
      // Predicated region
      $region61: #{tpu_custom_call.1} parent=5 // pred_check
        %p491 = pneg %p490
      $region62: #{tpu_custom_call.1} parent=5 // pred_check_branch
        %493 = sbr.rel (%p491) target = $region64
      $region63: #{tpu_custom_call.1} parent=5 // pred_region
        // Predicated region
        $region65: #{tpu_custom_call.1} parent=63 // pred_check
          %p494 = pneg %p51
        $region66: #{tpu_custom_call.1} parent=63 // pred_check_branch
          %496 = sbr.rel (%p494) target = $region68
        $region67: #{tpu_custom_call.1} parent=63 // pred_region
          %s497 = sand.u32 %s41, 1
          %s498 = scalar_lea.sflag [#allocation3], %s497
          %s499 = sand.u32 %s41, 1
          %s500 = smul.addr %s499, 8
          %s501 = scalar_lea.vmem [#allocation2], %s500
          %s503 = ssub.s32 128, 128
          %504 = vsyncadd %s498, %s503
          %s505 = smul.addr %s31, 128
          %s506 = scalar_lea.hbm %s0, %s505
          %s508 = sshll.u32 %s501, 4
          %s509 = int_to_ptr.vmem [resolvable:$true] %s508
          %511 = dma.hbm_to_vmem [thread:$0]  %s506, 128, %s509, %s498
        $region68: #{tpu_custom_call.1} parent=63 // pred_fallthru
          _
      $region64: #{tpu_custom_call.1} parent=5 // pred_fallthru
        _
      %p512 = scmp.le.s32.totalorder 1, %s31
      %p513 = scmp.lt.s32.totalorder %s31, 3
      %p514 = pnand %p512, %p513
      %p515 = pneg %p514
      // Predicated region
      $region69: #{tpu_custom_call.1} parent=5 // pred_check
        _
      $region70: #{tpu_custom_call.1} parent=5 // pred_check_branch
        %517 = sbr.rel (%p514) target = $region72
      $region71: #{tpu_custom_call.1} parent=5 // pred_region
        %s518 = ssub.s32 %s31, 1
        %s519 = sand.u32 %s44, 1
        %s520 = scalar_lea.sflag [#allocation3], %s519
        %s521 = sand.u32 %s44, 1
        %s522 = smul.addr %s521, 8
        %s523 = scalar_lea.vmem [#allocation2], %s522
        // Predicated region
        $region73: #{tpu_custom_call.1} parent=71 // pred_check
          %p524 = pneg %p57
        $region74: #{tpu_custom_call.1} parent=71 // pred_check_branch
          %526 = sbr.rel (%p524) target = $region76
        $region75: #{tpu_custom_call.1} parent=71 // pred_region
          %527 = dma.done %s520, 128
        $region76: #{tpu_custom_call.1} parent=71 // pred_fallthru
          _
        // Predicated region
        $region77: #{tpu_custom_call.1} parent=71 // pred_check
          %p528 = pneg %p78
        $region78: #{tpu_custom_call.1} parent=71 // pred_check_branch
          %530 = sbr.rel (%p528) target = $region80
        $region79: #{tpu_custom_call.1} parent=71 // pred_region
          %531 = dma.done [#allocation6], 16
        $region80: #{tpu_custom_call.1} parent=71 // pred_fallthru
          _
        // Predicated region
        $region81: #{tpu_custom_call.1} parent=71 // pred_check
          %p532 = pneg %p99
        $region82: #{tpu_custom_call.1} parent=71 // pred_check_branch
          %534 = sbr.rel (%p532) target = $region84
        $region83: #{tpu_custom_call.1} parent=71 // pred_region
          %535 = dma.done [#allocation6], 16
        $region84: #{tpu_custom_call.1} parent=71 // pred_fallthru
          _
        // Predicated region
        $region85: #{tpu_custom_call.1} parent=71 // pred_check
          %p536 = pneg %p120
        $region86: #{tpu_custom_call.1} parent=71 // pred_check_branch
          %538 = sbr.rel (%p536) target = $region88
        $region87: #{tpu_custom_call.1} parent=71 // pred_region
          %539 = dma.done [#allocation9], 256
        $region88: #{tpu_custom_call.1} parent=71 // pred_fallthru
          _
        // Predicated region
        $region89: #{tpu_custom_call.1} parent=71 // pred_check
          %p540 = pneg %p141
        $region90: #{tpu_custom_call.1} parent=71 // pred_check_branch
          %542 = sbr.rel (%p540) target = $region92
        $region91: #{tpu_custom_call.1} parent=71 // pred_region
          %543 = dma.done [#allocation9], 16
        $region92: #{tpu_custom_call.1} parent=71 // pred_fallthru
          _
        // Predicated region
        $region93: #{tpu_custom_call.1} parent=71 // pred_check
          %p544 = pneg %p162
        $region94: #{tpu_custom_call.1} parent=71 // pred_check_branch
          %546 = sbr.rel (%p544) target = $region96
        $region95: #{tpu_custom_call.1} parent=71 // pred_region
          %547 = dma.done [#allocation12], 256
        $region96: #{tpu_custom_call.1} parent=71 // pred_fallthru
          _
        // Predicated region
        $region97: #{tpu_custom_call.1} parent=71 // pred_check
          %p548 = pneg %p183
        $region98: #{tpu_custom_call.1} parent=71 // pred_check_branch
          %550 = sbr.rel (%p548) target = $region100
        $region99: #{tpu_custom_call.1} parent=71 // pred_region
          %551 = dma.done [#allocation12], 16
        $region100: #{tpu_custom_call.1} parent=71 // pred_fallthru
          _
        // Predicated region
        $region101: #{tpu_custom_call.1} parent=71 // pred_check
          %p552 = pneg %p204
        $region102: #{tpu_custom_call.1} parent=71 // pred_check_branch
          %554 = sbr.rel (%p552) target = $region104
        $region103: #{tpu_custom_call.1} parent=71 // pred_region
          %555 = dma.done [#allocation15], 16
        $region104: #{tpu_custom_call.1} parent=71 // pred_fallthru
          _
        // Predicated region
        $region105: #{tpu_custom_call.1} parent=71 // pred_check
          %p556 = pneg %p225
        $region106: #{tpu_custom_call.1} parent=71 // pred_check_branch
          %558 = sbr.rel (%p556) target = $region108
        $region107: #{tpu_custom_call.1} parent=71 // pred_region
          %559 = dma.done [#allocation15], 16
        $region108: #{tpu_custom_call.1} parent=71 // pred_fallthru
          _
        // Predicated region
        $region109: #{tpu_custom_call.1} parent=71 // pred_check
          %p560 = pneg %p246
        $region110: #{tpu_custom_call.1} parent=71 // pred_check_branch
          %562 = sbr.rel (%p560) target = $region112
        $region111: #{tpu_custom_call.1} parent=71 // pred_region
          %563 = dma.done [#allocation18], 256
        $region112: #{tpu_custom_call.1} parent=71 // pred_fallthru
          _
        // Predicated region
        $region113: #{tpu_custom_call.1} parent=71 // pred_check
          %p564 = pneg %p267
        $region114: #{tpu_custom_call.1} parent=71 // pred_check_branch
          %566 = sbr.rel (%p564) target = $region116
        $region115: #{tpu_custom_call.1} parent=71 // pred_region
          %567 = dma.done [#allocation18], 16
        $region116: #{tpu_custom_call.1} parent=71 // pred_fallthru
          _
        // Predicated region
        $region117: #{tpu_custom_call.1} parent=71 // pred_check
          %p568 = pneg %p288
        $region118: #{tpu_custom_call.1} parent=71 // pred_check_branch
          %570 = sbr.rel (%p568) target = $region120
        $region119: #{tpu_custom_call.1} parent=71 // pred_region
          %571 = dma.done [#allocation21], 512
        $region120: #{tpu_custom_call.1} parent=71 // pred_fallthru
          _
        // Predicated region
        $region121: #{tpu_custom_call.1} parent=71 // pred_check
          %p572 = pneg %p309
        $region122: #{tpu_custom_call.1} parent=71 // pred_check_branch
          %574 = sbr.rel (%p572) target = $region124
        $region123: #{tpu_custom_call.1} parent=71 // pred_region
          %575 = dma.done [#allocation21], 16
        $region124: #{tpu_custom_call.1} parent=71 // pred_fallthru
          _
        %s576 = sand.u32 %s44, 1
        %s577 = scalar_lea.sflag [#allocation3], %s576
        %s578 = sand.u32 %s44, 1
        %s579 = smul.addr %s578, 8
        %s580 = scalar_lea.vmem [#allocation2], %s579
        %p581 = pneg %p57
        %p582 = pneg %p54
        %p583 = pneg %p78
        %p584 = pneg %p75
        %p585 = pneg %p99
        %p586 = pneg %p96
        %p587 = pneg %p120
        %p588 = pneg %p117
        %p589 = pneg %p141
        %p590 = pneg %p138
        %p591 = pneg %p162
        %p592 = pneg %p159
        %p593 = pneg %p183
        %p594 = pneg %p180
        %p595 = pneg %p204
        %p596 = pneg %p201
        %p597 = pneg %p225
        %p598 = pneg %p222
        %p599 = pneg %p246
        %p600 = pneg %p243
        %p601 = pneg %p267
        %p602 = pneg %p264
        %p603 = pneg %p288
        %p604 = pneg %p285
        %p605 = pneg %p309
        %p606 = pneg %p306
        %p607 = pneg %p335
        %p608 = pneg %p332
        %s609 = sand.u32 %s322, 1
        %s610 = scalar_lea.sflag [#allocation4], %s609
        %s611 = sand.u32 %s322, 1
        %s612 = smul.addr %s611, 8
        %s613 = scalar_lea.vmem [#allocation23], %s612
        %v615 = vld [vmem:[%s523] sm:$0xff]
        %v616 = vld [vmem:[#allocation5] sm:$0x1]
        %v617 = vld [vmem:[#allocation7] sm:$0x1]
        %vm618 = vcmask 261120
        %v619 = vsel %vm618, %v615, 0.0
        %620 = vadd.xlane.f32.xlu0 %v619
        %v621 = vpop.xlane.xlu0 %620
        %v622 = vrcp.pop 32.0
        %v623 = vmul.f32 %v621, %v622
        %v624 = vsub.f32 %v615, %v623
        %v625 = vmul.f32 %v624, %v624
        %v626 = vsel %vm618, %v625, 0.0
        %627 = vadd.xlane.f32.xlu0 %v626
        %v628 = vpop.xlane.xlu0 %627
        %v629 = vmul.f32 %v628, %v622
        %v630 = vadd.f32 %v629, 1e-05
        %v631 = vrsqrt.pop %v630
        %v632 = vmul.f32 %v624, %v631
        %v634 = vlaneseq
        %v635 = vshrl.u32 %v634, 7
        %v636 = vsub.s32 0, %v635
        %v637 = vrot.slane %v616, %v636
        %v639 = vmul.f32 %v632, %v637
        %v641 = vlaneseq
        %v642 = vshrl.u32 %v641, 7
        %v643 = vsub.s32 0, %v642
        %v644 = vrot.slane %v617, %v643
        %v646 = vadd.f32 %v639, %v644
        %v647 = vpack.c.bf16 %v646, %v646
        %v648 = vld [vmem:[#allocation8] sm:$0xf]
        %v649 = vld [vmem:[#allocation8 + $0x4] sm:$0xf]
        %v650 = vld [vmem:[#allocation8 + $0x8] sm:$0xf]
        %v651 = vld [vmem:[#allocation8 + $0xc] sm:$0xf]
        %v652 = vld [vmem:[#allocation10] sm:$0x1]
        %v654 = vlaneseq
        %v655 = vshrl.u32 %v654, 7
        %v656 = vsub.s32 0, %v655
        %v657 = vrot.slane %v652, %v656
        %v663 = vunpack.c.l.b16 %v648
        %v664 = vunpack.c.l.b16 %v649
        %v665 = vunpack.c.l.b16 %v650
        %v666 = vunpack.c.l.b16 %v651
        %v667 = vpack.c.b16 %v664, %v663
        %v668 = vpack.c.b16 %v666, %v665
        %v672 = vsel %vm618, %v647, 0
        %674 = vmatprep.subr.bf16.mxu0 0
        %675 = vmatpush1.bf16.msra.mxu0 %v667
        %676 = vmatprep.subr.bf16.mxu0 0
        %677 = vmatpush1.bf16.msra.mxu0 %v668
        %678 = vmatprep.subr.bf16.mxu0 0
        %679 = vmatpush1.bf16.msra.mxu0 0
        %680 = vmatprep.subr.bf16.mxu0 0
        %681 = vmatpush1.bf16.msra.mxu0 0
        %682 = vmatprep.subr.bf16.mxu0 0
        %683 = vmatpush1.bf16.msra.mxu0 0
        %684 = vmatprep.subr.bf16.mxu0 0
        %685 = vmatpush1.bf16.msra.mxu0 0
        %686 = vmatprep.subr.bf16.mxu0 0
        %687 = vmatpush1.bf16.msra.mxu0 0
        %688 = vmatprep.subr.bf16.mxu0 0
        %689 = vmatpush1.bf16.msra.mxu0 0
        %690 = vmatprep.subr.bf16.mxu0 0
        %691 = vmatpush1.bf16.msra.mxu0 0
        %692 = vmatprep.subr.bf16.mxu0 0
        %693 = vmatpush1.bf16.msra.mxu0 0
        %694 = vmatprep.subr.bf16.mxu0 0
        %695 = vmatpush1.bf16.msra.mxu0 0
        %696 = vmatprep.subr.bf16.mxu0 0
        %697 = vmatpush1.bf16.msra.mxu0 0
        %698 = vmatprep.subr.bf16.mxu0 0
        %699 = vmatpush1.bf16.msra.mxu0 0
        %700 = vmatprep.subr.bf16.mxu0 0
        %701 = vmatpush1.bf16.msra.mxu0 0
        %702 = vmatprep.subr.bf16.mxu0 0
        %703 = vmatpush1.bf16.msra.mxu0 0
        %704 = vmatprep.subr.bf16.mxu0 0
        %705 = vmatpush1.bf16.msra.mxu0 0
        %706 = vmatprep.mubr.bf16.mxu0 0
        %707 = vmatmul.mubr.bf16.gmra.mrb[0].mxu0 %v672
        %v708 = vpop.f32.mrb[0].mxu0
        %v709 = vadd.f32 %v657, %v708
        %v710 = vpop.f32.mrb[0].mxu0
        %v711 = vpop.f32.mrb[0].mxu0
        %v712 = vpop.f32.mrb[0].mxu0
        %713 = vdwg.mxu0
        %715 = vrot.lane.b32.xlu0 %v709, 120
        %v716 = vpop.permute.xlu0 %715
        %718 = vrot.lane.b32.xlu0 %v709, 112
        %v719 = vpop.permute.xlu0 %718
        %721 = vrot.lane.b32.xlu0 %v709, 104
        %v722 = vpop.permute.xlu0 %721
        %v724 = vpack.c.bf16 %v709, %v709
        %v725 = vpack.c.bf16 %v716, %v716
        %v726 = vpack.c.bf16 %v719, %v719
        %v727 = vpack.c.bf16 %v722, %v722
        %729 = vrot.lane.b32.xlu0 %v724, 96
        %v730 = vpop.permute.xlu0 %729
        %vm731 = vcmask 64512
        %v733 = vsel %vm731, %v724, 0
        %v736 = vsel %vm731, %v730, 0
        %738 = vmatprep.subr.bf16.mxu0 0
        %739 = vmatpush1.bf16.xpose.msra.mxu0 %v736
        %740 = vmatprep.subr.bf16.mxu0 0
        %741 = vmatpush1.bf16.xpose.msra.mxu0 0
        %742 = vmatprep.subr.bf16.mxu0 0
        %743 = vmatpush1.bf16.xpose.msra.mxu0 0
        %744 = vmatprep.subr.bf16.mxu0 0
        %745 = vmatpush1.bf16.xpose.msra.mxu0 0
        %746 = vmatprep.subr.bf16.mxu0 0
        %747 = vmatpush1.bf16.xpose.msra.mxu0 0
        %748 = vmatprep.subr.bf16.mxu0 0
        %749 = vmatpush1.bf16.xpose.msra.mxu0 0
        %750 = vmatprep.subr.bf16.mxu0 0
        %751 = vmatpush1.bf16.xpose.msra.mxu0 0
        %752 = vmatprep.subr.bf16.mxu0 0
        %753 = vmatpush1.bf16.xpose.msra.mxu0 0
        %754 = vmatprep.subr.bf16.mxu0 0
        %755 = vmatpush1.bf16.xpose.msra.mxu0 0
        %756 = vmatprep.subr.bf16.mxu0 0
        %757 = vmatpush1.bf16.xpose.msra.mxu0 0
        %758 = vmatprep.subr.bf16.mxu0 0
        %759 = vmatpush1.bf16.xpose.msra.mxu0 0
        %760 = vmatprep.subr.bf16.mxu0 0
        %761 = vmatpush1.bf16.xpose.msra.mxu0 0
        %762 = vmatprep.subr.bf16.mxu0 0
        %763 = vmatpush1.bf16.xpose.msra.mxu0 0
        %764 = vmatprep.subr.bf16.mxu0 0
        %765 = vmatpush1.bf16.xpose.msra.mxu0 0
        %766 = vmatprep.subr.bf16.mxu0 0
        %767 = vmatpush1.bf16.xpose.msra.mxu0 0
        %768 = vmatprep.subr.bf16.mxu0 0
        %769 = vmatpush1.bf16.xpose.msra.mxu0 0
        %770 = vmatprep.mubr.bf16.mxu0 0
        %771 = vmatmul.mubr.bf16.gmra.mrb[0].mxu0 %v733
        %v772 = vpop.f32.mrb[0].mxu0
        %v773 = vadd.f32 0.0, %v772
        %v774 = vpop.f32.mrb[0].mxu0
        %v775 = vpop.f32.mrb[0].mxu0
        %v776 = vpop.f32.mrb[0].mxu0
        %777 = vdwg.mxu0
        %779 = vrot.lane.b32.xlu0 %v725, 96
        %v780 = vpop.permute.xlu0 %779
        %v782 = vsel %vm731, %v725, 0
        %v785 = vsel %vm731, %v780, 0
        %787 = vmatprep.subr.bf16.mxu0 0
        %788 = vmatpush1.bf16.xpose.msra.mxu0 %v785
        %789 = vmatprep.subr.bf16.mxu0 0
        %790 = vmatpush1.bf16.xpose.msra.mxu0 0
        %791 = vmatprep.subr.bf16.mxu0 0
        %792 = vmatpush1.bf16.xpose.msra.mxu0 0
        %793 = vmatprep.subr.bf16.mxu0 0
        %794 = vmatpush1.bf16.xpose.msra.mxu0 0
        %795 = vmatprep.subr.bf16.mxu0 0
        %796 = vmatpush1.bf16.xpose.msra.mxu0 0
        %797 = vmatprep.subr.bf16.mxu0 0
        %798 = vmatpush1.bf16.xpose.msra.mxu0 0
        %799 = vmatprep.subr.bf16.mxu0 0
        %800 = vmatpush1.bf16.xpose.msra.mxu0 0
        %801 = vmatprep.subr.bf16.mxu0 0
        %802 = vmatpush1.bf16.xpose.msra.mxu0 0
        %803 = vmatprep.subr.bf16.mxu0 0
        %804 = vmatpush1.bf16.xpose.msra.mxu0 0
        %805 = vmatprep.subr.bf16.mxu0 0
        %806 = vmatpush1.bf16.xpose.msra.mxu0 0
        %807 = vmatprep.subr.bf16.mxu0 0
        %808 = vmatpush1.bf16.xpose.msra.mxu0 0
        %809 = vmatprep.subr.bf16.mxu0 0
        %810 = vmatpush1.bf16.xpose.msra.mxu0 0
        %811 = vmatprep.subr.bf16.mxu0 0
        %812 = vmatpush1.bf16.xpose.msra.mxu0 0
        %813 = vmatprep.subr.bf16.mxu0 0
        %814 = vmatpush1.bf16.xpose.msra.mxu0 0
        %815 = vmatprep.subr.bf16.mxu0 0
        %816 = vmatpush1.bf16.xpose.msra.mxu0 0
        %817 = vmatprep.subr.bf16.mxu0 0
        %818 = vmatpush1.bf16.xpose.msra.mxu0 0
        %819 = vmatprep.mubr.bf16.mxu0 0
        %820 = vmatmul.mubr.bf16.gmra.mrb[0].mxu0 %v782
        %v821 = vpop.f32.mrb[0].mxu0
        %v822 = vadd.f32 0.0, %v821
        %v823 = vpop.f32.mrb[0].mxu0
        %v824 = vpop.f32.mrb[0].mxu0
        %v825 = vpop.f32.mrb[0].mxu0
        %826 = vdwg.mxu0
        %828 = vrot.lane.b32.xlu0 %v726, 96
        %v829 = vpop.permute.xlu0 %828
        %v831 = vsel %vm731, %v726, 0
        %v834 = vsel %vm731, %v829, 0
        %836 = vmatprep.subr.bf16.mxu0 0
        %837 = vmatpush1.bf16.xpose.msra.mxu0 %v834
        %838 = vmatprep.subr.bf16.mxu0 0
        %839 = vmatpush1.bf16.xpose.msra.mxu0 0
        %840 = vmatprep.subr.bf16.mxu0 0
        %841 = vmatpush1.bf16.xpose.msra.mxu0 0
        %842 = vmatprep.subr.bf16.mxu0 0
        %843 = vmatpush1.bf16.xpose.msra.mxu0 0
        %844 = vmatprep.subr.bf16.mxu0 0
        %845 = vmatpush1.bf16.xpose.msra.mxu0 0
        %846 = vmatprep.subr.bf16.mxu0 0
        %847 = vmatpush1.bf16.xpose.msra.mxu0 0
        %848 = vmatprep.subr.bf16.mxu0 0
        %849 = vmatpush1.bf16.xpose.msra.mxu0 0
        %850 = vmatprep.subr.bf16.mxu0 0
        %851 = vmatpush1.bf16.xpose.msra.mxu0 0
        %852 = vmatprep.subr.bf16.mxu0 0
        %853 = vmatpush1.bf16.xpose.msra.mxu0 0
        %854 = vmatprep.subr.bf16.mxu0 0
        %855 = vmatpush1.bf16.xpose.msra.mxu0 0
        %856 = vmatprep.subr.bf16.mxu0 0
        %857 = vmatpush1.bf16.xpose.msra.mxu0 0
        %858 = vmatprep.subr.bf16.mxu0 0
        %859 = vmatpush1.bf16.xpose.msra.mxu0 0
        %860 = vmatprep.subr.bf16.mxu0 0
        %861 = vmatpush1.bf16.xpose.msra.mxu0 0
        %862 = vmatprep.subr.bf16.mxu0 0
        %863 = vmatpush1.bf16.xpose.msra.mxu0 0
        %864 = vmatprep.subr.bf16.mxu0 0
        %865 = vmatpush1.bf16.xpose.msra.mxu0 0
        %866 = vmatprep.subr.bf16.mxu0 0
        %867 = vmatpush1.bf16.xpose.msra.mxu0 0
        %868 = vmatprep.mubr.bf16.mxu0 0
        %869 = vmatmul.mubr.bf16.gmra.mrb[0].mxu0 %v831
        %v870 = vpop.f32.mrb[0].mxu0
        %v871 = vadd.f32 0.0, %v870
        %v872 = vpop.f32.mrb[0].mxu0
        %v873 = vpop.f32.mrb[0].mxu0
        %v874 = vpop.f32.mrb[0].mxu0
        %875 = vdwg.mxu0
        %877 = vrot.lane.b32.xlu0 %v727, 96
        %v878 = vpop.permute.xlu0 %877
        %v880 = vsel %vm731, %v727, 0
        %v883 = vsel %vm731, %v878, 0
        %885 = vmatprep.subr.bf16.mxu0 0
        %886 = vmatpush1.bf16.xpose.msra.mxu0 %v883
        %887 = vmatprep.subr.bf16.mxu0 0
        %888 = vmatpush1.bf16.xpose.msra.mxu0 0
        %889 = vmatprep.subr.bf16.mxu0 0
        %890 = vmatpush1.bf16.xpose.msra.mxu0 0
        %891 = vmatprep.subr.bf16.mxu0 0
        %892 = vmatpush1.bf16.xpose.msra.mxu0 0
        %893 = vmatprep.subr.bf16.mxu0 0
        %894 = vmatpush1.bf16.xpose.msra.mxu0 0
        %895 = vmatprep.subr.bf16.mxu0 0
        %896 = vmatpush1.bf16.xpose.msra.mxu0 0
        %897 = vmatprep.subr.bf16.mxu0 0
        %898 = vmatpush1.bf16.xpose.msra.mxu0 0
        %899 = vmatprep.subr.bf16.mxu0 0
        %900 = vmatpush1.bf16.xpose.msra.mxu0 0
        %901 = vmatprep.subr.bf16.mxu0 0
        %902 = vmatpush1.bf16.xpose.msra.mxu0 0
        %903 = vmatprep.subr.bf16.mxu0 0
        %904 = vmatpush1.bf16.xpose.msra.mxu0 0
        %905 = vmatprep.subr.bf16.mxu0 0
        %906 = vmatpush1.bf16.xpose.msra.mxu0 0
        %907 = vmatprep.subr.bf16.mxu0 0
        %908 = vmatpush1.bf16.xpose.msra.mxu0 0
        %909 = vmatprep.subr.bf16.mxu0 0
        %910 = vmatpush1.bf16.xpose.msra.mxu0 0
        %911 = vmatprep.subr.bf16.mxu0 0
        %912 = vmatpush1.bf16.xpose.msra.mxu0 0
        %913 = vmatprep.subr.bf16.mxu0 0
        %914 = vmatpush1.bf16.xpose.msra.mxu0 0
        %915 = vmatprep.subr.bf16.mxu0 0
        %916 = vmatpush1.bf16.xpose.msra.mxu0 0
        %917 = vmatprep.mubr.bf16.mxu0 0
        %918 = vmatmul.mubr.bf16.gmra.mrb[0].mxu0 %v880
        %v919 = vpop.f32.mrb[0].mxu0
        %v920 = vadd.f32 0.0, %v919
        %v921 = vpop.f32.mrb[0].mxu0
        %v922 = vpop.f32.mrb[0].mxu0
        %v923 = vpop.f32.mrb[0].mxu0
        %924 = vdwg.mxu0
        %v925 = vsel %vm731, %v773, -inf
        %926 = vmax.xlane.f32.xlu0 %v925
        %v927 = vpop.xlane.xlu0 %926
        %v928 = vsel %vm731, %v822, -inf
        %929 = vmax.xlane.f32.xlu0 %v928
        %v930 = vpop.xlane.xlu0 %929
        %v931 = vsel %vm731, %v871, -inf
        %932 = vmax.xlane.f32.xlu0 %v931
        %v933 = vpop.xlane.xlu0 %932
        %v934 = vsel %vm731, %v920, -inf
        %935 = vmax.xlane.f32.xlu0 %v934
        %v936 = vpop.xlane.xlu0 %935
        %v937 = vsub.f32 -inf, %v927
        %v938 = vsub.f32 -inf, %v930
        %v939 = vsub.f32 -inf, %v933
        %v940 = vsub.f32 -inf, %v936
        %v941 = vmul.f32 %v937, 1.442695
        %v942 = vpow.pop %v941
        %v943 = vmul.f32 %v938, 1.442695
        %v944 = vpow.pop %v943
        %v945 = vmul.f32 %v939, 1.442695
        %v946 = vpow.pop %v945
        %v947 = vmul.f32 %v940, 1.442695
        %v948 = vpow.pop %v947
        %v949 = vsub.f32 %v773, %v927
        %v950 = vsub.f32 %v822, %v930
        %v951 = vsub.f32 %v871, %v933
        %v952 = vsub.f32 %v920, %v936
        %v953 = vmul.f32 %v949, 1.442695
        %v954 = vpow.pop %v953
        %v955 = vmul.f32 %v950, 1.442695
        %v956 = vpow.pop %v955
        %v957 = vmul.f32 %v951, 1.442695
        %v958 = vpow.pop %v957
        %v959 = vmul.f32 %v952, 1.442695
        %v960 = vpow.pop %v959
        %v961 = vmul.f32 %v942, 0.0
        %v962 = vmul.f32 %v944, 0.0
        %v963 = vmul.f32 %v946, 0.0
        %v964 = vmul.f32 %v948, 0.0
        %v965 = vsel %vm731, %v954, 0.0
        %966 = vadd.xlane.f32.xlu0 %v965
        %v967 = vpop.xlane.xlu0 %966
        %v968 = vsel %vm731, %v956, 0.0
        %969 = vadd.xlane.f32.xlu0 %v968
        %v970 = vpop.xlane.xlu0 %969
        %v971 = vsel %vm731, %v958, 0.0
        %972 = vadd.xlane.f32.xlu0 %v971
        %v973 = vpop.xlane.xlu0 %972
        %v974 = vsel %vm731, %v960, 0.0
        %975 = vadd.xlane.f32.xlu0 %v974
        %v976 = vpop.xlane.xlu0 %975
        %v977 = vadd.f32 %v961, %v967
        %v978 = vadd.f32 %v962, %v970
        %v979 = vadd.f32 %v963, %v973
        %v980 = vadd.f32 %v964, %v976
        %v981 = vpack.c.bf16 %v954, %v954
        %v982 = vpack.c.bf16 %v956, %v956
        %v983 = vpack.c.bf16 %v958, %v958
        %v984 = vpack.c.bf16 %v960, %v960
        %985 = vrot.lane.b32.xlu0 %v724, 64
        %v986 = vpop.permute.xlu0 %985
        %v988 = vsel %vm731, %v981, 0
        %vm990 = vcmask 1043456
        %v992 = vsel %vm990, %v986, 0
        %994 = vmatprep.subr.bf16.mxu0 0
        %995 = vmatpush1.bf16.msra.mxu0 %v992
        %996 = vmatprep.subr.bf16.mxu0 0
        %997 = vmatpush1.bf16.msra.mxu0 0
        %998 = vmatprep.subr.bf16.mxu0 0
        %999 = vmatpush1.bf16.msra.mxu0 0
        %1000 = vmatprep.subr.bf16.mxu0 0
        %1001 = vmatpush1.bf16.msra.mxu0 0
        %1002 = vmatprep.subr.bf16.mxu0 0
        %1003 = vmatpush1.bf16.msra.mxu0 0
        %1004 = vmatprep.subr.bf16.mxu0 0
        %1005 = vmatpush1.bf16.msra.mxu0 0
        %1006 = vmatprep.subr.bf16.mxu0 0
        %1007 = vmatpush1.bf16.msra.mxu0 0
        %1008 = vmatprep.subr.bf16.mxu0 0
        %1009 = vmatpush1.bf16.msra.mxu0 0
        %1010 = vmatprep.subr.bf16.mxu0 0
        %1011 = vmatpush1.bf16.msra.mxu0 0
        %1012 = vmatprep.subr.bf16.mxu0 0
        %1013 = vmatpush1.bf16.msra.mxu0 0
        %1014 = vmatprep.subr.bf16.mxu0 0
        %1015 = vmatpush1.bf16.msra.mxu0 0
        %1016 = vmatprep.subr.bf16.mxu0 0
        %1017 = vmatpush1.bf16.msra.mxu0 0
        %1018 = vmatprep.subr.bf16.mxu0 0
        %1019 = vmatpush1.bf16.msra.mxu0 0
        %1020 = vmatprep.subr.bf16.mxu0 0
        %1021 = vmatpush1.bf16.msra.mxu0 0
        %1022 = vmatprep.subr.bf16.mxu0 0
        %1023 = vmatpush1.bf16.msra.mxu0 0
        %1024 = vmatprep.subr.bf16.mxu0 0
        %1025 = vmatpush1.bf16.msra.mxu0 0
        %1026 = vmatprep.mubr.bf16.mxu0 0
        %1027 = vmatmul.mubr.bf16.gmra.mrb[0].mxu0 %v988
        %v1028 = vpop.f32.mrb[0].mxu0
        %v1029 = vadd.f32 0.0, %v1028
        %v1030 = vpop.f32.mrb[0].mxu0
        %v1031 = vpop.f32.mrb[0].mxu0
        %v1032 = vpop.f32.mrb[0].mxu0
        %1033 = vdwg.mxu0
        %1034 = vrot.lane.b32.xlu0 %v725, 64
        %v1035 = vpop.permute.xlu0 %1034
        %v1037 = vsel %vm731, %v982, 0
        %v1040 = vsel %vm990, %v1035, 0
        %1042 = vmatprep.subr.bf16.mxu0 0
        %1043 = vmatpush1.bf16.msra.mxu0 %v1040
        %1044 = vmatprep.subr.bf16.mxu0 0
        %1045 = vmatpush1.bf16.msra.mxu0 0
        %1046 = vmatprep.subr.bf16.mxu0 0
        %1047 = vmatpush1.bf16.msra.mxu0 0
        %1048 = vmatprep.subr.bf16.mxu0 0
        %1049 = vmatpush1.bf16.msra.mxu0 0
        %1050 = vmatprep.subr.bf16.mxu0 0
        %1051 = vmatpush1.bf16.msra.mxu0 0
        %1052 = vmatprep.subr.bf16.mxu0 0
        %1053 = vmatpush1.bf16.msra.mxu0 0
        %1054 = vmatprep.subr.bf16.mxu0 0
        %1055 = vmatpush1.bf16.msra.mxu0 0
        %1056 = vmatprep.subr.bf16.mxu0 0
        %1057 = vmatpush1.bf16.msra.mxu0 0
        %1058 = vmatprep.subr.bf16.mxu0 0
        %1059 = vmatpush1.bf16.msra.mxu0 0
        %1060 = vmatprep.subr.bf16.mxu0 0
        %1061 = vmatpush1.bf16.msra.mxu0 0
        %1062 = vmatprep.subr.bf16.mxu0 0
        %1063 = vmatpush1.bf16.msra.mxu0 0
        %1064 = vmatprep.subr.bf16.mxu0 0
        %1065 = vmatpush1.bf16.msra.mxu0 0
        %1066 = vmatprep.subr.bf16.mxu0 0
        %1067 = vmatpush1.bf16.msra.mxu0 0
        %1068 = vmatprep.subr.bf16.mxu0 0
        %1069 = vmatpush1.bf16.msra.mxu0 0
        %1070 = vmatprep.subr.bf16.mxu0 0
        %1071 = vmatpush1.bf16.msra.mxu0 0
        %1072 = vmatprep.subr.bf16.mxu0 0
        %1073 = vmatpush1.bf16.msra.mxu0 0
        %1074 = vmatprep.mubr.bf16.mxu0 0
        %1075 = vmatmul.mubr.bf16.gmra.mrb[0].mxu0 %v1037
        %v1076 = vpop.f32.mrb[0].mxu0
        %v1077 = vadd.f32 0.0, %v1076
        %v1078 = vpop.f32.mrb[0].mxu0
        %v1079 = vpop.f32.mrb[0].mxu0
        %v1080 = vpop.f32.mrb[0].mxu0
        %1081 = vdwg.mxu0
        %1082 = vrot.lane.b32.xlu0 %v726, 64
        %v1083 = vpop.permute.xlu0 %1082
        %v1085 = vsel %vm731, %v983, 0
        %v1088 = vsel %vm990, %v1083, 0
        %1090 = vmatprep.subr.bf16.mxu0 0
        %1091 = vmatpush1.bf16.msra.mxu0 %v1088
        %1092 = vmatprep.subr.bf16.mxu0 0
        %1093 = vmatpush1.bf16.msra.mxu0 0
        %1094 = vmatprep.subr.bf16.mxu0 0
        %1095 = vmatpush1.bf16.msra.mxu0 0
        %1096 = vmatprep.subr.bf16.mxu0 0
        %1097 = vmatpush1.bf16.msra.mxu0 0
        %1098 = vmatprep.subr.bf16.mxu0 0
        %1099 = vmatpush1.bf16.msra.mxu0 0
        %1100 = vmatprep.subr.bf16.mxu0 0
        %1101 = vmatpush1.bf16.msra.mxu0 0
        %1102 = vmatprep.subr.bf16.mxu0 0
        %1103 = vmatpush1.bf16.msra.mxu0 0
        %1104 = vmatprep.subr.bf16.mxu0 0
        %1105 = vmatpush1.bf16.msra.mxu0 0
        %1106 = vmatprep.subr.bf16.mxu0 0
        %1107 = vmatpush1.bf16.msra.mxu0 0
        %1108 = vmatprep.subr.bf16.mxu0 0
        %1109 = vmatpush1.bf16.msra.mxu0 0
        %1110 = vmatprep.subr.bf16.mxu0 0
        %1111 = vmatpush1.bf16.msra.mxu0 0
        %1112 = vmatprep.subr.bf16.mxu0 0
        %1113 = vmatpush1.bf16.msra.mxu0 0
        %1114 = vmatprep.subr.bf16.mxu0 0
        %1115 = vmatpush1.bf16.msra.mxu0 0
        %1116 = vmatprep.subr.bf16.mxu0 0
        %1117 = vmatpush1.bf16.msra.mxu0 0
        %1118 = vmatprep.subr.bf16.mxu0 0
        %1119 = vmatpush1.bf16.msra.mxu0 0
        %1120 = vmatprep.subr.bf16.mxu0 0
        %1121 = vmatpush1.bf16.msra.mxu0 0
        %1122 = vmatprep.mubr.bf16.mxu0 0
        %1123 = vmatmul.mubr.bf16.gmra.mrb[0].mxu0 %v1085
        %v1124 = vpop.f32.mrb[0].mxu0
        %v1125 = vadd.f32 0.0, %v1124
        %v1126 = vpop.f32.mrb[0].mxu0
        %v1127 = vpop.f32.mrb[0].mxu0
        %v1128 = vpop.f32.mrb[0].mxu0
        %1129 = vdwg.mxu0
        %1130 = vrot.lane.b32.xlu0 %v727, 64
        %v1131 = vpop.permute.xlu0 %1130
        %v1133 = vsel %vm731, %v984, 0
        %v1136 = vsel %vm990, %v1131, 0
        %1138 = vmatprep.subr.bf16.mxu0 0
        %1139 = vmatpush1.bf16.msra.mxu0 %v1136
        %1140 = vmatprep.subr.bf16.mxu0 0
        %1141 = vmatpush1.bf16.msra.mxu0 0
        %1142 = vmatprep.subr.bf16.mxu0 0
        %1143 = vmatpush1.bf16.msra.mxu0 0
        %1144 = vmatprep.subr.bf16.mxu0 0
        %1145 = vmatpush1.bf16.msra.mxu0 0
        %1146 = vmatprep.subr.bf16.mxu0 0
        %1147 = vmatpush1.bf16.msra.mxu0 0
        %1148 = vmatprep.subr.bf16.mxu0 0
        %1149 = vmatpush1.bf16.msra.mxu0 0
        %1150 = vmatprep.subr.bf16.mxu0 0
        %1151 = vmatpush1.bf16.msra.mxu0 0
        %1152 = vmatprep.subr.bf16.mxu0 0
        %1153 = vmatpush1.bf16.msra.mxu0 0
        %1154 = vmatprep.subr.bf16.mxu0 0
        %1155 = vmatpush1.bf16.msra.mxu0 0
        %1156 = vmatprep.subr.bf16.mxu0 0
        %1157 = vmatpush1.bf16.msra.mxu0 0
        %1158 = vmatprep.subr.bf16.mxu0 0
        %1159 = vmatpush1.bf16.msra.mxu0 0
        %1160 = vmatprep.subr.bf16.mxu0 0
        %1161 = vmatpush1.bf16.msra.mxu0 0
        %1162 = vmatprep.subr.bf16.mxu0 0
        %1163 = vmatpush1.bf16.msra.mxu0 0
        %1164 = vmatprep.subr.bf16.mxu0 0
        %1165 = vmatpush1.bf16.msra.mxu0 0
        %1166 = vmatprep.subr.bf16.mxu0 0
        %1167 = vmatpush1.bf16.msra.mxu0 0
        %1168 = vmatprep.subr.bf16.mxu0 0
        %1169 = vmatpush1.bf16.msra.mxu0 0
        %1170 = vmatprep.mubr.bf16.mxu0 0
        %1171 = vmatmul.mubr.bf16.gmra.mrb[0].mxu0 %v1133
        %v1172 = vpop.f32.mrb[0].mxu0
        %v1173 = vadd.f32 0.0, %v1172
        %v1174 = vpop.f32.mrb[0].mxu0
        %v1175 = vpop.f32.mrb[0].mxu0
        %v1176 = vpop.f32.mrb[0].mxu0
        %1177 = vdwg.mxu0
        %v1178 = vadd.f32 %v961, %v1029
        %v1179 = vadd.f32 %v962, %v1077
        %v1180 = vadd.f32 %v963, %v1125
        %v1181 = vadd.f32 %v964, %v1173
        %v1182 = vrcp.pop %v977
        %v1183 = vrcp.pop %v978
        %v1184 = vrcp.pop %v979
        %v1185 = vrcp.pop %v980
        %v1186 = vmul.f32 %v1178, %v1182
        %v1187 = vmul.f32 %v1179, %v1183
        %v1188 = vmul.f32 %v1180, %v1184
        %v1189 = vmul.f32 %v1181, %v1185
        %1191 = vrot.lane.b32.xlu0 %v1187, 8
        %v1192 = vpop.permute.xlu0 %1191
        %1195 = vrot.lane.b32.xlu0 %v1188, 16
        %v1196 = vpop.permute.xlu0 %1195
        %1199 = vrot.lane.b32.xlu0 %v1189, 24
        %v1200 = vpop.permute.xlu0 %1199
        %v1202 = vsel %vm731, %v1186, %v1192
        %vm1203 = vcmask 130048
        %v1204 = vsel %vm1203, %v1202, %v1196
        %vm1205 = vcmask 195584
        %v1206 = vsel %vm1205, %v1204, %v1200
        %v1207 = vpack.c.bf16 %v1206, %v1206
        %v1208 = vld [vmem:[#allocation11] sm:$0xf]
        %v1209 = vld [vmem:[#allocation11 + $0x4] sm:$0xf]
        %v1210 = vld [vmem:[#allocation11 + $0x8] sm:$0xf]
        %v1211 = vld [vmem:[#allocation11 + $0xc] sm:$0xf]
        %v1212 = vld [vmem:[#allocation13] sm:$0x1]
        %v1214 = vlaneseq
        %v1215 = vshrl.u32 %v1214, 7
        %v1216 = vsub.s32 0, %v1215
        %v1217 = vrot.slane %v1212, %v1216
        %v1223 = vunpack.c.l.b16 %v1208
        %v1224 = vunpack.c.l.b16 %v1209
        %v1225 = vunpack.c.l.b16 %v1210
        %v1226 = vunpack.c.l.b16 %v1211
        %v1227 = vpack.c.b16 %v1224, %v1223
        %v1228 = vpack.c.b16 %v1226, %v1225
        %v1232 = vsel %vm618, %v1207, 0
        %1234 = vmatprep.subr.bf16.mxu0 0
        %1235 = vmatpush1.bf16.msra.mxu0 %v1227
        %1236 = vmatprep.subr.bf16.mxu0 0
        %1237 = vmatpush1.bf16.msra.mxu0 %v1228
        %1238 = vmatprep.subr.bf16.mxu0 0
        %1239 = vmatpush1.bf16.msra.mxu0 0
        %1240 = vmatprep.subr.bf16.mxu0 0
        %1241 = vmatpush1.bf16.msra.mxu0 0
        %1242 = vmatprep.subr.bf16.mxu0 0
        %1243 = vmatpush1.bf16.msra.mxu0 0
        %1244 = vmatprep.subr.bf16.mxu0 0
        %1245 = vmatpush1.bf16.msra.mxu0 0
        %1246 = vmatprep.subr.bf16.mxu0 0
        %1247 = vmatpush1.bf16.msra.mxu0 0
        %1248 = vmatprep.subr.bf16.mxu0 0
        %1249 = vmatpush1.bf16.msra.mxu0 0
        %1250 = vmatprep.subr.bf16.mxu0 0
        %1251 = vmatpush1.bf16.msra.mxu0 0
        %1252 = vmatprep.subr.bf16.mxu0 0
        %1253 = vmatpush1.bf16.msra.mxu0 0
        %1254 = vmatprep.subr.bf16.mxu0 0
        %1255 = vmatpush1.bf16.msra.mxu0 0
        %1256 = vmatprep.subr.bf16.mxu0 0
        %1257 = vmatpush1.bf16.msra.mxu0 0
        %1258 = vmatprep.subr.bf16.mxu0 0
        %1259 = vmatpush1.bf16.msra.mxu0 0
        %1260 = vmatprep.subr.bf16.mxu0 0
        %1261 = vmatpush1.bf16.msra.mxu0 0
        %1262 = vmatprep.subr.bf16.mxu0 0
        %1263 = vmatpush1.bf16.msra.mxu0 0
        %1264 = vmatprep.subr.bf16.mxu0 0
        %1265 = vmatpush1.bf16.msra.mxu0 0
        %1266 = vmatprep.mubr.bf16.mxu0 0
        %1267 = vmatmul.mubr.bf16.gmra.mrb[0].mxu0 %v1232
        %v1268 = vpop.f32.mrb[0].mxu0
        %v1269 = vadd.f32 %v1217, %v1268
        %v1270 = vpop.f32.mrb[0].mxu0
        %v1271 = vpop.f32.mrb[0].mxu0
        %v1272 = vpop.f32.mrb[0].mxu0
        %1273 = vdwg.mxu0
        %v1274 = vadd.f32 %v615, %v1269
        %v1275 = vld [vmem:[#allocation14] sm:$0x1]
        %v1276 = vld [vmem:[#allocation16] sm:$0x1]
        %v1277 = vsel %vm618, %v1274, 0.0
        %1278 = vadd.xlane.f32.xlu0 %v1277
        %v1279 = vpop.xlane.xlu0 %1278
        %v1280 = vmul.f32 %v1279, %v622
        %v1281 = vsub.f32 %v1274, %v1280
        %v1282 = vmul.f32 %v1281, %v1281
        %v1283 = vsel %vm618, %v1282, 0.0
        %1284 = vadd.xlane.f32.xlu0 %v1283
        %v1285 = vpop.xlane.xlu0 %1284
        %v1286 = vmul.f32 %v1285, %v622
        %v1287 = vadd.f32 %v1286, 1e-05
        %v1288 = vrsqrt.pop %v1287
        %v1289 = vmul.f32 %v1281, %v1288
        %v1291 = vlaneseq
        %v1292 = vshrl.u32 %v1291, 7
        %v1293 = vsub.s32 0, %v1292
        %v1294 = vrot.slane %v1275, %v1293
        %v1296 = vmul.f32 %v1289, %v1294
        %v1298 = vlaneseq
        %v1299 = vshrl.u32 %v1298, 7
        %v1300 = vsub.s32 0, %v1299
        %v1301 = vrot.slane %v1276, %v1300
        %v1303 = vadd.f32 %v1296, %v1301
        %v1304 = vpack.c.bf16 %v1303, %v1303
        %v1305 = vld [vmem:[#allocation17] sm:$0xf]
        %v1306 = vld [vmem:[#allocation17 + $0x4] sm:$0xf]
        %v1307 = vld [vmem:[#allocation17 + $0x8] sm:$0xf]
        %v1308 = vld [vmem:[#allocation17 + $0xc] sm:$0xf]
        %v1309 = vld [vmem:[#allocation19] sm:$0x1]
        %v1311 = vlaneseq
        %v1312 = vshrl.u32 %v1311, 7
        %v1313 = vsub.s32 0, %v1312
        %v1314 = vrot.slane %v1309, %v1313
        %v1320 = vunpack.c.l.b16 %v1305
        %v1321 = vunpack.c.l.b16 %v1306
        %v1322 = vunpack.c.l.b16 %v1307
        %v1323 = vunpack.c.l.b16 %v1308
        %v1324 = vpack.c.b16 %v1321, %v1320
        %v1325 = vpack.c.b16 %v1323, %v1322
        %v1329 = vsel %vm618, %v1304, 0
        %1331 = vmatprep.subr.bf16.mxu0 0
        %1332 = vmatpush1.bf16.msra.mxu0 %v1324
        %1333 = vmatprep.subr.bf16.mxu0 0
        %1334 = vmatpush1.bf16.msra.mxu0 %v1325
        %1335 = vmatprep.subr.bf16.mxu0 0
        %1336 = vmatpush1.bf16.msra.mxu0 0
        %1337 = vmatprep.subr.bf16.mxu0 0
        %1338 = vmatpush1.bf16.msra.mxu0 0
        %1339 = vmatprep.subr.bf16.mxu0 0
        %1340 = vmatpush1.bf16.msra.mxu0 0
        %1341 = vmatprep.subr.bf16.mxu0 0
        %1342 = vmatpush1.bf16.msra.mxu0 0
        %1343 = vmatprep.subr.bf16.mxu0 0
        %1344 = vmatpush1.bf16.msra.mxu0 0
        %1345 = vmatprep.subr.bf16.mxu0 0
        %1346 = vmatpush1.bf16.msra.mxu0 0
        %1347 = vmatprep.subr.bf16.mxu0 0
        %1348 = vmatpush1.bf16.msra.mxu0 0
        %1349 = vmatprep.subr.bf16.mxu0 0
        %1350 = vmatpush1.bf16.msra.mxu0 0
        %1351 = vmatprep.subr.bf16.mxu0 0
        %1352 = vmatpush1.bf16.msra.mxu0 0
        %1353 = vmatprep.subr.bf16.mxu0 0
        %1354 = vmatpush1.bf16.msra.mxu0 0
        %1355 = vmatprep.subr.bf16.mxu0 0
        %1356 = vmatpush1.bf16.msra.mxu0 0
        %1357 = vmatprep.subr.bf16.mxu0 0
        %1358 = vmatpush1.bf16.msra.mxu0 0
        %1359 = vmatprep.subr.bf16.mxu0 0
        %1360 = vmatpush1.bf16.msra.mxu0 0
        %1361 = vmatprep.subr.bf16.mxu0 0
        %1362 = vmatpush1.bf16.msra.mxu0 0
        %1363 = vmatprep.mubr.bf16.mxu0 0
        %1364 = vmatmul.mubr.bf16.gmra.mrb[0].mxu0 %v1329
        %v1365 = vpop.f32.mrb[0].mxu0
        %v1366 = vadd.f32 %v1314, %v1365
        %v1367 = vpop.f32.mrb[0].mxu0
        %v1368 = vpop.f32.mrb[0].mxu0
        %v1369 = vpop.f32.mrb[0].mxu0
        %1370 = vdwg.mxu0
        %v1371 = vmul.f32 %v1366, 0.5
        %v1372 = vmul.f32 %v1366, 0.70710677
        %v1373 = vand.u32 2147483647, %v1372
        %v1374 = vmul.f32 %v1373, 0.3275911
        %v1375 = vadd.f32 %v1374, 1.0
        %v1376 = vrcp.pop %v1375
        %v1377 = vmul.f32 1.0, %v1376
        %v1378 = vmul.f32 %v1377, 1.0614054
        %v1379 = vadd.f32 %v1378, -1.4531521
        %v1380 = vmul.f32 %v1379, %v1377
        %v1381 = vadd.f32 %v1380, 1.4214138
        %v1382 = vmul.f32 %v1381, %v1377
        %v1383 = vadd.f32 %v1382, -0.28449672
        %v1384 = vmul.f32 %v1383, %v1377
        %v1385 = vadd.f32 %v1384, 0.2548296
        %v1386 = vmul.f32 %v1385, %v1377
        %v1387 = vsub.f32 0.0, %v1373
        %v1388 = vmul.f32 %v1387, %v1373
        %v1389 = vmul.f32 %v1388, 1.442695
        %v1390 = vpow.pop %v1389
        %v1391 = vmul.f32 %v1386, %v1390
        %v1392 = vsub.f32 1.0, %v1391
        %vm1393 = vcmp.ge.f32.partialorder %v1372, 0.0
        %v1394 = vsub.f32 0.0, %v1392
        %v1395 = vsel %vm1393, %v1392, %v1394
        %v1396 = vadd.f32 %v1395, 1.0
        %v1397 = vmul.f32 %v1371, %v1396
        %v1398 = vpack.c.bf16 %v1397, %v1397
        %v1399 = vld [vmem:[#allocation20] sm:$0xf]
        %v1400 = vld [vmem:[#allocation20 + $0x4] sm:$0xf]
        %v1401 = vld [vmem:[#allocation20 + $0x8] sm:$0xf]
        %v1402 = vld [vmem:[#allocation20 + $0xc] sm:$0xf]
        %v1403 = vld [vmem:[#allocation20 + $0x10] sm:$0xf]
        %v1404 = vld [vmem:[#allocation20 + $0x14] sm:$0xf]
        %v1405 = vld [vmem:[#allocation20 + $0x18] sm:$0xf]
        %v1406 = vld [vmem:[#allocation20 + $0x1c] sm:$0xf]
        %v1407 = vld [vmem:[#allocation22] sm:$0x1]
        %v1409 = vlaneseq
        %v1410 = vshrl.u32 %v1409, 7
        %v1411 = vsub.s32 0, %v1410
        %v1412 = vrot.slane %v1407, %v1411
        %v1422 = vunpack.c.l.b16 %v1399
        %v1423 = vunpack.c.l.b16 %v1400
        %v1424 = vunpack.c.l.b16 %v1401
        %v1425 = vunpack.c.l.b16 %v1402
        %v1426 = vunpack.c.l.b16 %v1403
        %v1427 = vunpack.c.l.b16 %v1404
        %v1428 = vunpack.c.l.b16 %v1405
        %v1429 = vunpack.c.l.b16 %v1406
        %v1430 = vpack.c.b16 %v1423, %v1422
        %v1431 = vpack.c.b16 %v1425, %v1424
        %v1432 = vpack.c.b16 %v1427, %v1426
        %v1433 = vpack.c.b16 %v1429, %v1428
        %vm1438 = vcmask 523264
        %v1440 = vsel %vm1438, %v1398, 0
        %1442 = vmatprep.subr.bf16.mxu0 0
        %1443 = vmatpush1.bf16.msra.mxu0 %v1430
        %1444 = vmatprep.subr.bf16.mxu0 0
        %1445 = vmatpush1.bf16.msra.mxu0 %v1431
        %1446 = vmatprep.subr.bf16.mxu0 0
        %1447 = vmatpush1.bf16.msra.mxu0 %v1432
        %1448 = vmatprep.subr.bf16.mxu0 0
        %1449 = vmatpush1.bf16.msra.mxu0 %v1433
        %1450 = vmatprep.subr.bf16.mxu0 0
        %1451 = vmatpush1.bf16.msra.mxu0 0
        %1452 = vmatprep.subr.bf16.mxu0 0
        %1453 = vmatpush1.bf16.msra.mxu0 0
        %1454 = vmatprep.subr.bf16.mxu0 0
        %1455 = vmatpush1.bf16.msra.mxu0 0
        %1456 = vmatprep.subr.bf16.mxu0 0
        %1457 = vmatpush1.bf16.msra.mxu0 0
        %1458 = vmatprep.subr.bf16.mxu0 0
        %1459 = vmatpush1.bf16.msra.mxu0 0
        %1460 = vmatprep.subr.bf16.mxu0 0
        %1461 = vmatpush1.bf16.msra.mxu0 0
        %1462 = vmatprep.subr.bf16.mxu0 0
        %1463 = vmatpush1.bf16.msra.mxu0 0
        %1464 = vmatprep.subr.bf16.mxu0 0
        %1465 = vmatpush1.bf16.msra.mxu0 0
        %1466 = vmatprep.subr.bf16.mxu0 0
        %1467 = vmatpush1.bf16.msra.mxu0 0
        %1468 = vmatprep.subr.bf16.mxu0 0
        %1469 = vmatpush1.bf16.msra.mxu0 0
        %1470 = vmatprep.subr.bf16.mxu0 0
        %1471 = vmatpush1.bf16.msra.mxu0 0
        %1472 = vmatprep.subr.bf16.mxu0 0
        %1473 = vmatpush1.bf16.msra.mxu0 0
        %1474 = vmatprep.mubr.bf16.mxu0 0
        %1475 = vmatmul.mubr.bf16.gmra.mrb[0].mxu0 %v1440
        %v1476 = vpop.f32.mrb[0].mxu0
        %v1477 = vadd.f32 %v1412, %v1476
        %v1478 = vpop.f32.mrb[0].mxu0
        %v1479 = vpop.f32.mrb[0].mxu0
        %v1480 = vpop.f32.mrb[0].mxu0
        %1481 = vdwg.mxu0
        %v1482 = vadd.f32 %v1274, %v1477
        %1483 = vst.msk [vmem:[%s613] sm:$0xff] %vm618, %v1482
        %s1484 = sand.u32 %s322, 1
        %s1485 = scalar_lea.sflag [#allocation4], %s1484
        %s1486 = sand.u32 %s322, 1
        %s1487 = smul.addr %s1486, 8
        %s1488 = scalar_lea.vmem [#allocation23], %s1487
        // Predicated region
        $region125: #{tpu_custom_call.1} parent=71 // pred_check
          %p1489 = pneg %p332
        $region126: #{tpu_custom_call.1} parent=71 // pred_check_branch
          %1491 = sbr.rel (%p1489) target = $region128
        $region127: #{tpu_custom_call.1} parent=71 // pred_region
          %s1493 = ssub.s32 128, 128
          %1494 = vsyncadd %s1485, %s1493
          %s1495 = smul.addr %s36, 128
          %s1496 = scalar_lea.hbm %s13, %s1495
          %s1498 = sshll.u32 %s1488, 4
          %s1499 = int_to_ptr.vmem [resolvable:$true] %s1498
          %1501 = dma.vmem_to_hbm [thread:$0]  %s1499, 128, %s1496, %s1485
        $region128: #{tpu_custom_call.1} parent=71 // pred_fallthru
          _
      $region72: #{tpu_custom_call.1} parent=5 // pred_fallthru
        _
      %p1502 = scmp.le.s32.totalorder 2, %s31
      // Predicated region
      $region129: #{tpu_custom_call.1} parent=5 // pred_check
        %p1503 = pneg %p1502
      $region130: #{tpu_custom_call.1} parent=5 // pred_check_branch
        %1505 = sbr.rel (%p1503) target = $region132
      $region131: #{tpu_custom_call.1} parent=5 // pred_region
        %s1506 = ssub.s32 %s31, 2
        // Predicated region
        $region133: #{tpu_custom_call.1} parent=131 // pred_check
          %p1507 = pneg %p338
        $region134: #{tpu_custom_call.1} parent=131 // pred_check_branch
          %1509 = sbr.rel (%p1507) target = $region136
        $region135: #{tpu_custom_call.1} parent=131 // pred_region
          %s1510 = sand.u32 %s323, 1
          %s1511 = scalar_lea.sflag [#allocation4], %s1510
          %s1512 = sand.u32 %s323, 1
          %s1513 = smul.addr %s1512, 8
          %s1514 = scalar_lea.vmem [#allocation23], %s1513
          %1515 = dma.done %s1511, 128
        $region136: #{tpu_custom_call.1} parent=131 // pred_fallthru
          _
      $region132: #{tpu_custom_call.1} parent=5 // pred_fallthru
        _
    $region6: #{tpu_custom_call.1} parent=1 // loop_footer
      %s35 = sadd.s32 1, %s31
    $region7: #{tpu_custom_call.1} parent=1 // loop_footer_branch
      %30 = sbr.rel target = $region3
    $region8: #{tpu_custom_call.1} parent=1 // loop_exit
      _
    %1516 = vsyncpa [#allocation3], 1
    %s1517 = scalar_lea.sflag [#allocation3], 1
    %1518 = vsyncpa %s1517, 1
    %1519 = vsyncpa [#allocation6], 1
    %1520 = vsyncpa [#allocation9], 1
    %1521 = vsyncpa [#allocation12], 1
    %1522 = vsyncpa [#allocation15], 1
    %1523 = vsyncpa [#allocation18], 1
    %1524 = vsyncpa [#allocation21], 1
    %1525 = vsyncpa [#allocation4], 1
    %s1526 = scalar_lea.sflag [#allocation4], 1
    %1527 = vsyncpa %s1526, 1

</llo_original>
